<compile_context>
chip_gen: v7x
topology: tpu7x:2x2x1
jax: 0.10.0
libtpu: 0.0.40
codegen_flags: <defaults>
</compile_context>

<pallas_src>
import functools

import jax
import jax.numpy as jnp
from jax.experimental import pallas as pl
from jax.experimental.pallas import tpu as pltpu


def _round_up(x, m):
    return ((x + m - 1) // m) * m


def _cdiv(a, b):
    return (a + b - 1) // b


# ------------- Kernel 1: fused triple-conv (one MXU pass) + row-wise fc MLP -------------

def _fused_conv_fc_kernel(p_ref, wc_ref, bc_ref, w1_ref, b1_ref, w2_ref, b2_ref,
                          conv_ref, fc_ref):
    p = p_ref[...]                                                    # (tm, K) bf16
    # ONE fused matmul for [conv_match | conv_assembly | conv_assembly_fc] + shared ReLU.
    conv = jnp.maximum(
        jnp.dot(p, wc_ref[...], preferred_element_type=jnp.float32) + bc_ref[...], 0.0)
    # Store only the first STORE_W (multiple of 128) columns: [x | y | (head of f)].
    conv_ref[...] = conv[:, :conv_ref.shape[-1]]                      # lane-dense store
    # Row-wise fc MLP on the f branch.  w1 is zero-padded over the x/y rows, so the full
    # fused activation feeds straight in — no lane-offset slice, no in-kernel concat.
    h = jnp.maximum(
        jnp.dot(conv.astype(jnp.bfloat16), w1_ref[...],
                preferred_element_type=jnp.float32) + b1_ref[...], 0.0)
    fc_ref[...] = (jnp.dot(h.astype(jnp.bfloat16), w2_ref[...],
                           preferred_element_type=jnp.float32) + b2_ref[...])


def conv_trio_and_fc(x_nhwc, params, chunk_size):
    """Returns (xy, fc): xy (N, L, C+Cr) = [x_embed | y_embed], fc (N, L, chunk)."""
    N, H, W, Cin = x_nhwc.shape
    C = params['w_match'].shape[-1]
    Cr = params['w_asm'].shape[-1]
    K = 9 * Cin
    L = H * W
    M = N * L

    # TODO(synk): im2col stays in XLA; an in-kernel halo-DMA 3x3 conv (9 shifted-slice
    # matmuls on an (8,128)-aligned NHWC tile) would cut the patch-stream HBM traffic a
    # further ~4.5x but needs manual spatial tiling.
    xp = jnp.pad(x_nhwc, ((0, 0), (1, 1), (1, 1), (0, 0)))
    patches = [xp[:, dh:dh + H, dw:dw + W, :] for dh in range(3) for dw in range(3)]
    patches = jnp.concatenate(patches, axis=-1).reshape(M, K).astype(jnp.bfloat16)

    tm = min(1024, max(8, _round_up(_cdiv(M, 2), 8)))   # >=2 blocks -> both v7x TCs busy
    Mp = _round_up(M, tm)
    if Mp != M:
        patches = jnp.pad(patches, ((0, Mp - M), (0, 0)))

    OUT_CONV = _round_up(C + 2 * Cr, 128)   # fused conv width  [x | y | f | 0-pad]
    STORE_W = _round_up(C + Cr, 128)        # stored prefix (wrapper only needs x|y)
    FCW = _round_up(chunk_size, 128)        # fc-MLP width (lane-dense via padded weights)

    wc = jnp.concatenate([params['w_match'].reshape(K, C),
                          params['w_asm'].reshape(K, Cr),
                          params['w_asm_fc'].reshape(K, Cr)], axis=1)
    wc = jnp.pad(wc, ((0, 0), (0, OUT_CONV - (C + 2 * Cr)))).astype(jnp.bfloat16)
    bc = jnp.concatenate([params['b_match'], params['b_asm'], params['b_asm_fc']])
    bc = jnp.pad(bc, (0, OUT_CONV - (C + 2 * Cr))).reshape(1, OUT_CONV).astype(jnp.float32)

    w1 = jnp.zeros((OUT_CONV, FCW), jnp.float32)
    w1 = w1.at[C + Cr:C + 2 * Cr, :chunk_size].set(params['fc_w1']).astype(jnp.bfloat16)
    b1 = jnp.pad(params['fc_b1'], ((0, 0), (0, FCW - chunk_size))).astype(jnp.float32)
    w2 = jnp.zeros((FCW, FCW), jnp.float32)
    w2 = w2.at[:chunk_size, :chunk_size].set(params['fc_w2']).astype(jnp.bfloat16)
    b2 = jnp.pad(params['fc_b2'], ((0, 0), (0, FCW - chunk_size))).astype(jnp.float32)

    def full(a):
        return pl.BlockSpec(a.shape, lambda i: (0,) * a.ndim)

    flops = 2 * Mp * (K * OUT_CONV + OUT_CONV * FCW + FCW * FCW)
    cost = pl.CostEstimate(flops=int(flops), transcendentals=0,
                           bytes_accessed=int(Mp * K * 2 + Mp * (STORE_W + FCW) * 4))

    conv_out, fc_out = pl.pallas_call(
        _fused_conv_fc_kernel,
        out_shape=(jax.ShapeDtypeStruct((Mp, STORE_W), jnp.float32),
                   jax.ShapeDtypeStruct((Mp, FCW), jnp.float32)),
        grid=(Mp // tm,),
        in_specs=[pl.BlockSpec((tm, K), lambda i: (i, 0)),
                  full(wc), full(bc), full(w1), full(b1), full(w2), full(b2)],
        out_specs=(pl.BlockSpec((tm, STORE_W), lambda i: (i, 0)),
                   pl.BlockSpec((tm, FCW), lambda i: (i, 0))),
        compiler_params=pltpu.CompilerParams(
            dimension_semantics=("parallel",),
            vmem_limit_bytes=48 * 1024 * 1024),   # fits v7x's 64 MiB; headroom on v5e/v6e
        cost_estimate=cost,
    )(patches, wc, bc, w1, b1, w2, b2)

    xy = conv_out[:M, :C + Cr].reshape(N, L, C + Cr)
    fc = fc_out[:M, :chunk_size].reshape(N, L, chunk_size)
    return xy, fc


# ------------------------------ Kernel 2: attention ------------------------------

def _gla_attn_kernel(x_ref, y_ref, ft_ref, o_ref):
    x = x_ref[...]                          # (gb, nc, chunk, C)    queries (un-normalized)
    y = y_ref[...]                          # (gb, nc, chunk, Cr)   values
    ft = ft_ref[...]                        # (gb, nc, chunk, chunk) fc scores, (q, k) order
    gbs, ncs, ch, cdim = x.shape
    cr = y.shape[-1]
    ow = o_ref.shape[-1]

    # F.normalize(p=2, dim=-1, eps=5e-5) on keys:  x / max(||x||, 5e-5)
    ssq = jnp.sum(x * x, axis=-1, keepdims=True)
    xk = x * jax.lax.rsqrt(jnp.maximum(ssq, 2.5e-9))

    def prev_next(t):
        # chunk c gets chunk c-1 / c+1 (wrap-around), assembled from the resident block.
        if t.shape[1] == 1:
            return t, t
        p = jnp.concatenate([t[:, -1:], t[:, :-1]], axis=1)
        n = jnp.concatenate([t[:, 1:], t[:, :1]], axis=1)
        return p, n

    xk_p, xk_n = prev_next(xk)
    keys = jnp.concatenate([xk, xk_p, xk_n], axis=2)          # (gb, nc, 3chunk, C)
    y_p, y_n = prev_next(y)
    vals = jnp.concatenate([y, y_p, y_n], axis=2)             # (gb, nc, 3chunk, Cr)
    f_p, f_n = prev_next(ft)
    fts = jnp.concatenate([ft, f_p, f_n], axis=3)             # (gb, nc, chunk, 3chunk)

    G = gbs * ncs
    q3 = x.reshape(G, ch, cdim).astype(jnp.bfloat16)
    k3 = keys.reshape(G, 3 * ch, cdim).astype(jnp.bfloat16)
    v3 = vals.reshape(G, 3 * ch, cr).astype(jnp.bfloat16)
    f3 = fts.reshape(G, ch, 3 * ch)

    raw = jnp.einsum('gqc,gkc->gqk', q3, k3,
                     preferred_element_type=jnp.float32) + f3  # (G, chunk, 3chunk) f32
    m = jnp.max(raw, axis=-1, keepdims=True)
    e = jnp.exp(raw - m)
    s = jnp.sum(e, axis=-1, keepdims=True)
    lse = m + jnp.log(s)                                       # logsumexp (bucket_score)
    score = e / s                                              # exact; == exp(raw - lse)

    ret = jnp.einsum('gqk,gke->gqe', score.astype(jnp.bfloat16), v3,
                     preferred_element_type=jnp.float32)       # (G, chunk, Cr)

    pad = ow - cr - 1
    pieces = [ret, lse]
    if pad:
        pieces.append(jnp.zeros((G, ch, pad), jnp.float32))
    out = jnp.concatenate(pieces, axis=-1)                     # (G, chunk, ow) lane-dense
    o_ref[...] = out.reshape(gbs, ncs, ch, ow)


def _pick_gb(BH, nc, chunk, C, Cr, budget=20 * 1024 * 1024):
    """Largest gb dividing BH s.t. BH//gb >= 2 (v7x megacore) and VMEM estimate fits."""
    ow = _round_up(Cr + 1, 128)
    best = 1
    for gb in range(1, BH + 1):
        if BH % gb:
            continue
        if BH >= 2 and BH // gb < 2:
            continue
        per = gb * nc * chunk * 4
        inputs = 2 * per * (C + Cr + chunk)            # double-buffered input blocks
        outs = 2 * per * ow
        inter = per * (4 * (C + Cr) + 4 * 3 * chunk + 2 * ow)
        if inputs + outs + inter <= budget:
            best = gb
    return best


def gla_attention(x4, y4, fT4, gb):
    """x4:(BH,nc,chunk,C)  y4:(BH,nc,chunk,Cr)  fT4:(BH,nc,chunk,chunk) (pre-transposed)."""
    BH, nc, chunk, C = x4.shape
    Cr = y4.shape[-1]
    OW = _round_up(Cr + 1, 128)
    grid = (BH // gb,)

    def spec(last):
        return pl.BlockSpec((gb, nc, chunk, last), lambda g: (g, 0, 0, 0))

    flops = int(2 * BH * nc * chunk * 3 * chunk * (C + Cr))
    bytes_accessed = int(4 * (x4.size + y4.size + fT4.size + BH * nc * chunk * OW))
    cost = pl.CostEstimate(flops=flops,
                           transcendentals=int(BH * nc * chunk * (3 * chunk + 1)),
                           bytes_accessed=bytes_accessed)

    out = pl.pallas_call(
        _gla_attn_kernel,
        out_shape=jax.ShapeDtypeStruct((BH, nc, chunk, OW), jnp.float32),
        grid=grid,
        in_specs=[spec(C), spec(Cr), spec(chunk)],
        out_specs=spec(OW),
        compiler_params=pltpu.CompilerParams(
            dimension_semantics=("parallel",),
            vmem_limit_bytes=48 * 1024 * 1024),
        cost_estimate=cost,
    )(x4, y4, fT4)
    return out[..., :Cr], out[..., Cr]


# --------------------------------- plain-JAX glue ---------------------------------

def _orthogonal(key, rows, cols):
    # torch.nn.init.orthogonal_ equivalent (QR of a Gaussian)
    a = jax.random.normal(key, (max(rows, cols), min(rows, cols)), jnp.float32)
    q, _ = jnp.linalg.qr(a)
    if rows < cols:
        q = q.T
    return q[:rows, :cols]


def gla_forward(x, params, *, n_hashes, reduction, chunk_size, res_scale, rot_key):
    N, H, W, channels = x.shape
    L = H * W
    Cr = channels
    C = channels // reduction

    # fused conv_match / conv_assembly / conv_assembly_fc + row-wise fc MLP
    xy, fc_mlp = conv_trio_and_fc(x, params, chunk_size)     # (N,L,C+Cr), (N,L,chunk)
    x_embed = xy[..., :C]

    hash_buckets = min(L // chunk_size + (L // chunk_size) % 2, 128)

    # SBLSH: random orthogonal rotations -> argmax bucket id per hash round (f32, in XLA
    # to keep the discrete bucket assignment free of extra bf16 drift).
    keys = jax.random.split(rot_key, n_hashes)
    rots = jnp.stack([_orthogonal(k, C, hash_buckets) for k in keys], axis=0)  # (nh,C,B)
    rotated = jnp.einsum('nlf,hfb->nhlb', x_embed, rots)
    hash_codes = jnp.argmax(rotated, axis=-1)                                   # (N,nh,L)
    offsets = (jnp.arange(n_hashes) * hash_buckets)[None, :, None]
    hash_codes = (hash_codes + offsets).reshape(N, n_hashes * L)

    # TODO(synk): the data-dependent sort / inverse-permutation gather has no clean
    # Pallas equivalent; it stays in plain JAX (argsort + take_along_axis).
    indices = jnp.argsort(hash_codes, axis=-1)
    undo_sort = jnp.argsort(indices, axis=-1)
    mod_indices = indices % L

    xy_sorted = jnp.take_along_axis(xy, mod_indices[:, :, None], axis=1)       # (N,nh*L,C+Cr)
    fc_sorted = jnp.take_along_axis(fc_mlp, mod_indices[:, :, None], axis=1)   # (N,nh*L,chunk)

    padding = (chunk_size - L % chunk_size) if (L % chunk_size) != 0 else 0
    Lp = L + padding
    nc = Lp // chunk_size
    BH = N * n_hashes

    def chunkify(t):
        t = t.reshape(N, n_hashes, L, t.shape[-1])
        if padding:
            t = jnp.concatenate([t, t[:, :, -padding:, :]], axis=2)
        return t.reshape(BH, nc, chunk_size, t.shape[-1])

    xyb = chunkify(xy_sorted)
    fcb = chunkify(fc_sorted)
    x4 = xyb[..., :C]                              # queries / keys (un-normalized)
    y4 = xyb[..., C:]                              # values
    fT4 = jnp.swapaxes(fcb, -1, -2)                # pre-transpose (no in-kernel .T)

    gb = _pick_gb(BH, nc, chunk_size, C, Cr)
    ret, lse = gla_attention(x4, y4, fT4, gb)

    ret = ret.reshape(N, n_hashes, Lp, Cr)
    bucket_score = lse.reshape(N, n_hashes, Lp)
    if padding:
        ret = ret[:, :, :-padding, :]
        bucket_score = bucket_score[:, :, :-padding]
    ret = ret.reshape(N, n_hashes * L, Cr)
    bucket_score = bucket_score.reshape(N, n_hashes * L)

    ret = jnp.take_along_axis(ret, undo_sort[:, :, None], axis=1)
    bucket_score = jnp.take_along_axis(bucket_score, undo_sort, axis=1)

    ret = ret.reshape(N, n_hashes, L, Cr)
    bucket_score = bucket_score.reshape(N, n_hashes, L, 1)
    probs = jax.nn.softmax(bucket_score, axis=1)          # softmax over hash rounds
    ret = jnp.sum(ret * probs, axis=1)                    # (N, L, Cr)
    ret = ret.reshape(N, H, W, Cr)
    return ret * res_scale + x


def init_params(key, channels, reduction, chunk_size):
    C = channels // reduction
    ks = jax.random.split(key, 10)

    def u(k, shape, fan_in):
        s = 1.0 / float(fan_in) ** 0.5
        return jax.random.uniform(k, shape, jnp.float32, -s, s)

    return dict(
        w_match=u(ks[0], (3, 3, channels, C), 9 * channels),
        b_match=u(ks[1], (C,), 9 * channels),
        w_asm=u(ks[2], (3, 3, channels, channels), 9 * channels),
        b_asm=u(ks[3], (channels,), 9 * channels),
        w_asm_fc=u(ks[4], (3, 3, channels, channels), 9 * channels),
        b_asm_fc=u(ks[5], (channels,), 9 * channels),
        fc_w1=u(ks[6], (channels, chunk_size), channels),
        fc_b1=u(ks[7], (1, chunk_size), channels),
        fc_w2=u(ks[8], (chunk_size, chunk_size), chunk_size),
        fc_b2=u(ks[9], (1, chunk_size), chunk_size),
    )


if __name__ == "__main__":
    key = jax.random.PRNGKey(0)
    k_x, k_p, k_rot = jax.random.split(key, 3)

    # small shapes consistent with the module's forward
    N, H, W = 2, 8, 8
    channels, reduction = 32, 4     # C = channels // reduction = 8
    n_hashes, chunk_size = 2, 16    # L = 64 -> 4 chunks per hash round
    res_scale = 1.0

    x = jax.random.normal(k_x, (N, H, W, channels), jnp.float32)
    params = init_params(k_p, channels, reduction, chunk_size)

    fwd = functools.partial(gla_forward, n_hashes=n_hashes, reduction=reduction,
                            chunk_size=chunk_size, res_scale=res_scale, rot_key=k_rot)
    out = jax.jit(fwd)(x, params)
    jax.block_until_ready(out)
    assert out.shape == (N, H, W, channels)
    assert out.dtype == jnp.float32
    print("KERNEL_OK")
</pallas_src>

<mosaic_0001>
module attributes {stable_mosaic.version = 11 : i64} {
  func.func @_fused_conv_fc_kernel(%arg0: i32, %arg1: memref<64x288xbf16, #tpu.memory_space<vmem>>, %arg2: memref<288x128xbf16, #tpu.memory_space<vmem>>, %arg3: memref<1x128xf32, #tpu.memory_space<vmem>>, %arg4: memref<128x128xbf16, #tpu.memory_space<vmem>>, %arg5: memref<1x128xf32, #tpu.memory_space<vmem>>, %arg6: memref<128x128xbf16, #tpu.memory_space<vmem>>, %arg7: memref<1x128xf32, #tpu.memory_space<vmem>>, %arg8: memref<64x128xf32, #tpu.memory_space<vmem>>, %arg9: memref<64x128xf32, #tpu.memory_space<vmem>>) attributes {dimension_semantics = [#tpu.dimension_semantics<parallel>], iteration_bounds = array<i64: 2>, scalar_prefetch = 0 : i64, scratch_operands = 0 : i64, tpu.core_type = #tpu.core_type<tc>, window_params = [{transform_indices = @transform_0, window_bounds = array<i64: 64, 288>}, {pipeline_mode = #tpu.pipeline_mode<synchronous>, transform_indices = @transform_1, window_bounds = array<i64: 288, 128>}, {pipeline_mode = #tpu.pipeline_mode<synchronous>, transform_indices = @transform_2, window_bounds = array<i64: 1, 128>}, {pipeline_mode = #tpu.pipeline_mode<synchronous>, transform_indices = @transform_3, window_bounds = array<i64: 128, 128>}, {pipeline_mode = #tpu.pipeline_mode<synchronous>, transform_indices = @transform_4, window_bounds = array<i64: 1, 128>}, {pipeline_mode = #tpu.pipeline_mode<synchronous>, transform_indices = @transform_5, window_bounds = array<i64: 128, 128>}, {pipeline_mode = #tpu.pipeline_mode<synchronous>, transform_indices = @transform_6, window_bounds = array<i64: 1, 128>}, {transform_indices = @transform_7, window_bounds = array<i64: 64, 128>}, {transform_indices = @transform_8, window_bounds = array<i64: 64, 128>}]} {
    %c0 = arith.constant 0 : index
    %c0_0 = arith.constant 0 : index
    %0 = vector.load %arg1[%c0, %c0_0] : memref<64x288xbf16, #tpu.memory_space<vmem>>, vector<64x288xbf16>
    %c0_1 = arith.constant 0 : index
    %c0_2 = arith.constant 0 : index
    %1 = vector.load %arg2[%c0_1, %c0_2] : memref<288x128xbf16, #tpu.memory_space<vmem>>, vector<288x128xbf16>
    %cst = arith.constant dense<0.000000e+00> : vector<64x128xf32>
    %2 = tpu.matmul %0, %1, %cst {dimension_numbers = #tpu.dot_dimension_numbers<[1], [0], [0], [1], [0, 0, 1, 1], [], []>} : vector<64x288xbf16>, vector<288x128xbf16>, vector<64x128xf32> -> vector<64x128xf32>
    %c0_3 = arith.constant 0 : index
    %c0_4 = arith.constant 0 : index
    %3 = vector.load %arg3[%c0_3, %c0_4] : memref<1x128xf32, #tpu.memory_space<vmem>>, vector<1x128xf32>
    %4 = vector.broadcast %3 : vector<1x128xf32> to vector<64x128xf32>
    %5 = arith.addf %2, %4 : vector<64x128xf32>
    %cst_5 = arith.constant 0.000000e+00 : f32
    %6 = vector.broadcast %cst_5 : f32 to vector<64x128xf32>
    %7 = arith.maximumf %5, %6 : vector<64x128xf32>
    %c0_6 = arith.constant 0 : index
    %c0_7 = arith.constant 0 : index
    %8 = vector.load %arg8[%c0_6, %c0_7] : memref<64x128xf32, #tpu.memory_space<vmem>>, vector<64x128xf32>
    tpu.vector_store %arg8[%c0_6, %c0_7], %7 {strides = array<i32>} : memref<64x128xf32, #tpu.memory_space<vmem>>, vector<64x128xf32>,
    %9 = arith.truncf %7 : vector<64x128xf32> to vector<64x128xbf16>
    %c0_8 = arith.constant 0 : index
    %c0_9 = arith.constant 0 : index
    %10 = vector.load %arg4[%c0_8, %c0_9] : memref<128x128xbf16, #tpu.memory_space<vmem>>, vector<128x128xbf16>
    %cst_10 = arith.constant dense<0.000000e+00> : vector<64x128xf32>
    %11 = tpu.matmul %9, %10, %cst_10 {dimension_numbers = #tpu.dot_dimension_numbers<[1], [0], [0], [1], [0, 0, 1, 1], [], []>} : vector<64x128xbf16>, vector<128x128xbf16>, vector<64x128xf32> -> vector<64x128xf32>
    %c0_11 = arith.constant 0 : index
    %c0_12 = arith.constant 0 : index
    %12 = vector.load %arg5[%c0_11, %c0_12] : memref<1x128xf32, #tpu.memory_space<vmem>>, vector<1x128xf32>
    %13 = vector.broadcast %12 : vector<1x128xf32> to vector<64x128xf32>
    %14 = arith.addf %11, %13 : vector<64x128xf32>
    %cst_13 = arith.constant 0.000000e+00 : f32
    %15 = vector.broadcast %cst_13 : f32 to vector<64x128xf32>
    %16 = arith.maximumf %14, %15 : vector<64x128xf32>
    %17 = arith.truncf %16 : vector<64x128xf32> to vector<64x128xbf16>
    %c0_14 = arith.constant 0 : index
    %c0_15 = arith.constant 0 : index
    %18 = vector.load %arg6[%c0_14, %c0_15] : memref<128x128xbf16, #tpu.memory_space<vmem>>, vector<128x128xbf16>
    %cst_16 = arith.constant dense<0.000000e+00> : vector<64x128xf32>
    %19 = tpu.matmul %17, %18, %cst_16 {dimension_numbers = #tpu.dot_dimension_numbers<[1], [0], [0], [1], [0, 0, 1, 1], [], []>} : vector<64x128xbf16>, vector<128x128xbf16>, vector<64x128xf32> -> vector<64x128xf32>
    %c0_17 = arith.constant 0 : index
    %c0_18 = arith.constant 0 : index
    %20 = vector.load %arg7[%c0_17, %c0_18] : memref<1x128xf32, #tpu.memory_space<vmem>>, vector<1x128xf32>
    %21 = vector.broadcast %20 : vector<1x128xf32> to vector<64x128xf32>
    %22 = arith.addf %19, %21 : vector<64x128xf32>
    %c0_19 = arith.constant 0 : index
    %c0_20 = arith.constant 0 : index
    %23 = vector.load %arg9[%c0_19, %c0_20] : memref<64x128xf32, #tpu.memory_space<vmem>>, vector<64x128xf32>
    tpu.vector_store %arg9[%c0_19, %c0_20], %22 {strides = array<i32>} : memref<64x128xf32, #tpu.memory_space<vmem>>, vector<64x128xf32>,
    return
  }
  func.func @transform_0(%arg0: i32) -> (i32, i32) {
    %c0_i32 = arith.constant 0 : i32
    %c0_i32_0 = arith.constant 0 : i32
    return %arg0, %c0_i32 : i32, i32
  }
  func.func @transform_1(%arg0: i32) -> (i32, i32) {
    %c0_i32 = arith.constant 0 : i32
    %c0_i32_0 = arith.constant 0 : i32
    %c0_i32_1 = arith.constant 0 : i32
    return %c0_i32, %c0_i32_0 : i32, i32
  }
  func.func @transform_2(%arg0: i32) -> (i32, i32) {
    %c0_i32 = arith.constant 0 : i32
    %c0_i32_0 = arith.constant 0 : i32
    %c0_i32_1 = arith.constant 0 : i32
    return %c0_i32, %c0_i32_0 : i32, i32
  }
  func.func @transform_3(%arg0: i32) -> (i32, i32) {
    %c0_i32 = arith.constant 0 : i32
    %c0_i32_0 = arith.constant 0 : i32
    %c0_i32_1 = arith.constant 0 : i32
    return %c0_i32, %c0_i32_0 : i32, i32
  }
  func.func @transform_4(%arg0: i32) -> (i32, i32) {
    %c0_i32 = arith.constant 0 : i32
    %c0_i32_0 = arith.constant 0 : i32
    %c0_i32_1 = arith.constant 0 : i32
    return %c0_i32, %c0_i32_0 : i32, i32
  }
  func.func @transform_5(%arg0: i32) -> (i32, i32) {
    %c0_i32 = arith.constant 0 : i32
    %c0_i32_0 = arith.constant 0 : i32
    %c0_i32_1 = arith.constant 0 : i32
    return %c0_i32, %c0_i32_0 : i32, i32
  }
  func.func @transform_6(%arg0: i32) -> (i32, i32) {
    %c0_i32 = arith.constant 0 : i32
    %c0_i32_0 = arith.constant 0 : i32
    %c0_i32_1 = arith.constant 0 : i32
    return %c0_i32, %c0_i32_0 : i32, i32
  }
  func.func @transform_7(%arg0: i32) -> (i32, i32) {
    %c0_i32 = arith.constant 0 : i32
    %c0_i32_0 = arith.constant 0 : i32
    return %arg0, %c0_i32 : i32, i32
  }
  func.func @transform_8(%arg0: i32) -> (i32, i32) {
    %c0_i32 = arith.constant 0 : i32
    %c0_i32_0 = arith.constant 0 : i32
    return %arg0, %c0_i32 : i32, i32
  }
}

module attributes {stable_mosaic.version = 11 : i64} {
  func.func @_gla_attn_kernel(%arg0: i32, %arg1: memref<2x4x16x8xf32, #tpu.memory_space<vmem>>, %arg2: memref<2x4x16x32xf32, #tpu.memory_space<vmem>>, %arg3: memref<2x4x16x16xf32, #tpu.memory_space<vmem>>, %arg4: memref<2x4x16x128xf32, #tpu.memory_space<vmem>>) attributes {dimension_semantics = [#tpu.dimension_semantics<parallel>], iteration_bounds = array<i64: 2>, scalar_prefetch = 0 : i64, scratch_operands = 0 : i64, tpu.core_type = #tpu.core_type<tc>, window_params = [{transform_indices = @transform_0, window_bounds = array<i64: 2, 4, 16, 8>}, {transform_indices = @transform_1, window_bounds = array<i64: 2, 4, 16, 32>}, {transform_indices = @transform_2, window_bounds = array<i64: 2, 4, 16, 16>}, {transform_indices = @transform_3, window_bounds = array<i64: 2, 4, 16, 128>}]} {
    %c0 = arith.constant 0 : index
    %c0_0 = arith.constant 0 : index
    %c0_1 = arith.constant 0 : index
    %c0_2 = arith.constant 0 : index
    %0 = vector.load %arg1[%c0, %c0_0, %c0_1, %c0_2] : memref<2x4x16x8xf32, #tpu.memory_space<vmem>>, vector<2x4x16x8xf32>
    %c0_3 = arith.constant 0 : index
    %c0_4 = arith.constant 0 : index
    %c0_5 = arith.constant 0 : index
    %c0_6 = arith.constant 0 : index
    %1 = vector.load %arg2[%c0_3, %c0_4, %c0_5, %c0_6] : memref<2x4x16x32xf32, #tpu.memory_space<vmem>>, vector<2x4x16x32xf32>
    %c0_7 = arith.constant 0 : index
    %c0_8 = arith.constant 0 : index
    %c0_9 = arith.constant 0 : index
    %c0_10 = arith.constant 0 : index
    %2 = vector.load %arg3[%c0_7, %c0_8, %c0_9, %c0_10] : memref<2x4x16x16xf32, #tpu.memory_space<vmem>>, vector<2x4x16x16xf32>
    %3 = arith.mulf %0, %0 : vector<2x4x16x8xf32>
    %cst = arith.constant dense<0.000000e+00> : vector<2x4x16xf32>
    %4 = vector.multi_reduction <add>, %3, %cst [3] : vector<2x4x16x8xf32> to vector<2x4x16xf32>
    %5 = vector.shape_cast %4 : vector<2x4x16xf32> to vector<2x4x16x1xf32>
    %cst_11 = arith.constant 2.500000e-09 : f32
    %6 = vector.broadcast %cst_11 : f32 to vector<2x4x16x1xf32>
    %7 = arith.maximumf %5, %6 : vector<2x4x16x1xf32>
    %8 = math.rsqrt %7 : vector<2x4x16x1xf32>
    %9 = vector.broadcast %8 : vector<2x4x16x1xf32> to vector<2x4x16x8xf32>
    %10 = arith.mulf %0, %9 : vector<2x4x16x8xf32>
    %11 = vector.extract_strided_slice %10 {offsets = [0, 3, 0, 0], sizes = [2, 1, 16, 8], strides = [1, 1, 1, 1]} : vector<2x4x16x8xf32> to vector<2x1x16x8xf32>
    %12 = vector.extract_strided_slice %10 {offsets = [0, 0, 0, 0], sizes = [2, 3, 16, 8], strides = [1, 1, 1, 1]} : vector<2x4x16x8xf32> to vector<2x3x16x8xf32>
    %13 = tpu.concatenate %11, %12 in 1 : vector<2x1x16x8xf32>, vector<2x3x16x8xf32> -> vector<2x4x16x8xf32>
    %14 = vector.extract_strided_slice %10 {offsets = [0, 1, 0, 0], sizes = [2, 3, 16, 8], strides = [1, 1, 1, 1]} : vector<2x4x16x8xf32> to vector<2x3x16x8xf32>
    %15 = vector.extract_strided_slice %10 {offsets = [0, 0, 0, 0], sizes = [2, 1, 16, 8], strides = [1, 1, 1, 1]} : vector<2x4x16x8xf32> to vector<2x1x16x8xf32>
    %16 = tpu.concatenate %14, %15 in 1 : vector<2x3x16x8xf32>, vector<2x1x16x8xf32> -> vector<2x4x16x8xf32>
    %17 = tpu.concatenate %10, %13, %16 in 2 : vector<2x4x16x8xf32>, vector<2x4x16x8xf32>, vector<2x4x16x8xf32> -> vector<2x4x48x8xf32>
    %18 = vector.extract_strided_slice %1 {offsets = [0, 3, 0, 0], sizes = [2, 1, 16, 32], strides = [1, 1, 1, 1]} : vector<2x4x16x32xf32> to vector<2x1x16x32xf32>
    %19 = vector.extract_strided_slice %1 {offsets = [0, 0, 0, 0], sizes = [2, 3, 16, 32], strides = [1, 1, 1, 1]} : vector<2x4x16x32xf32> to vector<2x3x16x32xf32>
    %20 = tpu.concatenate %18, %19 in 1 : vector<2x1x16x32xf32>, vector<2x3x16x32xf32> -> vector<2x4x16x32xf32>
    %21 = vector.extract_strided_slice %1 {offsets = [0, 1, 0, 0], sizes = [2, 3, 16, 32], strides = [1, 1, 1, 1]} : vector<2x4x16x32xf32> to vector<2x3x16x32xf32>
    %22 = vector.extract_strided_slice %1 {offsets = [0, 0, 0, 0], sizes = [2, 1, 16, 32], strides = [1, 1, 1, 1]} : vector<2x4x16x32xf32> to vector<2x1x16x32xf32>
    %23 = tpu.concatenate %21, %22 in 1 : vector<2x3x16x32xf32>, vector<2x1x16x32xf32> -> vector<2x4x16x32xf32>
    %24 = tpu.concatenate %1, %20, %23 in 2 : vector<2x4x16x32xf32>, vector<2x4x16x32xf32>, vector<2x4x16x32xf32> -> vector<2x4x48x32xf32>
    %25 = vector.extract_strided_slice %2 {offsets = [0, 3, 0, 0], sizes = [2, 1, 16, 16], strides = [1, 1, 1, 1]} : vector<2x4x16x16xf32> to vector<2x1x16x16xf32>
    %26 = vector.extract_strided_slice %2 {offsets = [0, 0, 0, 0], sizes = [2, 3, 16, 16], strides = [1, 1, 1, 1]} : vector<2x4x16x16xf32> to vector<2x3x16x16xf32>
    %27 = tpu.concatenate %25, %26 in 1 : vector<2x1x16x16xf32>, vector<2x3x16x16xf32> -> vector<2x4x16x16xf32>
    %28 = vector.extract_strided_slice %2 {offsets = [0, 1, 0, 0], sizes = [2, 3, 16, 16], strides = [1, 1, 1, 1]} : vector<2x4x16x16xf32> to vector<2x3x16x16xf32>
    %29 = vector.extract_strided_slice %2 {offsets = [0, 0, 0, 0], sizes = [2, 1, 16, 16], strides = [1, 1, 1, 1]} : vector<2x4x16x16xf32> to vector<2x1x16x16xf32>
    %30 = tpu.concatenate %28, %29 in 1 : vector<2x3x16x16xf32>, vector<2x1x16x16xf32> -> vector<2x4x16x16xf32>
    %31 = tpu.concatenate %2, %27, %30 in 3 : vector<2x4x16x16xf32>, vector<2x4x16x16xf32>, vector<2x4x16x16xf32> -> vector<2x4x16x48xf32>
    %32 = vector.shape_cast %0 : vector<2x4x16x8xf32> to vector<8x16x8xf32>
    %33 = arith.truncf %32 : vector<8x16x8xf32> to vector<8x16x8xbf16>
    %34 = vector.shape_cast %17 : vector<2x4x48x8xf32> to vector<8x48x8xf32>
    %35 = arith.truncf %34 : vector<8x48x8xf32> to vector<8x48x8xbf16>
    %36 = vector.shape_cast %24 : vector<2x4x48x32xf32> to vector<8x48x32xf32>
    %37 = arith.truncf %36 : vector<8x48x32xf32> to vector<8x48x32xbf16>
    %38 = vector.shape_cast %31 : vector<2x4x16x48xf32> to vector<8x16x48xf32>
    "tpu.trace_start"() <{level = 10 : i32, message = "gqc,gkc->gqk"}> : () -> ()
    %cst_12 = arith.constant dense<0.000000e+00> : vector<8x16x48xf32>
    %39 = tpu.matmul %33, %35, %cst_12 {dimension_numbers = #tpu.dot_dimension_numbers<[2], [2], [1], [1], [0, 0, 0, 1, 1, 1], [0], [0]>} : vector<8x16x8xbf16>, vector<8x48x8xbf16>, vector<8x16x48xf32> -> vector<8x16x48xf32>
    "tpu.trace_stop"() : () -> ()
    %40 = arith.addf %39, %38 : vector<8x16x48xf32>
    %cst_13 = arith.constant dense<0xFF800000> : vector<8x16xf32>
    %41 = vector.multi_reduction <maximumf>, %40, %cst_13 [2] : vector<8x16x48xf32> to vector<8x16xf32>
    %42 = vector.shape_cast %41 : vector<8x16xf32> to vector<8x16x1xf32>
    %43 = vector.broadcast %42 : vector<8x16x1xf32> to vector<8x16x48xf32>
    %44 = arith.subf %40, %43 : vector<8x16x48xf32>
    %45 = math.exp %44 : vector<8x16x48xf32>
    %cst_14 = arith.constant dense<0.000000e+00> : vector<8x16xf32>
    %46 = vector.multi_reduction <add>, %45, %cst_14 [2] : vector<8x16x48xf32> to vector<8x16xf32>
    %47 = vector.shape_cast %46 : vector<8x16xf32> to vector<8x16x1xf32>
    %48 = math.log %47 : vector<8x16x1xf32>
    %49 = arith.addf %42, %48 : vector<8x16x1xf32>
    %50 = vector.broadcast %47 : vector<8x16x1xf32> to vector<8x16x48xf32>
    %51 = arith.divf %45, %50 : vector<8x16x48xf32>
    %52 = arith.truncf %51 : vector<8x16x48xf32> to vector<8x16x48xbf16>
    "tpu.trace_start"() <{level = 10 : i32, message = "gqk,gke->gqe"}> : () -> ()
    %cst_15 = arith.constant dense<0.000000e+00> : vector<8x16x32xf32>
    %53 = tpu.matmul %52, %37, %cst_15 {dimension_numbers = #tpu.dot_dimension_numbers<[2], [1], [1], [2], [0, 0, 0, 1, 1, 2], [0], [0]>} : vector<8x16x48xbf16>, vector<8x48x32xbf16>, vector<8x16x32xf32> -> vector<8x16x32xf32>
    %cst_16 = arith.constant 0.000000e+00 : f32
    "tpu.trace_stop"() : () -> ()
    %54 = vector.broadcast %cst_16 : f32 to vector<8x16x95xf32>
    %55 = tpu.concatenate %53, %49, %54 in 2 : vector<8x16x32xf32>, vector<8x16x1xf32>, vector<8x16x95xf32> -> vector<8x16x128xf32>
    %56 = vector.shape_cast %55 : vector<8x16x128xf32> to vector<2x4x16x128xf32>
    %c0_17 = arith.constant 0 : index
    %c0_18 = arith.constant 0 : index
    %c0_19 = arith.constant 0 : index
    %c0_20 = arith.constant 0 : index
    %57 = vector.load %arg4[%c0_17, %c0_18, %c0_19, %c0_20] : memref<2x4x16x128xf32, #tpu.memory_space<vmem>>, vector<2x4x16x128xf32>
    tpu.vector_store %arg4[%c0_17, %c0_18, %c0_19, %c0_20], %56 {strides = array<i32>} : memref<2x4x16x128xf32, #tpu.memory_space<vmem>>, vector<2x4x16x128xf32>,
    return
  }
  func.func @transform_0(%arg0: i32) -> (i32, i32, i32, i32) {
    %c0_i32 = arith.constant 0 : i32
    %c0_i32_0 = arith.constant 0 : i32
    %c0_i32_1 = arith.constant 0 : i32
    %c0_i32_2 = arith.constant 0 : i32
    return %arg0, %c0_i32, %c0_i32_0, %c0_i32_1 : i32, i32, i32, i32
  }
  func.func @transform_1(%arg0: i32) -> (i32, i32, i32, i32) {
    %c0_i32 = arith.constant 0 : i32
    %c0_i32_0 = arith.constant 0 : i32
    %c0_i32_1 = arith.constant 0 : i32
    %c0_i32_2 = arith.constant 0 : i32
    return %arg0, %c0_i32, %c0_i32_0, %c0_i32_1 : i32, i32, i32, i32
  }
  func.func @transform_2(%arg0: i32) -> (i32, i32, i32, i32) {
    %c0_i32 = arith.constant 0 : i32
    %c0_i32_0 = arith.constant 0 : i32
    %c0_i32_1 = arith.constant 0 : i32
    %c0_i32_2 = arith.constant 0 : i32
    return %arg0, %c0_i32, %c0_i32_0, %c0_i32_1 : i32, i32, i32, i32
  }
  func.func @transform_3(%arg0: i32) -> (i32, i32, i32, i32) {
    %c0_i32 = arith.constant 0 : i32
    %c0_i32_0 = arith.constant 0 : i32
    %c0_i32_1 = arith.constant 0 : i32
    %c0_i32_2 = arith.constant 0 : i32
    return %arg0, %c0_i32, %c0_i32_0, %c0_i32_1 : i32, i32, i32, i32
  }
}

</mosaic_0001>

<llo_original>
// kernel: custom-call.13
$region0: #{custom-call.13}
  %s0 = inlined_call_operand.vmem [shape: f32[8,4], index: 0, kind: input, shape index: {}]
  %s1 = inlined_call_operand.vmem [shape: f32[8,4], index: 1, kind: output, shape index: {0}]
  %s2 = inlined_call_operand.vmem [shape: f32[4], index: 2, kind: output, shape index: {1}]
  %3 = xla_tuple %s1, %s2
  $region1: #{custom-call.13} parent=0
    #allocation0 [shape = 'u8[4096]{0}', space=vmem, size = 0x1000, scoped, tag = 'operand span for operand 0']
    #allocation1 [shape = 'u8[4096]{0}', space=vmem, size = 0x1000, scoped, tag = 'operand span for operand 1']
    #allocation2 [shape = 'u8[4096]{0}', space=vmem, size = 0x1000, scoped, tag = 'operand span for operand 2']
    #allocation3 [shape = 'u8[512]{0}', space=vmem, size = 0x400, scoped, tag = 'packed  for operand 2']
    #allocation4 [shape = 'f32[8,128]{1,0}', space=vmem, size = 0x1000, scoped, tag = 'scratch for Householder reflectors']
    // Predicated region
    $region2: #{custom-call.13} parent=1 // pred_check
      _
    $region3: #{custom-call.13} parent=1 // pred_check_branch
      %5 = sbr.rel (0) target = $region5
    $region4: #{custom-call.13} parent=1 // pred_region
      // Predicated region
      $region6: #{custom-call.13} parent=4 // pred_check
        _
      $region7: #{custom-call.13} parent=4 // pred_check_branch
        %7 = sbr.rel (0) target = $region9
      $region8: #{custom-call.13} parent=4 // pred_region
        // Predicated region
        $region21: #{custom-call.13} parent=8 // pred_check
          _
        $region22: #{custom-call.13} parent=8 // pred_check_branch
          %22 = sbr.rel (0) target = $region24
        $region23: #{custom-call.13} parent=8 // pred_region
          loop: start=0, step=1, limit=1
          $region25: #{custom-call.13} parent=23 // loop_pre_header
            _
          $region26: #{custom-call.13} parent=23 // loop_header
            %s24 = sphi 0, %s28
            %p25 = scmp.ge.s32.totalorder %s24, 1
            %s29 = sphi %s0, %s0
            %s30 = sphi [#allocation0], [#allocation0]
          $region27: #{custom-call.13} parent=23 // loop_header_branch
            %27 = sbr.rel (%p25) target = $region31
          $region28: #{custom-call.13} parent=23 // loop_body
            %v31 = vld [vmem:[%s29] sm:$0xff]
            %32 = vst [vmem:[%s30] sm:$0xff] %v31
          $region29: #{custom-call.13} parent=23 // loop_footer
            %s28 = sadd.s32 1, %s24
          $region30: #{custom-call.13} parent=23 // loop_footer_branch
            %23 = sbr.rel target = $region26
          $region31: #{custom-call.13} parent=23 // loop_exit
            _
        $region24: #{custom-call.13} parent=8 // pred_fallthru
          _
        // Predicated region
        $region32: #{custom-call.13} parent=8 // pred_check
          _
        $region33: #{custom-call.13} parent=8 // pred_check_branch
          %34 = sbr.rel target = $region35
        $region34: #{custom-call.13} parent=8 // pred_region
          _
        $region35: #{custom-call.13} parent=8 // pred_fallthru
          _
      $region9: #{custom-call.13} parent=4 // pred_fallthru
        _
      // Predicated region
      $region10: #{custom-call.13} parent=4 // pred_check
        _
      $region11: #{custom-call.13} parent=4 // pred_check_branch
        %9 = sbr.rel target = $region13
      $region12: #{custom-call.13} parent=4 // pred_region
        loop: start=0, step=1, limit=1
        $region14: #{custom-call.13} parent=12 // loop_pre_header
          _
        $region15: #{custom-call.13} parent=12 // loop_header
          %s12 = sphi 0, %s16
          %p13 = scmp.ge.s32.totalorder %s12, 1
          %s17 = sphi %s0, %s0
          %s18 = sphi [#allocation0], [#allocation0]
        $region16: #{custom-call.13} parent=12 // loop_header_branch
          %15 = sbr.rel (%p13) target = $region20
        $region17: #{custom-call.13} parent=12 // loop_body
          %v19 = vld [vmem:[%s17] sm:$0xff]
          %20 = vst [vmem:[%s18] sm:$0xff] %v19
        $region18: #{custom-call.13} parent=12 // loop_footer
          %s16 = sadd.s32 1, %s12
        $region19: #{custom-call.13} parent=12 // loop_footer_branch
          %11 = sbr.rel target = $region15
        $region20: #{custom-call.13} parent=12 // loop_exit
          _
      $region13: #{custom-call.13} parent=4 // pred_fallthru
        _
    $region5: #{custom-call.13} parent=1 // pred_fallthru
      _
    %35 = vnop
    %v36 = vld [vmem:[#allocation0] sm:$0xff]
    %37 = vst [vmem:[#allocation1] sm:$0xff] %v36
    %38 = vst [vmem:[#allocation2] sm:$0x1] 0.0
    loop: start=0, step=1, limit=4
    $region36: #{custom-call.13} parent=1 // loop_pre_header
      _
    $region37: #{custom-call.13} parent=1 // loop_header
      %s40 = sphi 0, %s44
      %p41 = scmp.ge.s32.totalorder %s40, 4
    $region38: #{custom-call.13} parent=1 // loop_header_branch
      %43 = sbr.rel (%p41) target = $region42
    $region39: #{custom-call.13} parent=1 // loop_body
      %v45 = vld [vmem:[#allocation1] sm:$0xff]
      %v46 = vlaneseq
      %v47 = vshrl.u32 %v46, 7
      %v49 = vstv %s40
      %vm50 = vcmp.gt.s32.totalorder %v47, %v49
      %vm51 = vcmp.lt.s32.totalorder %v47, 8
      %vm52 = vmand %vm50, %vm51
      %v53 = vsel %vm52, %v45, 0.0
      %v54 = vmul.f32 %v53, %v53
      %v55 = vrot.slane %v54, 4
      %v56 = vadd.f32 %v54, %v55
      %v57 = vrot.slane %v56, 2
      %v58 = vadd.f32 %v56, %v57
      %v59 = vrot.slane %v58, 1
      %v60 = vadd.f32 %v58, %v59
      %v61 = vrsqrt.pop %v60
      %v62 = vmul.f32 %v60, %v61
      %vm63 = vcmp.eq.f32.partialorder %v60, inf
      %v64 = vsel %vm63, %v60, %v62
      %vm65 = vcmp.eq.f32.partialorder %v60, 0.0
      %v66 = vand.u32 %v60, 2147483648
      %v67 = vsel %vm65, %v66, %v64
      %vm68 = vcmp.eq.f32.partialorder %v60, 0.0
      %s69 = sshrl.u32 %s40, 3
      %s70 = sand.u32 %s40, 7
      %s71 = smul.addr %s69, 8
      %s72 = sadd.s32 %s70, %s71
      %s73 = scalar_lea.vmem [#allocation1], %s72
      %v74 = vld [vmem:[%s73] ss:$0 sm:$0xff]
      %v75 = vand.u32 2147483647, %v74
      %v76 = vmax.f32 %v75, 0.0
      %v77 = vand.u32 2147483647, %v67
      %v78 = vmax.f32 %v76, %v77
      %v79 = vrcp.pop %v78
      %v80 = vmul.f32 %v75, %v79
      %v81 = vmul.f32 %v80, %v80
      %v82 = vrcp.pop %v78
      %v83 = vmul.f32 0.0, %v82
      %v84 = vmul.f32 %v83, %v83
      %v85 = vadd.f32 %v81, %v84
      %v86 = vrcp.pop %v78
      %v87 = vmul.f32 %v77, %v86
      %v88 = vmul.f32 %v87, %v87
      %v89 = vadd.f32 %v85, %v88
      %vm90 = vcmp.eq.f32.partialorder %v78, 0.0
      %v91 = vrsqrt.pop %v89
      %v92 = vmul.f32 %v89, %v91
      %vm93 = vcmp.eq.f32.partialorder %v89, inf
      %v94 = vsel %vm93, %v89, %v92
      %vm95 = vcmp.eq.f32.partialorder %v89, 0.0
      %v96 = vand.u32 %v89, 2147483648
      %v97 = vsel %vm95, %v96, %v94
      %v98 = vmul.f32 %v78, %v97
      %v99 = vsel %vm90, 0.0, %v98
      %vm100 = vcmp.lt.f32.partialorder %v74, 0.0
      %v101 = vxor.u32 %v99, 2147483648
      %v102 = vsel %vm100, %v99, %v101
      %v103 = vsub.f32 %v102, %v74
      %v104 = vrcp.pop %v102
      %v105 = vmul.f32 %v103, %v104
      %v106 = vsel %vm68, %v74, %v102
      %v107 = vsel %vm68, 0.0, %v105
      %v108 = vsub.f32 %v74, %v106
      %s109 = smov [#allocation1]
      %v110 = vlaneseq
      %v111 = vshrl.u32 %v110, 7
      %v112 = vmov %v111
      %v113 = vld [vmem:[%s109] sm:$0xff]
      %v115 = vstv %s40
      %vm116 = vcmp.gt.s32.totalorder %v112, %v115
      %vm117 = vcmp.lt.s32.totalorder %v112, 8
      %vm118 = vmand %vm116, %vm117
      %v119 = vsel %vm118, %v113, 0.0
      %v120 = vrcp.pop %v108
      %v121 = vmul.f32 %v119, %v120
      %v122 = vsel %vm68, 0.0, %v121
      %v123 = vstv %s40
      %v124 = vlaneseq
      %v125 = vand.u32 %v124, 127
      %vm126 = vcmp.eq.s32.totalorder %v125, %v123
      %v127 = vsel %vm126, %v122, 0.0
      %128 = vadd.xlane.f32.xlu0 %v127
      %v129 = vpop.xlane.xlu0 %128
      %130 = vst [vmem:[#allocation4] sm:$0xff] %v129
      %s131 = scalar_lea.vmem [#allocation4], %s40
      %132 = vst [vmem:[%s131] sm:$0x1] 1.0
      %v133 = vstv %s40
      %v134 = vlaneseq
      %v135 = vand.u32 %v134, 127
      %vm136 = vcmp.eq.s32.totalorder %v135, %v133
      %v137 = vsel %vm136, %v107, 0.0
      %138 = vadd.xlane.f32.xlu0 %v137
      %v139 = vpop.xlane.xlu0 %138
      %v140 = vstv %s40
      %v141 = vlaneseq
      %v142 = vand.u32 %v141, 127
      %vm143 = vcmp.eq.s32.totalorder %v142, %v140
      %v144 = vld [vmem:[#allocation2] ss:$0 sm:$0xff]
      %v145 = vsel %vm143, %v139, %v144
      %146 = vst [vmem:[#allocation2] sm:$0x1] %v145
      %s147 = smov [#allocation1]
      %s148 = smov [#allocation4]
      %v149 = vlaneseq
      %v150 = vshrl.u32 %v149, 7
      %v151 = vmov %v150
      %v153 = vld [vmem:[%s148] sm:$0xff]
      %v154 = vld [vmem:[%s147] sm:$0xff]
      %v155 = vmul.f32 %v153, %v154
      %vm156 = vcmp.lt.s32.totalorder %v151, 8
      %v157 = vsel %vm156, %v155, 0.0
      %v158 = vrot.slane %v157, 4
      %v159 = vadd.f32 %v157, %v158
      %v160 = vrot.slane %v159, 2
      %v161 = vadd.f32 %v159, %v160
      %v162 = vrot.slane %v161, 1
      %v163 = vadd.f32 %v161, %v162
      %s164 = smov %s147
      %s165 = smov %s148
      %v166 = vlaneseq
      %v167 = vshrl.u32 %v166, 7
      %v168 = vmov %v167
      %v169 = vmul.f32 %v163, %v139
      %v171 = vlaneseq
      %v172 = vand.u32 %v171, 127
      %v173 = vld [vmem:[%s165] sm:$0xff]
      %v174 = vmul.f32 %v173, %v169
      %v175 = vld [vmem:[%s164] sm:$0xff]
      %v176 = vstv %s40
      %vm177 = vcmp.gt.s32.totalorder %v172, %v176
      %v178 = vsub.f32 %v175, %v174
      %v179 = vsel %vm177, %v178, %v175
      %v180 = vstv %s40
      %v181 = vlaneseq
      %v182 = vand.u32 %v181, 127
      %vm183 = vcmp.eq.s32.totalorder %v182, %v180
      %v184 = vstv %s40
      %vm185 = vcmp.ge.s32.totalorder %v168, %v184
      %vm186 = vmand %vm183, %vm185
      %v187 = vsel %vm186, %v173, %v179
      %188 = vst [vmem:[%s164] sm:$0xff] %v187
      %s189 = scalar_lea.vmem %s164, %s40
      %v190 = vld [vmem:[%s189] ss:$0 sm:$0xff]
      %v191 = vstv %s40
      %v192 = vlaneseq
      %v193 = vand.u32 %v192, 127
      %vm194 = vcmp.eq.s32.totalorder %v193, %v191
      %v195 = vsel %vm194, %v106, %v190
      %196 = vst [vmem:[%s189] sm:$0x1] %v195
    $region40: #{custom-call.13} parent=1 // loop_footer
      %s44 = sadd.s32 1, %s40
    $region41: #{custom-call.13} parent=1 // loop_footer_branch
      %39 = sbr.rel target = $region37
    $region42: #{custom-call.13} parent=1 // loop_exit
      _
    %s198 = sshllo.u32 0, 1
    %v200 = vld [vmem:[#allocation2] sm:%s198]
    %s201 = sshllo.u32 0, 1
    %202 = vst [vmem:[#allocation3] sm:%s201] %v200
    // Predicated region
    $region43: #{custom-call.13} parent=1 // pred_check
      _
    $region44: #{custom-call.13} parent=1 // pred_check_branch
      %204 = sbr.rel (0) target = $region46
    $region45: #{custom-call.13} parent=1 // pred_region
      // Predicated region
      $region47: #{custom-call.13} parent=45 // pred_check
        _
      $region48: #{custom-call.13} parent=45 // pred_check_branch
        %206 = sbr.rel (0) target = $region50
      $region49: #{custom-call.13} parent=45 // pred_region
        // Predicated region
        $region62: #{custom-call.13} parent=49 // pred_check
          _
        $region63: #{custom-call.13} parent=49 // pred_check_branch
          %221 = sbr.rel (0) target = $region65
        $region64: #{custom-call.13} parent=49 // pred_region
          loop: start=0, step=1, limit=1
          $region66: #{custom-call.13} parent=64 // loop_pre_header
            _
          $region67: #{custom-call.13} parent=64 // loop_header
            %s223 = sphi 0, %s227
            %p224 = scmp.ge.s32.totalorder %s223, 1
            %s228 = sphi [#allocation1], [#allocation1]
            %s229 = sphi %s1, %s1
          $region68: #{custom-call.13} parent=64 // loop_header_branch
            %226 = sbr.rel (%p224) target = $region72
          $region69: #{custom-call.13} parent=64 // loop_body
            %v230 = vld [vmem:[%s228] sm:$0xff]
            %231 = vst [vmem:[%s229] sm:$0xff] %v230
          $region70: #{custom-call.13} parent=64 // loop_footer
            %s227 = sadd.s32 1, %s223
          $region71: #{custom-call.13} parent=64 // loop_footer_branch
            %222 = sbr.rel target = $region67
          $region72: #{custom-call.13} parent=64 // loop_exit
            _
        $region65: #{custom-call.13} parent=49 // pred_fallthru
          _
        // Predicated region
        $region73: #{custom-call.13} parent=49 // pred_check
          _
        $region74: #{custom-call.13} parent=49 // pred_check_branch
          %233 = sbr.rel target = $region76
        $region75: #{custom-call.13} parent=49 // pred_region
          _
        $region76: #{custom-call.13} parent=49 // pred_fallthru
          _
      $region50: #{custom-call.13} parent=45 // pred_fallthru
        _
      // Predicated region
      $region51: #{custom-call.13} parent=45 // pred_check
        _
      $region52: #{custom-call.13} parent=45 // pred_check_branch
        %208 = sbr.rel target = $region54
      $region53: #{custom-call.13} parent=45 // pred_region
        loop: start=0, step=1, limit=1
        $region55: #{custom-call.13} parent=53 // loop_pre_header
          _
        $region56: #{custom-call.13} parent=53 // loop_header
          %s211 = sphi 0, %s215
          %p212 = scmp.ge.s32.totalorder %s211, 1
          %s216 = sphi [#allocation1], [#allocation1]
          %s217 = sphi %s1, %s1
        $region57: #{custom-call.13} parent=53 // loop_header_branch
          %214 = sbr.rel (%p212) target = $region61
        $region58: #{custom-call.13} parent=53 // loop_body
          %v218 = vld [vmem:[%s216] sm:$0xff]
          %219 = vst [vmem:[%s217] sm:$0xff] %v218
        $region59: #{custom-call.13} parent=53 // loop_footer
          %s215 = sadd.s32 1, %s211
        $region60: #{custom-call.13} parent=53 // loop_footer_branch
          %210 = sbr.rel target = $region56
        $region61: #{custom-call.13} parent=53 // loop_exit
          _
      $region54: #{custom-call.13} parent=45 // pred_fallthru
        _
    $region46: #{custom-call.13} parent=1 // pred_fallthru
      _
    %234 = vnop
    // Predicated region
    $region77: #{custom-call.13} parent=1 // pred_check
      _
    $region78: #{custom-call.13} parent=1 // pred_check_branch
      %236 = sbr.rel (0) target = $region80
    $region79: #{custom-call.13} parent=1 // pred_region
      // Predicated region
      $region81: #{custom-call.13} parent=79 // pred_check
        _
      $region82: #{custom-call.13} parent=79 // pred_check_branch
        %238 = sbr.rel (0) target = $region84
      $region83: #{custom-call.13} parent=79 // pred_region
        // Predicated region
        $region85: #{custom-call.13} parent=83 // pred_check
          _
        $region86: #{custom-call.13} parent=83 // pred_check_branch
          %240 = sbr.rel target = $region88
        $region87: #{custom-call.13} parent=83 // pred_region
          // Predicated region
          $region100: #{custom-call.13} parent=87 // pred_check
            _
          $region101: #{custom-call.13} parent=87 // pred_check_branch
            %255 = sbr.rel (0) target = $region103
          $region102: #{custom-call.13} parent=87 // pred_region
            loop: start=0, step=1, limit=1
            $region104: #{custom-call.13} parent=102 // loop_pre_header
              _
            $region105: #{custom-call.13} parent=102 // loop_header
              %s258 = sphi 0, %s262
              %p259 = scmp.ge.s32.totalorder %s258, 1
              %s263 = sphi [#allocation3], [#allocation3]
              %s264 = sphi %s2, %s2
            $region106: #{custom-call.13} parent=102 // loop_header_branch
              %261 = sbr.rel (%p259) target = $region110
            $region107: #{custom-call.13} parent=102 // loop_body
              %v265 = vld [vmem:[%s263] sm:$0x1]
              %266 = vst [vmem:[%s264] sm:$0x1] %v265
            $region108: #{custom-call.13} parent=102 // loop_footer
              %s262 = sadd.s32 1, %s258
            $region109: #{custom-call.13} parent=102 // loop_footer_branch
              %257 = sbr.rel target = $region105
            $region110: #{custom-call.13} parent=102 // loop_exit
              _
          $region103: #{custom-call.13} parent=87 // pred_fallthru
            _
        $region88: #{custom-call.13} parent=83 // pred_fallthru
          _
        // Predicated region
        $region89: #{custom-call.13} parent=83 // pred_check
          _
        $region90: #{custom-call.13} parent=83 // pred_check_branch
          %242 = sbr.rel (0) target = $region92
        $region91: #{custom-call.13} parent=83 // pred_region
          loop: start=0, step=1, limit=1
          $region93: #{custom-call.13} parent=91 // loop_pre_header
            _
          $region94: #{custom-call.13} parent=91 // loop_header
            %s245 = sphi 0, %s249
            %p246 = scmp.ge.s32.totalorder %s245, 1
            %s250 = sphi [#allocation3], [#allocation3]
            %s251 = sphi %s2, %s2
          $region95: #{custom-call.13} parent=91 // loop_header_branch
            %248 = sbr.rel (%p246) target = $region99
          $region96: #{custom-call.13} parent=91 // loop_body
            %v252 = vld [vmem:[%s250] sm:$0x1]
            %253 = vst [vmem:[%s251] sm:$0x1] %v252
          $region97: #{custom-call.13} parent=91 // loop_footer
            %s249 = sadd.s32 1, %s245
          $region98: #{custom-call.13} parent=91 // loop_footer_branch
            %244 = sbr.rel target = $region94
          $region99: #{custom-call.13} parent=91 // loop_exit
            _
        $region92: #{custom-call.13} parent=83 // pred_fallthru
          _
      $region84: #{custom-call.13} parent=79 // pred_fallthru
        _
      %267 = vnop
    $region80: #{custom-call.13} parent=1 // pred_fallthru
      _
    // Predicated region
    $region111: #{custom-call.13} parent=1 // pred_check
      _
    $region112: #{custom-call.13} parent=1 // pred_check_branch
      %269 = sbr.rel (0) target = $region114
    $region113: #{custom-call.13} parent=1 // pred_region
      _
    $region114: #{custom-call.13} parent=1 // pred_fallthru
      _

// kernel: custom-call.14
$region0: #{custom-call.14}
  %s0 = inlined_call_operand.vmem [shape: f32[4,4], index: 0, kind: input, shape index: {}]
  %s1 = inlined_call_operand.vmem [shape: f32[4,4], index: 1, kind: output, shape index: {}]
  $region1: #{custom-call.14} parent=0
    #allocation0 [shape = 'u8[4096]{0}', space=vmem, size = 0x1000, scoped, tag = 'operand span for operand 0']
    #allocation1 [shape = 'u8[2048]{0}', space=vmem, size = 0x800, scoped, tag = 'packed  for operand 0']
    #allocation2 [shape = 'u8[4096]{0}', space=vmem, size = 0x1000, scoped, tag = 'operand span for operand 1']
    #allocation3 [shape = 'u8[2048]{0}', space=vmem, size = 0x800, scoped, tag = 'packed  for operand 1']
    %p3 = scmp.gt.s32.totalorder 4, 0
    // Predicated region
    $region2: #{custom-call.14} parent=1 // pred_check
      %p4 = pneg %p3
    $region3: #{custom-call.14} parent=1 // pred_check_branch
      %6 = sbr.rel (%p4) target = $region5
    $region4: #{custom-call.14} parent=1 // pred_region
      %s7 = sshra.s32 4, 3
      %p8 = scmp.gt.s32.totalorder %s7, 0
      // Predicated region
      $region6: #{custom-call.14} parent=4 // pred_check
        %p9 = pneg %p8
      $region7: #{custom-call.14} parent=4 // pred_check_branch
        %11 = sbr.rel (%p9) target = $region9
      $region8: #{custom-call.14} parent=4 // pred_region
        %s12 = ssub.s32 %s7, 1
        %s13 = smul.u32 %s12, 128
        %s14 = sshra.s32 %s13, 4
        %s15 = scalar_lea.vmem %s0, %s14
        %v16 = vld [vmem:[%s0] sm:$0xff]
        // While loop
        $region10: #{custom-call.14} parent=8 // loop_pre_header
          _
        $region11: #{custom-call.14} parent=8 // loop_header
          %s17 = sphi %s0, %s39
          %s18 = sphi [#allocation1], %s40
          %v19 = vphi %v16, %v41
          %s20 = ssub.s32 %s15, 64
          %p21 = scmp.gt.s32.totalorder %s17, %s20
        $region12: #{custom-call.14} parent=8 // loop_header_branch
          %23 = sbr.rel (%p21) target = $region16
        $region13: #{custom-call.14} parent=8 // loop_body
          %24 = vst [vmem:[%s18] sm:$0xff] %v19
          %v25 = vld [vmem:[%s17 + $0x8] sm:$0xff]
          %26 = vst [vmem:[%s18 + $0x8] sm:$0xff] %v25
          %v27 = vld [vmem:[%s17 + $0x10] sm:$0xff]
          %28 = vst [vmem:[%s18 + $0x10] sm:$0xff] %v27
          %v29 = vld [vmem:[%s17 + $0x18] sm:$0xff]
          %30 = vst [vmem:[%s18 + $0x18] sm:$0xff] %v29
          %v31 = vld [vmem:[%s17 + $0x20] sm:$0xff]
          %32 = vst [vmem:[%s18 + $0x20] sm:$0xff] %v31
          %v33 = vld [vmem:[%s17 + $0x28] sm:$0xff]
          %34 = vst [vmem:[%s18 + $0x28] sm:$0xff] %v33
          %v35 = vld [vmem:[%s17 + $0x30] sm:$0xff]
          %36 = vst [vmem:[%s18 + $0x30] sm:$0xff] %v35
          %v37 = vld [vmem:[%s17 + $0x38] sm:$0xff]
          %38 = vst [vmem:[%s18 + $0x38] sm:$0xff] %v37
        $region14: #{custom-call.14} parent=8 // loop_footer
          %s39 = scalar_lea.vmem %s17, 64
          %s40 = scalar_lea.vmem %s18, 64
          %v41 = vld [vmem:[%s17 + $0x40] sm:$0xff]
        $region15: #{custom-call.14} parent=8 // loop_footer_branch
          %42 = sbr.rel target = $region11
        $region16: #{custom-call.14} parent=8 // loop_exit
          _
        // While loop
        $region17: #{custom-call.14} parent=8 // loop_pre_header
          _
        $region18: #{custom-call.14} parent=8 // loop_header
          %s43 = sphi %s17, %s51
          %s44 = sphi %s18, %s52
          %v45 = vphi %v19, %v45
          %p46 = scmp.gt.s32.totalorder %s43, %s15
        $region19: #{custom-call.14} parent=8 // loop_header_branch
          %48 = sbr.rel (%p46) target = $region23
        $region20: #{custom-call.14} parent=8 // loop_body
          %v49 = vld [vmem:[%s43] sm:$0xff]
          %50 = vst [vmem:[%s44] sm:$0xff] %v49
        $region21: #{custom-call.14} parent=8 // loop_footer
          %s51 = scalar_lea.vmem %s43, 8
          %s52 = scalar_lea.vmem %s44, 8
        $region22: #{custom-call.14} parent=8 // loop_footer_branch
          %53 = sbr.rel target = $region18
        $region23: #{custom-call.14} parent=8 // loop_exit
          _
      $region9: #{custom-call.14} parent=4 // pred_fallthru
        _
      %s54 = sand.u32 4, 7
      %s55 = sshllo.u32 0, %s54
      %s56 = smul.u32 %s7, 128
      %s57 = sshra.s32 %s56, 4
      %s58 = scalar_lea.vmem [#allocation1], %s57
      %s59 = smul.u32 %s7, 128
      %s60 = sshra.s32 %s59, 4
      %s61 = scalar_lea.vmem %s0, %s60
      %v62 = vld [vmem:[%s61] sm:%s55]
      %63 = vst [vmem:[%s58] sm:%s55] %v62
    $region5: #{custom-call.14} parent=1 // pred_fallthru
      _
    %s65 = sshllo.u32 0, 4
    %v66 = vld [vmem:[#allocation1] sm:%s65]
    %67 = vst [vmem:[#allocation0] sm:%s65] %v66
    %v68 = vlaneseq
    %v69 = vand.u32 %v68, 127
    %v70 = vlaneseq
    %v71 = vshrl.u32 %v70, 7
    %vm73 = vcmp.eq.s32.totalorder %v69, %v71
    %v74 = vld [vmem:[#allocation0] sm:$0xff]
    %v75 = vlaneseq
    %v76 = vand.u32 %v75, 127
    %vm77 = vcmp.eq.s32.totalorder %v76, 0
    %v78 = vsel %vm77, %v74, 1.0
    %v79 = vsel %vm73, %v78, 0.0
    %s80 = scalar_lea.vmem [#allocation0], 1
    %v81 = vld [vmem:[%s80] ss:$0 sm:$0xff]
    %vm82 = vcmask 31744
    %v83 = vsel %vm82, %v81, 0.0
    %v84 = vlaneseq
    %v85 = vand.u32 %v84, 127
    %vm86 = vcmp.eq.s32.totalorder %v85, 1
    %v87 = vmul.f32 %v83, %v79
    %88 = vadd.xlane.f32.xlu0 %v87
    %v89 = vpop.xlane.xlu0 %88
    %v90 = vsel %vm86, %v89, %v79
    %s91 = scalar_lea.vmem [#allocation0], 2
    %v92 = vld [vmem:[%s91] ss:$0 sm:$0xff]
    %vm93 = vcmask 31744
    %v94 = vsel %vm93, %v92, 0.0
    %v95 = vlaneseq
    %v96 = vand.u32 %v95, 127
    %vm97 = vcmp.eq.s32.totalorder %v96, 2
    %v98 = vmul.f32 %v94, %v90
    %99 = vadd.xlane.f32.xlu0 %v98
    %v100 = vpop.xlane.xlu0 %99
    %v101 = vsel %vm97, %v100, %v90
    %s102 = scalar_lea.vmem [#allocation0], 3
    %v103 = vld [vmem:[%s102] ss:$0 sm:$0xff]
    %vm104 = vcmask 31744
    %v105 = vsel %vm104, %v103, 0.0
    %v106 = vlaneseq
    %v107 = vand.u32 %v106, 127
    %vm108 = vcmp.eq.s32.totalorder %v107, 3
    %v109 = vmul.f32 %v105, %v101
    %110 = vadd.xlane.f32.xlu0 %v109
    %v111 = vpop.xlane.xlu0 %110
    %v112 = vsel %vm108, %v111, %v101
    %113 = vst [vmem:[#allocation2] sm:$0xff] %v112
    %s115 = sshllo.u32 0, 4
    %v117 = vld [vmem:[#allocation2] sm:%s115]
    %s118 = sshllo.u32 0, 4
    %119 = vst [vmem:[#allocation3] sm:%s118] %v117
    %p121 = scmp.gt.s32.totalorder 4, 0
    // Predicated region
    $region24: #{custom-call.14} parent=1 // pred_check
      %p122 = pneg %p121
    $region25: #{custom-call.14} parent=1 // pred_check_branch
      %124 = sbr.rel (%p122) target = $region27
    $region26: #{custom-call.14} parent=1 // pred_region
      %s125 = sshra.s32 4, 3
      %p126 = scmp.gt.s32.totalorder %s125, 0
      // Predicated region
      $region28: #{custom-call.14} parent=26 // pred_check
        %p127 = pneg %p126
      $region29: #{custom-call.14} parent=26 // pred_check_branch
        %129 = sbr.rel (%p127) target = $region31
      $region30: #{custom-call.14} parent=26 // pred_region
        %s130 = ssub.s32 %s125, 1
        %s131 = smul.u32 %s130, 128
        %s132 = sshra.s32 %s131, 4
        %s133 = scalar_lea.vmem [#allocation3], %s132
        %v134 = vld [vmem:[#allocation3] sm:$0xff]
        // While loop
        $region32: #{custom-call.14} parent=30 // loop_pre_header
          _
        $region33: #{custom-call.14} parent=30 // loop_header
          %s135 = sphi [#allocation3], %s157
          %s136 = sphi %s1, %s158
          %v137 = vphi %v134, %v159
          %s138 = ssub.s32 %s133, 64
          %p139 = scmp.gt.s32.totalorder %s135, %s138
        $region34: #{custom-call.14} parent=30 // loop_header_branch
          %141 = sbr.rel (%p139) target = $region38
        $region35: #{custom-call.14} parent=30 // loop_body
          %142 = vst [vmem:[%s136] sm:$0xff] %v137
          %v143 = vld [vmem:[%s135 + $0x8] sm:$0xff]
          %144 = vst [vmem:[%s136 + $0x8] sm:$0xff] %v143
          %v145 = vld [vmem:[%s135 + $0x10] sm:$0xff]
          %146 = vst [vmem:[%s136 + $0x10] sm:$0xff] %v145
          %v147 = vld [vmem:[%s135 + $0x18] sm:$0xff]
          %148 = vst [vmem:[%s136 + $0x18] sm:$0xff] %v147
          %v149 = vld [vmem:[%s135 + $0x20] sm:$0xff]
          %150 = vst [vmem:[%s136 + $0x20] sm:$0xff] %v149
          %v151 = vld [vmem:[%s135 + $0x28] sm:$0xff]
          %152 = vst [vmem:[%s136 + $0x28] sm:$0xff] %v151
          %v153 = vld [vmem:[%s135 + $0x30] sm:$0xff]
          %154 = vst [vmem:[%s136 + $0x30] sm:$0xff] %v153
          %v155 = vld [vmem:[%s135 + $0x38] sm:$0xff]
          %156 = vst [vmem:[%s136 + $0x38] sm:$0xff] %v155
        $region36: #{custom-call.14} parent=30 // loop_footer
          %s157 = scalar_lea.vmem %s135, 64
          %s158 = scalar_lea.vmem %s136, 64
          %v159 = vld [vmem:[%s135 + $0x40] sm:$0xff]
        $region37: #{custom-call.14} parent=30 // loop_footer_branch
          %160 = sbr.rel target = $region33
        $region38: #{custom-call.14} parent=30 // loop_exit
          _
        // While loop
        $region39: #{custom-call.14} parent=30 // loop_pre_header
          _
        $region40: #{custom-call.14} parent=30 // loop_header
          %s161 = sphi %s135, %s169
          %s162 = sphi %s136, %s170
          %v163 = vphi %v137, %v163
          %p164 = scmp.gt.s32.totalorder %s161, %s133
        $region41: #{custom-call.14} parent=30 // loop_header_branch
          %166 = sbr.rel (%p164) target = $region45
        $region42: #{custom-call.14} parent=30 // loop_body
          %v167 = vld [vmem:[%s161] sm:$0xff]
          %168 = vst [vmem:[%s162] sm:$0xff] %v167
        $region43: #{custom-call.14} parent=30 // loop_footer
          %s169 = scalar_lea.vmem %s161, 8
          %s170 = scalar_lea.vmem %s162, 8
        $region44: #{custom-call.14} parent=30 // loop_footer_branch
          %171 = sbr.rel target = $region40
        $region45: #{custom-call.14} parent=30 // loop_exit
          _
      $region31: #{custom-call.14} parent=26 // pred_fallthru
        _
      %s172 = sand.u32 4, 7
      %s173 = sshllo.u32 0, %s172
      %s174 = smul.u32 %s125, 128
      %s175 = sshra.s32 %s174, 4
      %s176 = scalar_lea.vmem %s1, %s175
      %s177 = smul.u32 %s125, 128
      %s178 = sshra.s32 %s177, 4
      %s179 = scalar_lea.vmem [#allocation3], %s178
      %v180 = vld [vmem:[%s179] sm:%s173]
      %181 = vst [vmem:[%s176] sm:%s173] %v180
    $region27: #{custom-call.14} parent=1 // pred_fallthru
      _

// kernel: gla_forward.4
$region0: #{gla_forward.4}
  #allocation0 [shape = 'u32[]', space=smem, size = 0x4, offset = 0x4, fixed_abs, tag = 'smem constant byte address 0x4 - core index']
  #allocation1 [shape = 'u32[144,128]{1,0:T(1,128)}', space=vmem, size = 0x12000, scoped, tag = 'internal scratch']
  %s0 = inlined_call_operand.vmem [shape: bf16[128,288], index: 0, kind: input, shape index: {}]
  %s1 = inlined_call_operand.vmem [shape: bf16[288,128], index: 1, kind: input, shape index: {}]
  %s2 = inlined_call_operand.vmem [shape: f32[1,128], index: 2, kind: input, shape index: {}]
  %s3 = inlined_call_operand.vmem [shape: bf16[128,128], index: 3, kind: input, shape index: {}]
  %s4 = inlined_call_operand.vmem [shape: f32[1,128], index: 4, kind: input, shape index: {}]
  %s5 = inlined_call_operand.vmem [shape: bf16[128,128], index: 5, kind: input, shape index: {}]
  %s6 = inlined_call_operand.vmem [shape: f32[1,128], index: 6, kind: input, shape index: {}]
  %s7 = inlined_call_operand.vmem [shape: f32[128,128], index: 7, kind: output, shape index: {0}]
  %s8 = inlined_call_operand.vmem [shape: f32[128,128], index: 8, kind: output, shape index: {1}]
  %9 = xla_tuple %s7, %s8
  %s10 = sld [smem:[#allocation0]]
  $region69: #{gla_forward.4} parent=0
    _
  %s12 = ssub.s32 1, %s10
  %s13 = scalar_select 0, %s12, %s10
  loop: start=0, step=1, limit=4
  $region2: #{gla_forward.4} parent=0 // loop_pre_header
    _
  $region3: #{gla_forward.4} parent=0 // loop_header
    %s15 = sphi 0, %s19
    %p16 = scmp.ge.s32.totalorder %s15, 4
    %s25 = sphi 0, %s27
    %s28 = sphi 0, %s25
    %s29 = sphi 0, %s28
    %s45 = sphi 0, %s29
    %s49 = sphi 0, %s49
    %s51 = sphi 0, %s49
    %s52 = sphi 0, %s51
    %s66 = sphi 0, %s52
    %s70 = sphi 0, %s70
    %s72 = sphi 0, %s70
    %s73 = sphi 0, %s72
    %s87 = sphi 0, %s73
    %s91 = sphi 0, %s91
    %s93 = sphi 0, %s91
    %s94 = sphi 0, %s93
    %s108 = sphi 0, %s94
    %s112 = sphi 0, %s112
    %s114 = sphi 0, %s112
    %s115 = sphi 0, %s114
    %s129 = sphi 0, %s115
    %s133 = sphi 0, %s133
    %s135 = sphi 0, %s133
    %s136 = sphi 0, %s135
    %s150 = sphi 0, %s136
    %s154 = sphi 0, %s154
    %s156 = sphi 0, %s154
    %s157 = sphi 0, %s156
    %s171 = sphi 0, %s157
    %s177 = sphi 0, %s179
    %s180 = sphi 0, %s177
    %s181 = sphi 0, %s180
    %s197 = sphi 0, %s181
    %s203 = sphi 0, %s205
    %s206 = sphi 0, %s203
    %s207 = sphi 0, %s206
    %s223 = sphi 0, %s207
  $region4: #{gla_forward.4} parent=0 // loop_header_branch
    %18 = sbr.rel (%p16) target = $region8
  $region5: #{gla_forward.4} parent=0 // loop_body
    %s20 = ssub.s32 %s15, 1
    %s21 = ssub.s32 %s15, 2
    %s22 = sadd.s32 %s15, 1
    %s23 = ssub.s32 %s15, %s22
    %p24 = scmp.eq.s32.totalorder %s23, 0
    %s26 = sadd.s32 %s25, 1
    %s27 = scalar_select %p24, %s25, %s26
    %p30 = pneg %p24
    %p31 = scmp.eq.s32.totalorder %s15, 1
    %p32 = por %p30, %p31
    %p33 = scmp.ne.s32.totalorder %s25, %s28
    %p34 = scmp.eq.s32.totalorder %s15, 0
    %p35 = por %p33, %p34
    %p36 = scmp.ne.s32.totalorder %s25, %s28
    %p37 = scmp.eq.s32.totalorder %s20, 1
    %p38 = por %p36, %p37
    %p39 = scmp.ne.s32.totalorder %s28, %s29
    %p40 = scmp.eq.s32.totalorder %s20, 0
    %p41 = por %p39, %p40
    %p42 = scmp.ne.s32.totalorder %s28, %s29
    %p43 = scmp.eq.s32.totalorder %s21, 1
    %p44 = por %p42, %p43
    %p46 = scmp.ne.s32.totalorder %s29, %s45
    %p47 = scmp.eq.s32.totalorder %s21, 0
    %p48 = por %p46, %p47
    %s50 = sadd.s32 %s49, 1
    %p53 = scmp.eq.s32.totalorder %s15, 1
    %p54 = scmp.ne.s32.totalorder %s49, %s51
    %p55 = scmp.eq.s32.totalorder %s15, 0
    %p56 = por %p54, %p55
    %p57 = scmp.ne.s32.totalorder %s49, %s51
    %p58 = scmp.eq.s32.totalorder %s20, 1
    %p59 = por %p57, %p58
    %p60 = scmp.ne.s32.totalorder %s51, %s52
    %p61 = scmp.eq.s32.totalorder %s20, 0
    %p62 = por %p60, %p61
    %p63 = scmp.ne.s32.totalorder %s51, %s52
    %p64 = scmp.eq.s32.totalorder %s21, 1
    %p65 = por %p63, %p64
    %p67 = scmp.ne.s32.totalorder %s52, %s66
    %p68 = scmp.eq.s32.totalorder %s21, 0
    %p69 = por %p67, %p68
    %s71 = sadd.s32 %s70, 1
    %p74 = scmp.eq.s32.totalorder %s15, 1
    %p75 = scmp.ne.s32.totalorder %s70, %s72
    %p76 = scmp.eq.s32.totalorder %s15, 0
    %p77 = por %p75, %p76
    %p78 = scmp.ne.s32.totalorder %s70, %s72
    %p79 = scmp.eq.s32.totalorder %s20, 1
    %p80 = por %p78, %p79
    %p81 = scmp.ne.s32.totalorder %s72, %s73
    %p82 = scmp.eq.s32.totalorder %s20, 0
    %p83 = por %p81, %p82
    %p84 = scmp.ne.s32.totalorder %s72, %s73
    %p85 = scmp.eq.s32.totalorder %s21, 1
    %p86 = por %p84, %p85
    %p88 = scmp.ne.s32.totalorder %s73, %s87
    %p89 = scmp.eq.s32.totalorder %s21, 0
    %p90 = por %p88, %p89
    %s92 = sadd.s32 %s91, 1
    %p95 = scmp.eq.s32.totalorder %s15, 1
    %p96 = scmp.ne.s32.totalorder %s91, %s93
    %p97 = scmp.eq.s32.totalorder %s15, 0
    %p98 = por %p96, %p97
    %p99 = scmp.ne.s32.totalorder %s91, %s93
    %p100 = scmp.eq.s32.totalorder %s20, 1
    %p101 = por %p99, %p100
    %p102 = scmp.ne.s32.totalorder %s93, %s94
    %p103 = scmp.eq.s32.totalorder %s20, 0
    %p104 = por %p102, %p103
    %p105 = scmp.ne.s32.totalorder %s93, %s94
    %p106 = scmp.eq.s32.totalorder %s21, 1
    %p107 = por %p105, %p106
    %p109 = scmp.ne.s32.totalorder %s94, %s108
    %p110 = scmp.eq.s32.totalorder %s21, 0
    %p111 = por %p109, %p110
    %s113 = sadd.s32 %s112, 1
    %p116 = scmp.eq.s32.totalorder %s15, 1
    %p117 = scmp.ne.s32.totalorder %s112, %s114
    %p118 = scmp.eq.s32.totalorder %s15, 0
    %p119 = por %p117, %p118
    %p120 = scmp.ne.s32.totalorder %s112, %s114
    %p121 = scmp.eq.s32.totalorder %s20, 1
    %p122 = por %p120, %p121
    %p123 = scmp.ne.s32.totalorder %s114, %s115
    %p124 = scmp.eq.s32.totalorder %s20, 0
    %p125 = por %p123, %p124
    %p126 = scmp.ne.s32.totalorder %s114, %s115
    %p127 = scmp.eq.s32.totalorder %s21, 1
    %p128 = por %p126, %p127
    %p130 = scmp.ne.s32.totalorder %s115, %s129
    %p131 = scmp.eq.s32.totalorder %s21, 0
    %p132 = por %p130, %p131
    %s134 = sadd.s32 %s133, 1
    %p137 = scmp.eq.s32.totalorder %s15, 1
    %p138 = scmp.ne.s32.totalorder %s133, %s135
    %p139 = scmp.eq.s32.totalorder %s15, 0
    %p140 = por %p138, %p139
    %p141 = scmp.ne.s32.totalorder %s133, %s135
    %p142 = scmp.eq.s32.totalorder %s20, 1
    %p143 = por %p141, %p142
    %p144 = scmp.ne.s32.totalorder %s135, %s136
    %p145 = scmp.eq.s32.totalorder %s20, 0
    %p146 = por %p144, %p145
    %p147 = scmp.ne.s32.totalorder %s135, %s136
    %p148 = scmp.eq.s32.totalorder %s21, 1
    %p149 = por %p147, %p148
    %p151 = scmp.ne.s32.totalorder %s136, %s150
    %p152 = scmp.eq.s32.totalorder %s21, 0
    %p153 = por %p151, %p152
    %s155 = sadd.s32 %s154, 1
    %p158 = scmp.eq.s32.totalorder %s15, 1
    %p159 = scmp.ne.s32.totalorder %s154, %s156
    %p160 = scmp.eq.s32.totalorder %s15, 0
    %p161 = por %p159, %p160
    %p162 = scmp.ne.s32.totalorder %s154, %s156
    %p163 = scmp.eq.s32.totalorder %s20, 1
    %p164 = por %p162, %p163
    %p165 = scmp.ne.s32.totalorder %s156, %s157
    %p166 = scmp.eq.s32.totalorder %s20, 0
    %p167 = por %p165, %p166
    %p168 = scmp.ne.s32.totalorder %s156, %s157
    %p169 = scmp.eq.s32.totalorder %s21, 1
    %p170 = por %p168, %p169
    %p172 = scmp.ne.s32.totalorder %s157, %s171
    %p173 = scmp.eq.s32.totalorder %s21, 0
    %p174 = por %p172, %p173
    %s175 = ssub.s32 %s15, %s22
    %p176 = scmp.eq.s32.totalorder %s175, 0
    %s178 = sadd.s32 %s177, 1
    %s179 = scalar_select %p176, %s177, %s178
    %p182 = pneg %p176
    %p183 = scmp.eq.s32.totalorder %s15, 1
    %p184 = por %p182, %p183
    %p185 = scmp.ne.s32.totalorder %s177, %s180
    %p186 = scmp.eq.s32.totalorder %s15, 0
    %p187 = por %p185, %p186
    %p188 = scmp.ne.s32.totalorder %s177, %s180
    %p189 = scmp.eq.s32.totalorder %s20, 1
    %p190 = por %p188, %p189
    %p191 = scmp.ne.s32.totalorder %s180, %s181
    %p192 = scmp.eq.s32.totalorder %s20, 0
    %p193 = por %p191, %p192
    %p194 = scmp.ne.s32.totalorder %s180, %s181
    %p195 = scmp.eq.s32.totalorder %s21, 1
    %p196 = por %p194, %p195
    %p198 = scmp.ne.s32.totalorder %s181, %s197
    %p199 = scmp.eq.s32.totalorder %s21, 0
    %p200 = por %p198, %p199
    %s201 = ssub.s32 %s15, %s22
    %p202 = scmp.eq.s32.totalorder %s201, 0
    %s204 = sadd.s32 %s203, 1
    %s205 = scalar_select %p202, %s203, %s204
    %p208 = pneg %p202
    %p209 = scmp.eq.s32.totalorder %s15, 1
    %p210 = por %p208, %p209
    %p211 = scmp.ne.s32.totalorder %s203, %s206
    %p212 = scmp.eq.s32.totalorder %s15, 0
    %p213 = por %p211, %p212
    %p214 = scmp.ne.s32.totalorder %s203, %s206
    %p215 = scmp.eq.s32.totalorder %s20, 1
    %p216 = por %p214, %p215
    %p217 = scmp.ne.s32.totalorder %s206, %s207
    %p218 = scmp.eq.s32.totalorder %s20, 0
    %p219 = por %p217, %p218
    %p220 = scmp.ne.s32.totalorder %s206, %s207
    %p221 = scmp.eq.s32.totalorder %s21, 1
    %p222 = por %p220, %p221
    %p224 = scmp.ne.s32.totalorder %s207, %s223
    %p225 = scmp.eq.s32.totalorder %s21, 0
    %p226 = por %p224, %p225
    %p227 = scmp.le.s32.totalorder 1, %s15
    %p228 = scmp.lt.s32.totalorder %s15, 3
    %p229 = pnand %p227, %p228
    %p230 = pneg %p229
    // Predicated region
    $region9: #{gla_forward.4} parent=5 // pred_check
      _
    $region10: #{gla_forward.4} parent=5 // pred_check_branch
      %232 = sbr.rel (%p229) target = $region12
    $region11: #{gla_forward.4} parent=5 // pred_region
      %s233 = ssub.s32 %s15, 1
      // Predicated region
      $region13: #{gla_forward.4} parent=11 // pred_check
        %p234 = pneg %p62
      $region14: #{gla_forward.4} parent=11 // pred_check_branch
        %236 = sbr.rel (%p234) target = $region16
      $region15: #{gla_forward.4} parent=11 // pred_region
        _
      $region16: #{gla_forward.4} parent=11 // pred_fallthru
        _
      // Predicated region
      $region17: #{gla_forward.4} parent=11 // pred_check
        %p237 = pneg %p83
      $region18: #{gla_forward.4} parent=11 // pred_check_branch
        %239 = sbr.rel (%p237) target = $region20
      $region19: #{gla_forward.4} parent=11 // pred_region
        _
      $region20: #{gla_forward.4} parent=11 // pred_fallthru
        _
      // Predicated region
      $region21: #{gla_forward.4} parent=11 // pred_check
        %p240 = pneg %p104
      $region22: #{gla_forward.4} parent=11 // pred_check_branch
        %242 = sbr.rel (%p240) target = $region24
      $region23: #{gla_forward.4} parent=11 // pred_region
        _
      $region24: #{gla_forward.4} parent=11 // pred_fallthru
        _
      // Predicated region
      $region25: #{gla_forward.4} parent=11 // pred_check
        %p243 = pneg %p125
      $region26: #{gla_forward.4} parent=11 // pred_check_branch
        %245 = sbr.rel (%p243) target = $region28
      $region27: #{gla_forward.4} parent=11 // pred_region
        _
      $region28: #{gla_forward.4} parent=11 // pred_fallthru
        _
      // Predicated region
      $region29: #{gla_forward.4} parent=11 // pred_check
        %p246 = pneg %p146
      $region30: #{gla_forward.4} parent=11 // pred_check_branch
        %248 = sbr.rel (%p246) target = $region32
      $region31: #{gla_forward.4} parent=11 // pred_region
        _
      $region32: #{gla_forward.4} parent=11 // pred_fallthru
        _
      // Predicated region
      $region33: #{gla_forward.4} parent=11 // pred_check
        %p249 = pneg %p167
      $region34: #{gla_forward.4} parent=11 // pred_check_branch
        %251 = sbr.rel (%p249) target = $region36
      $region35: #{gla_forward.4} parent=11 // pred_region
        _
      $region36: #{gla_forward.4} parent=11 // pred_fallthru
        _
    $region12: #{gla_forward.4} parent=5 // pred_fallthru
      _
    %p252 = scmp.lt.s32.totalorder %s15, 2
    // Predicated region
    $region37: #{gla_forward.4} parent=5 // pred_check
      %p253 = pneg %p252
    $region38: #{gla_forward.4} parent=5 // pred_check_branch
      %255 = sbr.rel (%p253) target = $region40
    $region39: #{gla_forward.4} parent=5 // pred_region
      // Predicated region
      $region41: #{gla_forward.4} parent=39 // pred_check
        %p256 = pneg %p35
      $region42: #{gla_forward.4} parent=39 // pred_check_branch
        %258 = sbr.rel (%p256) target = $region44
      $region43: #{gla_forward.4} parent=39 // pred_region
        %s259 = smul.u32 8, %s15
        %p260 = scmp.lt.s32.totalorder %s259, 15
        %s261 = scalar_select %p260, %s259, 15
        %s262 = smul.addr %s261, 3
        %s263 = smul.addr %s262, 4
        %s264 = scalar_lea.vmem %s0, %s263
        %s265 = smul.u32 8, %s15
      $region44: #{gla_forward.4} parent=39 // pred_fallthru
        _
    $region40: #{gla_forward.4} parent=5 // pred_fallthru
      _
    %p266 = scmp.le.s32.totalorder 1, %s15
    %p267 = scmp.lt.s32.totalorder %s15, 3
    %p268 = pnand %p266, %p267
    %p269 = pneg %p268
    // Predicated region
    $region45: #{gla_forward.4} parent=5 // pred_check
      _
    $region46: #{gla_forward.4} parent=5 // pred_check_branch
      %271 = sbr.rel (%p268) target = $region48
    $region47: #{gla_forward.4} parent=5 // pred_region
      %s272 = ssub.s32 %s15, 1
      %s273 = smul.u32 8, %s20
      %p274 = scmp.lt.s32.totalorder %s273, 15
      %s275 = scalar_select %p274, %s273, 15
      %s276 = smul.addr %s275, 3
      %s277 = smul.addr %s276, 4
      %s278 = scalar_lea.vmem %s0, %s277
      %p279 = pneg %p41
      %p280 = pneg %p38
      %p281 = pneg %p62
      %p282 = pneg %p59
      %p283 = pneg %p83
      %p284 = pneg %p80
      %p285 = pneg %p104
      %p286 = pneg %p101
      %p287 = pneg %p125
      %p288 = pneg %p122
      %p289 = pneg %p146
      %p290 = pneg %p143
      %p291 = pneg %p167
      %p292 = pneg %p164
      %p293 = pneg %p193
      %p294 = pneg %p190
      %s295 = smul.u32 8, %s20
      %p296 = scmp.lt.s32.totalorder %s295, 15
      %s297 = scalar_select %p296, %s295, 15
      %s298 = smul.addr %s297, 8
      %s299 = scalar_lea.vmem %s7, %s298
      %p300 = pneg %p219
      %p301 = pneg %p216
      %s302 = smul.u32 8, %s20
      %p303 = scmp.lt.s32.totalorder %s302, 15
      %s304 = scalar_select %p303, %s302, 15
      %s305 = smul.addr %s304, 8
      %s306 = scalar_lea.vmem %s8, %s305
      %s307 = smul.u32 8, %s20
      %p308 = scmp.lt.s32.totalorder %s307, 15
      %s309 = scalar_select %p308, %s307, 15
      %s310 = smul.addr %s309, 3
      %s311 = smul.addr %s310, 4
      %s312 = scalar_lea.vmem %s0, %s311
      %s313 = smul.u32 8, %s20
      %s314 = smul.u32 8, %s20
      %p315 = scmp.lt.s32.totalorder %s314, 15
      %s316 = scalar_select %p315, %s314, 15
      %s317 = smul.addr %s316, 8
      %s318 = scalar_lea.vmem %s7, %s317
      %s319 = smul.u32 8, %s20
      %s320 = smul.u32 8, %s20
      %p321 = scmp.lt.s32.totalorder %s320, 15
      %s322 = scalar_select %p321, %s320, 15
      %s323 = smul.addr %s322, 8
      %s324 = scalar_lea.vmem %s8, %s323
      %s325 = smul.u32 8, %s20
      %v327 = vld [vmem:[%s312] sm:$0xff]
      %v328 = vld [vmem:[%s312 + $0x8] sm:$0xf]
      %v329 = vld [vmem:[%s312 + $0xc] sm:$0xff]
      %v330 = vld [vmem:[%s312 + $0x14] sm:$0xf]
      %v331 = vld [vmem:[%s312 + $0x18] sm:$0xff]
      %v332 = vld [vmem:[%s312 + $0x20] sm:$0xf]
      %v333 = vld [vmem:[%s312 + $0x24] sm:$0xff]
      %v334 = vld [vmem:[%s312 + $0x2c] sm:$0xf]
      %v335 = vld [vmem:[%s312 + $0x30] sm:$0xff]
      %v336 = vld [vmem:[%s312 + $0x38] sm:$0xf]
      %v337 = vld [vmem:[%s312 + $0x3c] sm:$0xff]
      %v338 = vld [vmem:[%s312 + $0x44] sm:$0xf]
      %v339 = vld [vmem:[%s312 + $0x48] sm:$0xff]
      %v340 = vld [vmem:[%s312 + $0x50] sm:$0xf]
      %v341 = vld [vmem:[%s312 + $0x54] sm:$0xff]
      %v342 = vld [vmem:[%s312 + $0x5c] sm:$0xf]
      %v343 = vld [vmem:[%s1] sm:$0xf]
      %v344 = vld [vmem:[%s1 + $0x4] sm:$0xf]
      %v345 = vld [vmem:[%s1 + $0x8] sm:$0xf]
      %v346 = vld [vmem:[%s1 + $0xc] sm:$0xf]
      %v347 = vld [vmem:[%s1 + $0x10] sm:$0xf]
      %v348 = vld [vmem:[%s1 + $0x14] sm:$0xf]
      %v349 = vld [vmem:[%s1 + $0x18] sm:$0xf]
      %v350 = vld [vmem:[%s1 + $0x1c] sm:$0xf]
      %v351 = vld [vmem:[%s1 + $0x20] sm:$0xf]
      %v352 = vld [vmem:[%s1 + $0x24] sm:$0xf]
      %v353 = vld [vmem:[%s1 + $0x28] sm:$0xf]
      %v354 = vld [vmem:[%s1 + $0x2c] sm:$0xf]
      %v355 = vld [vmem:[%s1 + $0x30] sm:$0xf]
      %v356 = vld [vmem:[%s1 + $0x34] sm:$0xf]
      %v357 = vld [vmem:[%s1 + $0x38] sm:$0xf]
      %v358 = vld [vmem:[%s1 + $0x3c] sm:$0xf]
      %v359 = vld [vmem:[%s1 + $0x40] sm:$0xf]
      %v360 = vld [vmem:[%s1 + $0x44] sm:$0xf]
      %v361 = vld [vmem:[%s1 + $0x48] sm:$0xf]
      %v362 = vld [vmem:[%s1 + $0x4c] sm:$0xf]
      %v363 = vld [vmem:[%s1 + $0x50] sm:$0xf]
      %v364 = vld [vmem:[%s1 + $0x54] sm:$0xf]
      %v365 = vld [vmem:[%s1 + $0x58] sm:$0xf]
      %v366 = vld [vmem:[%s1 + $0x5c] sm:$0xf]
      %v367 = vld [vmem:[%s1 + $0x60] sm:$0xf]
      %v368 = vld [vmem:[%s1 + $0x64] sm:$0xf]
      %v369 = vld [vmem:[%s1 + $0x68] sm:$0xf]
      %v370 = vld [vmem:[%s1 + $0x6c] sm:$0xf]
      %v371 = vld [vmem:[%s1 + $0x70] sm:$0xf]
      %v372 = vld [vmem:[%s1 + $0x74] sm:$0xf]
      %v373 = vld [vmem:[%s1 + $0x78] sm:$0xf]
      %v374 = vld [vmem:[%s1 + $0x7c] sm:$0xf]
      %v375 = vld [vmem:[%s1 + $0x80] sm:$0xf]
      %v376 = vld [vmem:[%s1 + $0x84] sm:$0xf]
      %v377 = vld [vmem:[%s1 + $0x88] sm:$0xf]
      %v378 = vld [vmem:[%s1 + $0x8c] sm:$0xf]
      %v379 = vld [vmem:[%s2] sm:$0x1]
      %v381 = vlaneseq
      %v382 = vshrl.u32 %v381, 7
      %v383 = vsub.s32 0, %v382
      %v384 = vrot.slane %v379, %v383
      %v402 = vunpack.c.l.b16 %v327
      %v403 = vunpack.c.h.b16 %v327
      %v404 = vunpack.c.l.b16 %v328
      %v405 = vunpack.c.l.b16 %v329
      %v406 = vunpack.c.h.b16 %v329
      %v407 = vunpack.c.l.b16 %v330
      %v408 = vunpack.c.l.b16 %v331
      %v409 = vunpack.c.h.b16 %v331
      %v410 = vunpack.c.l.b16 %v332
      %v411 = vunpack.c.l.b16 %v333
      %v412 = vunpack.c.h.b16 %v333
      %v413 = vunpack.c.l.b16 %v334
      %v414 = vunpack.c.l.b16 %v335
      %v415 = vunpack.c.h.b16 %v335
      %v416 = vunpack.c.l.b16 %v336
      %v417 = vunpack.c.l.b16 %v337
      %v418 = vunpack.c.h.b16 %v337
      %v419 = vunpack.c.l.b16 %v338
      %v420 = vunpack.c.l.b16 %v339
      %v421 = vunpack.c.h.b16 %v339
      %v422 = vunpack.c.l.b16 %v340
      %v423 = vunpack.c.l.b16 %v341
      %v424 = vunpack.c.h.b16 %v341
      %v425 = vunpack.c.l.b16 %v342
      %v426 = vpack.c.b16 %v405, %v402
      %v427 = vpack.c.b16 %v406, %v403
      %v428 = vpack.c.b16 %v407, %v404
      %v429 = vpack.c.b16 %v411, %v408
      %v430 = vpack.c.b16 %v412, %v409
      %v431 = vpack.c.b16 %v413, %v410
      %v432 = vpack.c.b16 %v417, %v414
      %v433 = vpack.c.b16 %v418, %v415
      %v434 = vpack.c.b16 %v419, %v416
      %v435 = vpack.c.b16 %v423, %v420
      %v436 = vpack.c.b16 %v424, %v421
      %v437 = vpack.c.b16 %v425, %v422
      %v482 = vunpack.c.l.b16 %v343
      %v483 = vunpack.c.l.b16 %v344
      %v484 = vunpack.c.l.b16 %v345
      %v485 = vunpack.c.l.b16 %v346
      %v486 = vunpack.c.l.b16 %v347
      %v487 = vunpack.c.l.b16 %v348
      %v488 = vunpack.c.l.b16 %v349
      %v489 = vunpack.c.l.b16 %v350
      %v490 = vunpack.c.l.b16 %v351
      %v491 = vunpack.c.l.b16 %v352
      %v492 = vunpack.c.l.b16 %v353
      %v493 = vunpack.c.l.b16 %v354
      %v494 = vunpack.c.l.b16 %v355
      %v495 = vunpack.c.l.b16 %v356
      %v496 = vunpack.c.l.b16 %v357
      %v497 = vunpack.c.l.b16 %v358
      %v498 = vunpack.c.l.b16 %v359
      %v499 = vunpack.c.l.b16 %v360
      %v500 = vunpack.c.l.b16 %v361
      %v501 = vunpack.c.l.b16 %v362
      %v502 = vunpack.c.l.b16 %v363
      %v503 = vunpack.c.l.b16 %v364
      %v504 = vunpack.c.l.b16 %v365
      %v505 = vunpack.c.l.b16 %v366
      %v506 = vunpack.c.l.b16 %v367
      %v507 = vunpack.c.l.b16 %v368
      %v508 = vunpack.c.l.b16 %v369
      %v509 = vunpack.c.l.b16 %v370
      %v510 = vunpack.c.l.b16 %v371
      %v511 = vunpack.c.l.b16 %v372
      %v512 = vunpack.c.l.b16 %v373
      %v513 = vunpack.c.l.b16 %v374
      %v514 = vunpack.c.l.b16 %v375
      %v515 = vunpack.c.l.b16 %v376
      %v516 = vunpack.c.l.b16 %v377
      %v517 = vunpack.c.l.b16 %v378
      %v518 = vpack.c.b16 %v483, %v482
      %v519 = vpack.c.b16 %v485, %v484
      %v520 = vpack.c.b16 %v487, %v486
      %v521 = vpack.c.b16 %v489, %v488
      %v522 = vpack.c.b16 %v491, %v490
      %v523 = vpack.c.b16 %v493, %v492
      %v524 = vpack.c.b16 %v495, %v494
      %v525 = vpack.c.b16 %v497, %v496
      %v526 = vpack.c.b16 %v499, %v498
      %v527 = vpack.c.b16 %v501, %v500
      %v528 = vpack.c.b16 %v503, %v502
      %v529 = vpack.c.b16 %v505, %v504
      %v530 = vpack.c.b16 %v507, %v506
      %v531 = vpack.c.b16 %v509, %v508
      %v532 = vpack.c.b16 %v511, %v510
      %v533 = vpack.c.b16 %v513, %v512
      %v534 = vpack.c.b16 %v515, %v514
      %v535 = vpack.c.b16 %v517, %v516
      %vm554 = vcmask 261120
      %v556 = vsel %vm554, %v428, 0
      %v559 = vsel %vm554, %v431, 0
      %v562 = vsel %vm554, %v434, 0
      %v565 = vsel %vm554, %v437, 0
      %567 = vmatprep.subr.bf16.mxu0 0
      %568 = vmatpush1.bf16.msra.mxu0 %v518
      %569 = vmatprep.subr.bf16.mxu0 0
      %570 = vmatpush1.bf16.msra.mxu0 %v519
      %571 = vmatprep.subr.bf16.mxu0 0
      %572 = vmatpush1.bf16.msra.mxu0 %v520
      %573 = vmatprep.subr.bf16.mxu0 0
      %574 = vmatpush1.bf16.msra.mxu0 %v521
      %575 = vmatprep.subr.bf16.mxu0 0
      %576 = vmatpush1.bf16.msra.mxu0 %v522
      %577 = vmatprep.subr.bf16.mxu0 0
      %578 = vmatpush1.bf16.msra.mxu0 %v523
      %579 = vmatprep.subr.bf16.mxu0 0
      %580 = vmatpush1.bf16.msra.mxu0 %v524
      %581 = vmatprep.subr.bf16.mxu0 0
      %582 = vmatpush1.bf16.msra.mxu0 %v525
      %583 = vmatprep.subr.bf16.mxu0 0
      %584 = vmatpush1.bf16.msra.mxu0 %v526
      %585 = vmatprep.subr.bf16.mxu0 0
      %586 = vmatpush1.bf16.msra.mxu0 %v527
      %587 = vmatprep.subr.bf16.mxu0 0
      %588 = vmatpush1.bf16.msra.mxu0 %v528
      %589 = vmatprep.subr.bf16.mxu0 0
      %590 = vmatpush1.bf16.msra.mxu0 %v529
      %591 = vmatprep.subr.bf16.mxu0 0
      %592 = vmatpush1.bf16.msra.mxu0 %v530
      %593 = vmatprep.subr.bf16.mxu0 0
      %594 = vmatpush1.bf16.msra.mxu0 %v531
      %595 = vmatprep.subr.bf16.mxu0 0
      %596 = vmatpush1.bf16.msra.mxu0 %v532
      %597 = vmatprep.subr.bf16.mxu0 0
      %598 = vmatpush1.bf16.msra.mxu0 %v533
      %599 = vmatprep.mubr.bf16.mxu0 %v427
      %600 = vmatmul.mubr.bf16.gmra.mrb[0].mxu0 %v426
      %v601 = vpop.f32.mrb[0].mxu0
      %v602 = vadd.f32 %v384, %v601
      %v603 = vpop.f32.mrb[0].mxu0
      %v604 = vpop.f32.mrb[0].mxu0
      %v605 = vadd.f32 %v384, %v604
      %v606 = vpop.f32.mrb[0].mxu0
      %607 = vmatprep.mubr.bf16.mxu0 %v430
      %608 = vmatmul.mubr.bf16.gmra.mrb[0].mxu0 %v429
      %v609 = vpop.f32.mrb[0].mxu0
      %v610 = vadd.f32 %v384, %v609
      %v611 = vpop.f32.mrb[0].mxu0
      %v612 = vpop.f32.mrb[0].mxu0
      %v613 = vadd.f32 %v384, %v612
      %v614 = vpop.f32.mrb[0].mxu0
      %615 = vmatprep.mubr.bf16.mxu0 %v433
      %616 = vmatmul.mubr.bf16.gmra.mrb[0].mxu0 %v432
      %v617 = vpop.f32.mrb[0].mxu0
      %v618 = vadd.f32 %v384, %v617
      %v619 = vpop.f32.mrb[0].mxu0
      %v620 = vpop.f32.mrb[0].mxu0
      %v621 = vadd.f32 %v384, %v620
      %v622 = vpop.f32.mrb[0].mxu0
      %623 = vmatprep.mubr.bf16.mxu0 %v436
      %624 = vmatmul.mubr.bf16.gmra.mrb[0].mxu0 %v435
      %v625 = vpop.f32.mrb[0].mxu0
      %v626 = vadd.f32 %v384, %v625
      %v627 = vpop.f32.mrb[0].mxu0
      %v628 = vpop.f32.mrb[0].mxu0
      %v629 = vadd.f32 %v384, %v628
      %v630 = vpop.f32.mrb[0].mxu0
      %631 = vdwg.mxu0
      %632 = vmatprep.subr.bf16.mxu0 0
      %633 = vmatpush1.bf16.msra.mxu0 %v534
      %634 = vmatprep.subr.bf16.mxu0 0
      %635 = vmatpush1.bf16.msra.mxu0 %v535
      %636 = vmatprep.subr.bf16.mxu0 0
      %637 = vmatpush1.bf16.msra.mxu0 0
      %638 = vmatprep.subr.bf16.mxu0 0
      %639 = vmatpush1.bf16.msra.mxu0 0
      %640 = vmatprep.subr.bf16.mxu0 0
      %641 = vmatpush1.bf16.msra.mxu0 0
      %642 = vmatprep.subr.bf16.mxu0 0
      %643 = vmatpush1.bf16.msra.mxu0 0
      %644 = vmatprep.subr.bf16.mxu0 0
      %645 = vmatpush1.bf16.msra.mxu0 0
      %646 = vmatprep.subr.bf16.mxu0 0
      %647 = vmatpush1.bf16.msra.mxu0 0
      %648 = vmatprep.subr.bf16.mxu0 0
      %649 = vmatpush1.bf16.msra.mxu0 0
      %650 = vmatprep.subr.bf16.mxu0 0
      %651 = vmatpush1.bf16.msra.mxu0 0
      %652 = vmatprep.subr.bf16.mxu0 0
      %653 = vmatpush1.bf16.msra.mxu0 0
      %654 = vmatprep.subr.bf16.mxu0 0
      %655 = vmatpush1.bf16.msra.mxu0 0
      %656 = vmatprep.subr.bf16.mxu0 0
      %657 = vmatpush1.bf16.msra.mxu0 0
      %658 = vmatprep.subr.bf16.mxu0 0
      %659 = vmatpush1.bf16.msra.mxu0 0
      %660 = vmatprep.subr.bf16.mxu0 0
      %661 = vmatpush1.bf16.msra.mxu0 0
      %662 = vmatprep.subr.bf16.mxu0 0
      %663 = vmatpush1.bf16.msra.mxu0 0
      %664 = vmatprep.mubr.bf16.mxu0 0
      %665 = vmatmul.mubr.bf16.gmra.mrb[0].mxu0 %v556
      %v666 = vpop.f32.mrb[0].mxu0
      %v667 = vadd.f32 %v602, %v666
      %v668 = vpop.f32.mrb[0].mxu0
      %v669 = vpop.f32.mrb[0].mxu0
      %v670 = vadd.f32 %v605, %v669
      %v671 = vpop.f32.mrb[0].mxu0
      %672 = vmatprep.mubr.bf16.mxu0 0
      %673 = vmatmul.mubr.bf16.gmra.mrb[0].mxu0 %v559
      %v674 = vpop.f32.mrb[0].mxu0
      %v675 = vadd.f32 %v610, %v674
      %v676 = vpop.f32.mrb[0].mxu0
      %v677 = vpop.f32.mrb[0].mxu0
      %v678 = vadd.f32 %v613, %v677
      %v679 = vpop.f32.mrb[0].mxu0
      %680 = vmatprep.mubr.bf16.mxu0 0
      %681 = vmatmul.mubr.bf16.gmra.mrb[0].mxu0 %v562
      %v682 = vpop.f32.mrb[0].mxu0
      %v683 = vadd.f32 %v618, %v682
      %v684 = vpop.f32.mrb[0].mxu0
      %v685 = vpop.f32.mrb[0].mxu0
      %v686 = vadd.f32 %v621, %v685
      %v687 = vpop.f32.mrb[0].mxu0
      %688 = vmatprep.mubr.bf16.mxu0 0
      %689 = vmatmul.mubr.bf16.gmra.mrb[0].mxu0 %v565
      %v690 = vpop.f32.mrb[0].mxu0
      %v691 = vadd.f32 %v626, %v690
      %v692 = vpop.f32.mrb[0].mxu0
      %v693 = vpop.f32.mrb[0].mxu0
      %v694 = vadd.f32 %v629, %v693
      %v695 = vpop.f32.mrb[0].mxu0
      %696 = vdwg.mxu0
      %v697 = vmax.f32 %v667, 0.0
      %v698 = vmax.f32 %v670, 0.0
      %v699 = vmax.f32 %v675, 0.0
      %v700 = vmax.f32 %v678, 0.0
      %v701 = vmax.f32 %v683, 0.0
      %v702 = vmax.f32 %v686, 0.0
      %v703 = vmax.f32 %v691, 0.0
      %v704 = vmax.f32 %v694, 0.0
      %705 = vst [vmem:[%s318] sm:$0xff] %v697
      %706 = vst [vmem:[%s318 + $0x8] sm:$0xff] %v698
      %707 = vst [vmem:[%s318 + $0x10] sm:$0xff] %v699
      %708 = vst [vmem:[%s318 + $0x18] sm:$0xff] %v700
      %709 = vst [vmem:[%s318 + $0x20] sm:$0xff] %v701
      %710 = vst [vmem:[%s318 + $0x28] sm:$0xff] %v702
      %711 = vst [vmem:[%s318 + $0x30] sm:$0xff] %v703
      %712 = vst [vmem:[%s318 + $0x38] sm:$0xff] %v704
      %v713 = vpack.c.bf16 %v698, %v697
      %v714 = vpack.c.bf16 %v700, %v699
      %v715 = vpack.c.bf16 %v702, %v701
      %v716 = vpack.c.bf16 %v704, %v703
      %v717 = vld [vmem:[%s3] sm:$0xf]
      %v718 = vld [vmem:[%s3 + $0x4] sm:$0xf]
      %v719 = vld [vmem:[%s3 + $0x8] sm:$0xf]
      %v720 = vld [vmem:[%s3 + $0xc] sm:$0xf]
      %v721 = vld [vmem:[%s3 + $0x10] sm:$0xf]
      %v722 = vld [vmem:[%s3 + $0x14] sm:$0xf]
      %v723 = vld [vmem:[%s3 + $0x18] sm:$0xf]
      %v724 = vld [vmem:[%s3 + $0x1c] sm:$0xf]
      %v725 = vld [vmem:[%s3 + $0x20] sm:$0xf]
      %v726 = vld [vmem:[%s3 + $0x24] sm:$0xf]
      %v727 = vld [vmem:[%s3 + $0x28] sm:$0xf]
      %v728 = vld [vmem:[%s3 + $0x2c] sm:$0xf]
      %v729 = vld [vmem:[%s3 + $0x30] sm:$0xf]
      %v730 = vld [vmem:[%s3 + $0x34] sm:$0xf]
      %v731 = vld [vmem:[%s3 + $0x38] sm:$0xf]
      %v732 = vld [vmem:[%s3 + $0x3c] sm:$0xf]
      %v733 = vld [vmem:[%s4] sm:$0x1]
      %v735 = vlaneseq
      %v736 = vshrl.u32 %v735, 7
      %v737 = vsub.s32 0, %v736
      %v738 = vrot.slane %v733, %v737
      %v756 = vunpack.c.l.b16 %v717
      %v757 = vunpack.c.l.b16 %v718
      %v758 = vunpack.c.l.b16 %v719
      %v759 = vunpack.c.l.b16 %v720
      %v760 = vunpack.c.l.b16 %v721
      %v761 = vunpack.c.l.b16 %v722
      %v762 = vunpack.c.l.b16 %v723
      %v763 = vunpack.c.l.b16 %v724
      %v764 = vunpack.c.l.b16 %v725
      %v765 = vunpack.c.l.b16 %v726
      %v766 = vunpack.c.l.b16 %v727
      %v767 = vunpack.c.l.b16 %v728
      %v768 = vunpack.c.l.b16 %v729
      %v769 = vunpack.c.l.b16 %v730
      %v770 = vunpack.c.l.b16 %v731
      %v771 = vunpack.c.l.b16 %v732
      %v772 = vpack.c.b16 %v757, %v756
      %v773 = vpack.c.b16 %v759, %v758
      %v774 = vpack.c.b16 %v761, %v760
      %v775 = vpack.c.b16 %v763, %v762
      %v776 = vpack.c.b16 %v765, %v764
      %v777 = vpack.c.b16 %v767, %v766
      %v778 = vpack.c.b16 %v769, %v768
      %v779 = vpack.c.b16 %v771, %v770
      %788 = vmatprep.subr.bf16.mxu0 0
      %789 = vmatpush1.bf16.msra.mxu0 %v772
      %790 = vmatprep.subr.bf16.mxu0 0
      %791 = vmatpush1.bf16.msra.mxu0 %v773
      %792 = vmatprep.subr.bf16.mxu0 0
      %793 = vmatpush1.bf16.msra.mxu0 %v774
      %794 = vmatprep.subr.bf16.mxu0 0
      %795 = vmatpush1.bf16.msra.mxu0 %v775
      %796 = vmatprep.subr.bf16.mxu0 0
      %797 = vmatpush1.bf16.msra.mxu0 %v776
      %798 = vmatprep.subr.bf16.mxu0 0
      %799 = vmatpush1.bf16.msra.mxu0 %v777
      %800 = vmatprep.subr.bf16.mxu0 0
      %801 = vmatpush1.bf16.msra.mxu0 %v778
      %802 = vmatprep.subr.bf16.mxu0 0
      %803 = vmatpush1.bf16.msra.mxu0 %v779
      %804 = vmatprep.subr.bf16.mxu0 0
      %805 = vmatpush1.bf16.msra.mxu0 0
      %806 = vmatprep.subr.bf16.mxu0 0
      %807 = vmatpush1.bf16.msra.mxu0 0
      %808 = vmatprep.subr.bf16.mxu0 0
      %809 = vmatpush1.bf16.msra.mxu0 0
      %810 = vmatprep.subr.bf16.mxu0 0
      %811 = vmatpush1.bf16.msra.mxu0 0
      %812 = vmatprep.subr.bf16.mxu0 0
      %813 = vmatpush1.bf16.msra.mxu0 0
      %814 = vmatprep.subr.bf16.mxu0 0
      %815 = vmatpush1.bf16.msra.mxu0 0
      %816 = vmatprep.subr.bf16.mxu0 0
      %817 = vmatpush1.bf16.msra.mxu0 0
      %818 = vmatprep.subr.bf16.mxu0 0
      %819 = vmatpush1.bf16.msra.mxu0 0
      %820 = vmatprep.mubr.bf16.mxu0 0
      %821 = vmatmul.mubr.bf16.gmra.mrb[0].mxu0 %v713
      %v822 = vpop.f32.mrb[0].mxu0
      %v823 = vadd.f32 %v738, %v822
      %v824 = vpop.f32.mrb[0].mxu0
      %v825 = vpop.f32.mrb[0].mxu0
      %v826 = vadd.f32 %v738, %v825
      %v827 = vpop.f32.mrb[0].mxu0
      %828 = vmatprep.mubr.bf16.mxu0 0
      %829 = vmatmul.mubr.bf16.gmra.mrb[0].mxu0 %v714
      %v830 = vpop.f32.mrb[0].mxu0
      %v831 = vadd.f32 %v738, %v830
      %v832 = vpop.f32.mrb[0].mxu0
      %v833 = vpop.f32.mrb[0].mxu0
      %v834 = vadd.f32 %v738, %v833
      %v835 = vpop.f32.mrb[0].mxu0
      %836 = vmatprep.mubr.bf16.mxu0 0
      %837 = vmatmul.mubr.bf16.gmra.mrb[0].mxu0 %v715
      %v838 = vpop.f32.mrb[0].mxu0
      %v839 = vadd.f32 %v738, %v838
      %v840 = vpop.f32.mrb[0].mxu0
      %v841 = vpop.f32.mrb[0].mxu0
      %v842 = vadd.f32 %v738, %v841
      %v843 = vpop.f32.mrb[0].mxu0
      %844 = vmatprep.mubr.bf16.mxu0 0
      %845 = vmatmul.mubr.bf16.gmra.mrb[0].mxu0 %v716
      %v846 = vpop.f32.mrb[0].mxu0
      %v847 = vadd.f32 %v738, %v846
      %v848 = vpop.f32.mrb[0].mxu0
      %v849 = vpop.f32.mrb[0].mxu0
      %v850 = vadd.f32 %v738, %v849
      %v851 = vpop.f32.mrb[0].mxu0
      %852 = vdwg.mxu0
      %v853 = vmax.f32 %v823, 0.0
      %v854 = vmax.f32 %v826, 0.0
      %v855 = vmax.f32 %v831, 0.0
      %v856 = vmax.f32 %v834, 0.0
      %v857 = vmax.f32 %v839, 0.0
      %v858 = vmax.f32 %v842, 0.0
      %v859 = vmax.f32 %v847, 0.0
      %v860 = vmax.f32 %v850, 0.0
      %v861 = vpack.c.bf16 %v854, %v853
      %v862 = vpack.c.bf16 %v856, %v855
      %v863 = vpack.c.bf16 %v858, %v857
      %v864 = vpack.c.bf16 %v860, %v859
      %v865 = vld [vmem:[%s5] sm:$0xf]
      %v866 = vld [vmem:[%s5 + $0x4] sm:$0xf]
      %v867 = vld [vmem:[%s5 + $0x8] sm:$0xf]
      %v868 = vld [vmem:[%s5 + $0xc] sm:$0xf]
      %v869 = vld [vmem:[%s5 + $0x10] sm:$0xf]
      %v870 = vld [vmem:[%s5 + $0x14] sm:$0xf]
      %v871 = vld [vmem:[%s5 + $0x18] sm:$0xf]
      %v872 = vld [vmem:[%s5 + $0x1c] sm:$0xf]
      %v873 = vld [vmem:[%s5 + $0x20] sm:$0xf]
      %v874 = vld [vmem:[%s5 + $0x24] sm:$0xf]
      %v875 = vld [vmem:[%s5 + $0x28] sm:$0xf]
      %v876 = vld [vmem:[%s5 + $0x2c] sm:$0xf]
      %v877 = vld [vmem:[%s5 + $0x30] sm:$0xf]
      %v878 = vld [vmem:[%s5 + $0x34] sm:$0xf]
      %v879 = vld [vmem:[%s5 + $0x38] sm:$0xf]
      %v880 = vld [vmem:[%s5 + $0x3c] sm:$0xf]
      %v881 = vld [vmem:[%s6] sm:$0x1]
      %v883 = vlaneseq
      %v884 = vshrl.u32 %v883, 7
      %v885 = vsub.s32 0, %v884
      %v886 = vrot.slane %v881, %v885
      %v904 = vunpack.c.l.b16 %v865
      %v905 = vunpack.c.l.b16 %v866
      %v906 = vunpack.c.l.b16 %v867
      %v907 = vunpack.c.l.b16 %v868
      %v908 = vunpack.c.l.b16 %v869
      %v909 = vunpack.c.l.b16 %v870
      %v910 = vunpack.c.l.b16 %v871
      %v911 = vunpack.c.l.b16 %v872
      %v912 = vunpack.c.l.b16 %v873
      %v913 = vunpack.c.l.b16 %v874
      %v914 = vunpack.c.l.b16 %v875
      %v915 = vunpack.c.l.b16 %v876
      %v916 = vunpack.c.l.b16 %v877
      %v917 = vunpack.c.l.b16 %v878
      %v918 = vunpack.c.l.b16 %v879
      %v919 = vunpack.c.l.b16 %v880
      %v920 = vpack.c.b16 %v905, %v904
      %v921 = vpack.c.b16 %v907, %v906
      %v922 = vpack.c.b16 %v909, %v908
      %v923 = vpack.c.b16 %v911, %v910
      %v924 = vpack.c.b16 %v913, %v912
      %v925 = vpack.c.b16 %v915, %v914
      %v926 = vpack.c.b16 %v917, %v916
      %v927 = vpack.c.b16 %v919, %v918
      %936 = vmatprep.subr.bf16.mxu0 0
      %937 = vmatpush1.bf16.msra.mxu0 %v920
      %938 = vmatprep.subr.bf16.mxu0 0
      %939 = vmatpush1.bf16.msra.mxu0 %v921
      %940 = vmatprep.subr.bf16.mxu0 0
      %941 = vmatpush1.bf16.msra.mxu0 %v922
      %942 = vmatprep.subr.bf16.mxu0 0
      %943 = vmatpush1.bf16.msra.mxu0 %v923
      %944 = vmatprep.subr.bf16.mxu0 0
      %945 = vmatpush1.bf16.msra.mxu0 %v924
      %946 = vmatprep.subr.bf16.mxu0 0
      %947 = vmatpush1.bf16.msra.mxu0 %v925
      %948 = vmatprep.subr.bf16.mxu0 0
      %949 = vmatpush1.bf16.msra.mxu0 %v926
      %950 = vmatprep.subr.bf16.mxu0 0
      %951 = vmatpush1.bf16.msra.mxu0 %v927
      %952 = vmatprep.subr.bf16.mxu0 0
      %953 = vmatpush1.bf16.msra.mxu0 0
      %954 = vmatprep.subr.bf16.mxu0 0
      %955 = vmatpush1.bf16.msra.mxu0 0
      %956 = vmatprep.subr.bf16.mxu0 0
      %957 = vmatpush1.bf16.msra.mxu0 0
      %958 = vmatprep.subr.bf16.mxu0 0
      %959 = vmatpush1.bf16.msra.mxu0 0
      %960 = vmatprep.subr.bf16.mxu0 0
      %961 = vmatpush1.bf16.msra.mxu0 0
      %962 = vmatprep.subr.bf16.mxu0 0
      %963 = vmatpush1.bf16.msra.mxu0 0
      %964 = vmatprep.subr.bf16.mxu0 0
      %965 = vmatpush1.bf16.msra.mxu0 0
      %966 = vmatprep.subr.bf16.mxu0 0
      %967 = vmatpush1.bf16.msra.mxu0 0
      %968 = vmatprep.mubr.bf16.mxu0 0
      %969 = vmatmul.mubr.bf16.gmra.mrb[0].mxu0 %v861
      %v970 = vpop.f32.mrb[0].mxu0
      %v971 = vadd.f32 %v886, %v970
      %v972 = vpop.f32.mrb[0].mxu0
      %v973 = vpop.f32.mrb[0].mxu0
      %v974 = vadd.f32 %v886, %v973
      %v975 = vpop.f32.mrb[0].mxu0
      %976 = vmatprep.mubr.bf16.mxu0 0
      %977 = vmatmul.mubr.bf16.gmra.mrb[0].mxu0 %v862
      %v978 = vpop.f32.mrb[0].mxu0
      %v979 = vadd.f32 %v886, %v978
      %v980 = vpop.f32.mrb[0].mxu0
      %v981 = vpop.f32.mrb[0].mxu0
      %v982 = vadd.f32 %v886, %v981
      %v983 = vpop.f32.mrb[0].mxu0
      %984 = vmatprep.mubr.bf16.mxu0 0
      %985 = vmatmul.mubr.bf16.gmra.mrb[0].mxu0 %v863
      %v986 = vpop.f32.mrb[0].mxu0
      %v987 = vadd.f32 %v886, %v986
      %v988 = vpop.f32.mrb[0].mxu0
      %v989 = vpop.f32.mrb[0].mxu0
      %v990 = vadd.f32 %v886, %v989
      %v991 = vpop.f32.mrb[0].mxu0
      %992 = vmatprep.mubr.bf16.mxu0 0
      %993 = vmatmul.mubr.bf16.gmra.mrb[0].mxu0 %v864
      %v994 = vpop.f32.mrb[0].mxu0
      %v995 = vadd.f32 %v886, %v994
      %v996 = vpop.f32.mrb[0].mxu0
      %v997 = vpop.f32.mrb[0].mxu0
      %v998 = vadd.f32 %v886, %v997
      %v999 = vpop.f32.mrb[0].mxu0
      %1000 = vdwg.mxu0
      %1001 = vst [vmem:[%s324] sm:$0xff] %v971
      %1002 = vst [vmem:[%s324 + $0x8] sm:$0xff] %v974
      %1003 = vst [vmem:[%s324 + $0x10] sm:$0xff] %v979
      %1004 = vst [vmem:[%s324 + $0x18] sm:$0xff] %v982
      %1005 = vst [vmem:[%s324 + $0x20] sm:$0xff] %v987
      %1006 = vst [vmem:[%s324 + $0x28] sm:$0xff] %v990
      %1007 = vst [vmem:[%s324 + $0x30] sm:$0xff] %v995
      %1008 = vst [vmem:[%s324 + $0x38] sm:$0xff] %v998
      %s1009 = smul.u32 8, %s20
      %p1010 = scmp.lt.s32.totalorder %s1009, 15
      %s1011 = scalar_select %p1010, %s1009, 15
      %s1012 = smul.addr %s1011, 8
      %s1013 = scalar_lea.vmem %s7, %s1012
      %s1014 = smul.u32 8, %s20
      %p1015 = scmp.lt.s32.totalorder %s1014, 15
      %s1016 = scalar_select %p1015, %s1014, 15
      %s1017 = smul.addr %s1016, 8
      %s1018 = scalar_lea.vmem %s8, %s1017
      // Predicated region
      $region49: #{gla_forward.4} parent=47 // pred_check
        %p1019 = pneg %p190
      $region50: #{gla_forward.4} parent=47 // pred_check_branch
        %1021 = sbr.rel (%p1019) target = $region52
      $region51: #{gla_forward.4} parent=47 // pred_region
        %s1022 = smul.u32 8, %s20
      $region52: #{gla_forward.4} parent=47 // pred_fallthru
        _
      // Predicated region
      $region53: #{gla_forward.4} parent=47 // pred_check
        %p1023 = pneg %p216
      $region54: #{gla_forward.4} parent=47 // pred_check_branch
        %1025 = sbr.rel (%p1023) target = $region56
      $region55: #{gla_forward.4} parent=47 // pred_region
        %s1026 = smul.u32 8, %s20
      $region56: #{gla_forward.4} parent=47 // pred_fallthru
        _
    $region48: #{gla_forward.4} parent=5 // pred_fallthru
      _
    %p1027 = scmp.le.s32.totalorder 2, %s15
    // Predicated region
    $region57: #{gla_forward.4} parent=5 // pred_check
      %p1028 = pneg %p1027
    $region58: #{gla_forward.4} parent=5 // pred_check_branch
      %1030 = sbr.rel (%p1028) target = $region60
    $region59: #{gla_forward.4} parent=5 // pred_region
      %s1031 = ssub.s32 %s15, 2
      // Predicated region
      $region61: #{gla_forward.4} parent=59 // pred_check
        %p1032 = pneg %p196
      $region62: #{gla_forward.4} parent=59 // pred_check_branch
        %1034 = sbr.rel (%p1032) target = $region64
      $region63: #{gla_forward.4} parent=59 // pred_region
        %s1035 = smul.u32 8, %s21
        %p1036 = scmp.lt.s32.totalorder %s1035, 15
        %s1037 = scalar_select %p1036, %s1035, 15
        %s1038 = smul.addr %s1037, 8
        %s1039 = scalar_lea.vmem %s7, %s1038
      $region64: #{gla_forward.4} parent=59 // pred_fallthru
        _
      // Predicated region
      $region65: #{gla_forward.4} parent=59 // pred_check
        %p1040 = pneg %p222
      $region66: #{gla_forward.4} parent=59 // pred_check_branch
        %1042 = sbr.rel (%p1040) target = $region68
      $region67: #{gla_forward.4} parent=59 // pred_region
        %s1043 = smul.u32 8, %s21
        %p1044 = scmp.lt.s32.totalorder %s1043, 15
        %s1045 = scalar_select %p1044, %s1043, 15
        %s1046 = smul.addr %s1045, 8
        %s1047 = scalar_lea.vmem %s8, %s1046
      $region68: #{gla_forward.4} parent=59 // pred_fallthru
        _
    $region60: #{gla_forward.4} parent=5 // pred_fallthru
      _
  $region6: #{gla_forward.4} parent=0 // loop_footer
    %s19 = sadd.s32 1, %s15
  $region7: #{gla_forward.4} parent=0 // loop_footer_branch
    %14 = sbr.rel target = $region3
  $region8: #{gla_forward.4} parent=0 // loop_exit
    _

// kernel: squeeze.13
$region0: #{squeeze.13}
  %s0 = inlined_call_operand.vmem [shape: f32[4,4,16], index: 0, kind: input, shape index: {}]
  %s1 = inlined_call_operand.vmem [shape: f32[2,128], index: 1, kind: output, shape index: {}]
  $region1: #{squeeze.13} parent=0
    #allocation0 [shape = 'u8[4096]{0}', space=vmem, size = 0x1000, scoped, tag = 'scoped mem for output reshape']
    #allocation1 [shape = 'u8[16384]{0}', space=vmem, size = 0x4000, scoped, tag = 'scoped mem for input reshape']
    %s3 = sshllo.u32 0, 4
    %s4 = smul.addr 4, 3
    %s5 = scalar_lea.vmem %s0, %s4
    %v6 = vld [vmem:[%s5] sm:%s3]
    %s7 = scalar_lea.vmem [#allocation1], 24
    %8 = vst [vmem:[%s7] sm:%s3] %v6
    %s9 = smul.addr 4, 2
    %s10 = scalar_lea.vmem %s0, %s9
    %v11 = vld [vmem:[%s10] sm:%s3]
    %s12 = scalar_lea.vmem [#allocation1], 16
    %13 = vst [vmem:[%s12] sm:%s3] %v11
    %s14 = scalar_lea.vmem %s0, 4
    %v15 = vld [vmem:[%s14] sm:%s3]
    %s16 = scalar_lea.vmem [#allocation1], 8
    %17 = vst [vmem:[%s16] sm:%s3] %v15
    %v18 = vld [vmem:[%s0] sm:%s3]
    %19 = vst [vmem:[#allocation1] sm:%s3] %v18
    %s20 = smov 3
    %v21 = vld [vmem:[#allocation1] ss:$16 sm:%s20]
    %vm22 = vcmask 130048
    %23 = vst.msk [vmem:[#allocation0] sm:$0x3] %vm22, %v21
    %s24 = scalar_lea.vmem [#allocation1], 11
    %s25 = smov 3
    %v26 = vld [vmem:[%s24] ss:$16 sm:%s25]
    %27 = vrot.lane.b32.xlu0 %v26, 112
    %v28 = vpop.permute.xlu0 %27
    %vm29 = vcmask 1048448
    %30 = vst.msk [vmem:[#allocation0] sm:$0x3] %vm29, %v28
    %s31 = scalar_lea.vmem [#allocation1], 10
    %s32 = smov 3
    %v33 = vld [vmem:[%s31] ss:$16 sm:%s32]
    %34 = vrot.lane.b32.xlu0 %v33, 96
    %v35 = vpop.permute.xlu0 %34
    %vm36 = vcmask 917248
    %37 = vst.msk [vmem:[#allocation0] sm:$0x3] %vm36, %v35
    %s38 = scalar_lea.vmem [#allocation1], 9
    %s39 = smov 3
    %v40 = vld [vmem:[%s38] ss:$16 sm:%s39]
    %41 = vrot.lane.b32.xlu0 %v40, 80
    %v42 = vpop.permute.xlu0 %41
    %vm43 = vcmask 786048
    %44 = vst.msk [vmem:[#allocation0] sm:$0x3] %vm43, %v42
    %s45 = scalar_lea.vmem [#allocation1], 8
    %s46 = smov 3
    %v47 = vld [vmem:[%s45] ss:$16 sm:%s46]
    %48 = vrot.lane.b32.xlu0 %v47, 64
    %v49 = vpop.permute.xlu0 %48
    %vm50 = vcmask 654848
    %51 = vst.msk [vmem:[#allocation0] sm:$0x3] %vm50, %v49
    %s52 = scalar_lea.vmem [#allocation1], 3
    %s53 = smov 3
    %v54 = vld [vmem:[%s52] ss:$16 sm:%s53]
    %55 = vrot.lane.b32.xlu0 %v54, 48
    %v56 = vpop.permute.xlu0 %55
    %vm57 = vcmask 523648
    %58 = vst.msk [vmem:[#allocation0] sm:$0x3] %vm57, %v56
    %s59 = scalar_lea.vmem [#allocation1], 2
    %s60 = smov 3
    %v61 = vld [vmem:[%s59] ss:$16 sm:%s60]
    %62 = vrot.lane.b32.xlu0 %v61, 32
    %v63 = vpop.permute.xlu0 %62
    %vm64 = vcmask 392448
    %65 = vst.msk [vmem:[#allocation0] sm:$0x3] %vm64, %v63
    %s66 = scalar_lea.vmem [#allocation1], 1
    %s67 = smov 3
    %v68 = vld [vmem:[%s66] ss:$16 sm:%s67]
    %69 = vrot.lane.b32.xlu0 %v68, 16
    %v70 = vpop.permute.xlu0 %69
    %vm71 = vcmask 261248
    %72 = vst.msk [vmem:[#allocation0] sm:$0x3] %vm71, %v70
    %s74 = sshllo.u32 0, 2
    %v76 = vld [vmem:[#allocation0] sm:%s74]
    %s77 = sshllo.u32 0, 2
    %78 = vst [vmem:[%s1] sm:%s77] %v76

// kernel: gla_forward.5
$region0: #{gla_forward.5}
  #allocation0 [shape = 'u32[]', space=smem, size = 0x4, offset = 0x4, fixed_abs, tag = 'smem constant byte address 0x4 - core index']
  #allocation1 [shape = 'u32[144,128]{1,0:T(1,128)}', space=vmem, size = 0x12000, scoped, tag = 'internal scratch']
  %s0 = inlined_call_operand.vmem [shape: f32[4,4,16,8], index: 0, kind: input, shape index: {}]
  %s1 = inlined_call_operand.vmem [shape: f32[4,4,16,32], index: 1, kind: input, shape index: {}]
  %s2 = inlined_call_operand.vmem [shape: f32[4,4,16,16], index: 2, kind: input, shape index: {}]
  %s3 = inlined_call_operand.vmem [shape: f32[4,4,16,128], index: 3, kind: output, shape index: {}]
  %s4 = sld [smem:[#allocation0]]
  $region45: #{gla_forward.5} parent=0
    _
  %s6 = ssub.s32 1, %s4
  %s7 = scalar_select 0, %s6, %s4
  loop: start=0, step=1, limit=4
  $region2: #{gla_forward.5} parent=0 // loop_pre_header
    _
  $region3: #{gla_forward.5} parent=0 // loop_header
    %s9 = sphi 0, %s13
    %p10 = scmp.ge.s32.totalorder %s9, 4
    %s19 = sphi 0, %s21
    %s22 = sphi 0, %s19
    %s23 = sphi 0, %s22
    %s39 = sphi 0, %s23
    %s45 = sphi 0, %s47
    %s48 = sphi 0, %s45
    %s49 = sphi 0, %s48
    %s65 = sphi 0, %s49
    %s71 = sphi 0, %s73
    %s74 = sphi 0, %s71
    %s75 = sphi 0, %s74
    %s91 = sphi 0, %s75
    %s97 = sphi 0, %s99
    %s100 = sphi 0, %s97
    %s101 = sphi 0, %s100
    %s117 = sphi 0, %s101
  $region4: #{gla_forward.5} parent=0 // loop_header_branch
    %12 = sbr.rel (%p10) target = $region8
  $region5: #{gla_forward.5} parent=0 // loop_body
    %s14 = ssub.s32 %s9, 1
    %s15 = ssub.s32 %s9, 2
    %s16 = sadd.s32 %s9, 1
    %s17 = ssub.s32 %s9, %s16
    %p18 = scmp.eq.s32.totalorder %s17, 0
    %s20 = sadd.s32 %s19, 1
    %s21 = scalar_select %p18, %s19, %s20
    %p24 = pneg %p18
    %p25 = scmp.eq.s32.totalorder %s9, 1
    %p26 = por %p24, %p25
    %p27 = scmp.ne.s32.totalorder %s19, %s22
    %p28 = scmp.eq.s32.totalorder %s9, 0
    %p29 = por %p27, %p28
    %p30 = scmp.ne.s32.totalorder %s19, %s22
    %p31 = scmp.eq.s32.totalorder %s14, 1
    %p32 = por %p30, %p31
    %p33 = scmp.ne.s32.totalorder %s22, %s23
    %p34 = scmp.eq.s32.totalorder %s14, 0
    %p35 = por %p33, %p34
    %p36 = scmp.ne.s32.totalorder %s22, %s23
    %p37 = scmp.eq.s32.totalorder %s15, 1
    %p38 = por %p36, %p37
    %p40 = scmp.ne.s32.totalorder %s23, %s39
    %p41 = scmp.eq.s32.totalorder %s15, 0
    %p42 = por %p40, %p41
    %s43 = ssub.s32 %s9, %s16
    %p44 = scmp.eq.s32.totalorder %s43, 0
    %s46 = sadd.s32 %s45, 1
    %s47 = scalar_select %p44, %s45, %s46
    %p50 = pneg %p44
    %p51 = scmp.eq.s32.totalorder %s9, 1
    %p52 = por %p50, %p51
    %p53 = scmp.ne.s32.totalorder %s45, %s48
    %p54 = scmp.eq.s32.totalorder %s9, 0
    %p55 = por %p53, %p54
    %p56 = scmp.ne.s32.totalorder %s45, %s48
    %p57 = scmp.eq.s32.totalorder %s14, 1
    %p58 = por %p56, %p57
    %p59 = scmp.ne.s32.totalorder %s48, %s49
    %p60 = scmp.eq.s32.totalorder %s14, 0
    %p61 = por %p59, %p60
    %p62 = scmp.ne.s32.totalorder %s48, %s49
    %p63 = scmp.eq.s32.totalorder %s15, 1
    %p64 = por %p62, %p63
    %p66 = scmp.ne.s32.totalorder %s49, %s65
    %p67 = scmp.eq.s32.totalorder %s15, 0
    %p68 = por %p66, %p67
    %s69 = ssub.s32 %s9, %s16
    %p70 = scmp.eq.s32.totalorder %s69, 0
    %s72 = sadd.s32 %s71, 1
    %s73 = scalar_select %p70, %s71, %s72
    %p76 = pneg %p70
    %p77 = scmp.eq.s32.totalorder %s9, 1
    %p78 = por %p76, %p77
    %p79 = scmp.ne.s32.totalorder %s71, %s74
    %p80 = scmp.eq.s32.totalorder %s9, 0
    %p81 = por %p79, %p80
    %p82 = scmp.ne.s32.totalorder %s71, %s74
    %p83 = scmp.eq.s32.totalorder %s14, 1
    %p84 = por %p82, %p83
    %p85 = scmp.ne.s32.totalorder %s74, %s75
    %p86 = scmp.eq.s32.totalorder %s14, 0
    %p87 = por %p85, %p86
    %p88 = scmp.ne.s32.totalorder %s74, %s75
    %p89 = scmp.eq.s32.totalorder %s15, 1
    %p90 = por %p88, %p89
    %p92 = scmp.ne.s32.totalorder %s75, %s91
    %p93 = scmp.eq.s32.totalorder %s15, 0
    %p94 = por %p92, %p93
    %s95 = ssub.s32 %s9, %s16
    %p96 = scmp.eq.s32.totalorder %s95, 0
    %s98 = sadd.s32 %s97, 1
    %s99 = scalar_select %p96, %s97, %s98
    %p102 = pneg %p96
    %p103 = scmp.eq.s32.totalorder %s9, 1
    %p104 = por %p102, %p103
    %p105 = scmp.ne.s32.totalorder %s97, %s100
    %p106 = scmp.eq.s32.totalorder %s9, 0
    %p107 = por %p105, %p106
    %p108 = scmp.ne.s32.totalorder %s97, %s100
    %p109 = scmp.eq.s32.totalorder %s14, 1
    %p110 = por %p108, %p109
    %p111 = scmp.ne.s32.totalorder %s100, %s101
    %p112 = scmp.eq.s32.totalorder %s14, 0
    %p113 = por %p111, %p112
    %p114 = scmp.ne.s32.totalorder %s100, %s101
    %p115 = scmp.eq.s32.totalorder %s15, 1
    %p116 = por %p114, %p115
    %p118 = scmp.ne.s32.totalorder %s101, %s117
    %p119 = scmp.eq.s32.totalorder %s15, 0
    %p120 = por %p118, %p119
    %p121 = scmp.le.s32.totalorder 1, %s9
    %p122 = scmp.lt.s32.totalorder %s9, 3
    %p123 = pnand %p121, %p122
    %p124 = pneg %p123
    // Predicated region
    $region9: #{gla_forward.5} parent=5 // pred_check
      _
    $region10: #{gla_forward.5} parent=5 // pred_check_branch
      %126 = sbr.rel (%p123) target = $region12
    $region11: #{gla_forward.5} parent=5 // pred_region
      %s127 = ssub.s32 %s9, 1
    $region12: #{gla_forward.5} parent=5 // pred_fallthru
      _
    %p128 = scmp.lt.s32.totalorder %s9, 2
    // Predicated region
    $region13: #{gla_forward.5} parent=5 // pred_check
      %p129 = pneg %p128
    $region14: #{gla_forward.5} parent=5 // pred_check_branch
      %131 = sbr.rel (%p129) target = $region16
    $region15: #{gla_forward.5} parent=5 // pred_region
      // Predicated region
      $region17: #{gla_forward.5} parent=15 // pred_check
        %p132 = pneg %p29
      $region18: #{gla_forward.5} parent=15 // pred_check_branch
        %134 = sbr.rel (%p132) target = $region20
      $region19: #{gla_forward.5} parent=15 // pred_region
        %s135 = smul.u32 2, %s9
        %p136 = scmp.lt.s32.totalorder %s135, 3
        %s137 = scalar_select %p136, %s135, 3
        %s138 = smul.addr %s137, 8
        %s139 = smul.addr %s138, 8
        %s140 = scalar_lea.vmem %s0, %s139
        %s141 = smul.u32 2, %s9
      $region20: #{gla_forward.5} parent=15 // pred_fallthru
        _
      // Predicated region
      $region21: #{gla_forward.5} parent=15 // pred_check
        %p142 = pneg %p55
      $region22: #{gla_forward.5} parent=15 // pred_check_branch
        %144 = sbr.rel (%p142) target = $region24
      $region23: #{gla_forward.5} parent=15 // pred_region
        %s145 = smul.u32 2, %s9
        %p146 = scmp.lt.s32.totalorder %s145, 3
        %s147 = scalar_select %p146, %s145, 3
        %s148 = smul.addr %s147, 8
        %s149 = smul.addr %s148, 8
        %s150 = scalar_lea.vmem %s1, %s149
        %s151 = smul.u32 2, %s9
      $region24: #{gla_forward.5} parent=15 // pred_fallthru
        _
      // Predicated region
      $region25: #{gla_forward.5} parent=15 // pred_check
        %p152 = pneg %p81
      $region26: #{gla_forward.5} parent=15 // pred_check_branch
        %154 = sbr.rel (%p152) target = $region28
      $region27: #{gla_forward.5} parent=15 // pred_region
        %s155 = smul.u32 2, %s9
        %p156 = scmp.lt.s32.totalorder %s155, 3
        %s157 = scalar_select %p156, %s155, 3
        %s158 = smul.addr %s157, 8
        %s159 = smul.addr %s158, 8
        %s160 = scalar_lea.vmem %s2, %s159
        %s161 = smul.u32 2, %s9
      $region28: #{gla_forward.5} parent=15 // pred_fallthru
        _
    $region16: #{gla_forward.5} parent=5 // pred_fallthru
      _
    %p162 = scmp.le.s32.totalorder 1, %s9
    %p163 = scmp.lt.s32.totalorder %s9, 3
    %p164 = pnand %p162, %p163
    %p165 = pneg %p164
    // Predicated region
    $region29: #{gla_forward.5} parent=5 // pred_check
      _
    $region30: #{gla_forward.5} parent=5 // pred_check_branch
      %167 = sbr.rel (%p164) target = $region32
    $region31: #{gla_forward.5} parent=5 // pred_region
      %s168 = ssub.s32 %s9, 1
      %s169 = smul.u32 2, %s14
      %p170 = scmp.lt.s32.totalorder %s169, 3
      %s171 = scalar_select %p170, %s169, 3
      %s172 = smul.addr %s171, 8
      %s173 = smul.addr %s172, 8
      %s174 = scalar_lea.vmem %s0, %s173
      %p175 = pneg %p35
      %p176 = pneg %p32
      %s177 = smul.u32 2, %s14
      %p178 = scmp.lt.s32.totalorder %s177, 3
      %s179 = scalar_select %p178, %s177, 3
      %s180 = smul.addr %s179, 8
      %s181 = smul.addr %s180, 8
      %s182 = scalar_lea.vmem %s1, %s181
      %p183 = pneg %p61
      %p184 = pneg %p58
      %s185 = smul.u32 2, %s14
      %p186 = scmp.lt.s32.totalorder %s185, 3
      %s187 = scalar_select %p186, %s185, 3
      %s188 = smul.addr %s187, 8
      %s189 = smul.addr %s188, 8
      %s190 = scalar_lea.vmem %s2, %s189
      %p191 = pneg %p87
      %p192 = pneg %p84
      %p193 = pneg %p113
      %p194 = pneg %p110
      %s195 = smul.u32 2, %s14
      %p196 = scmp.lt.s32.totalorder %s195, 3
      %s197 = scalar_select %p196, %s195, 3
      %s198 = smul.addr %s197, 8
      %s199 = smul.addr %s198, 8
      %s200 = scalar_lea.vmem %s3, %s199
      %s201 = smul.u32 2, %s14
      %p202 = scmp.lt.s32.totalorder %s201, 3
      %s203 = scalar_select %p202, %s201, 3
      %s204 = smul.addr %s203, 8
      %s205 = smul.addr %s204, 8
      %s206 = scalar_lea.vmem %s0, %s205
      %s207 = smul.u32 2, %s14
      %s208 = smul.u32 2, %s14
      %p209 = scmp.lt.s32.totalorder %s208, 3
      %s210 = scalar_select %p209, %s208, 3
      %s211 = smul.addr %s210, 8
      %s212 = smul.addr %s211, 8
      %s213 = scalar_lea.vmem %s1, %s212
      %s214 = smul.u32 2, %s14
      %s215 = smul.u32 2, %s14
      %p216 = scmp.lt.s32.totalorder %s215, 3
      %s217 = scalar_select %p216, %s215, 3
      %s218 = smul.addr %s217, 8
      %s219 = smul.addr %s218, 8
      %s220 = scalar_lea.vmem %s2, %s219
      %s221 = smul.u32 2, %s14
      %s222 = smul.u32 2, %s14
      %p223 = scmp.lt.s32.totalorder %s222, 3
      %s224 = scalar_select %p223, %s222, 3
      %s225 = smul.addr %s224, 8
      %s226 = smul.addr %s225, 8
      %s227 = scalar_lea.vmem %s3, %s226
      %s228 = smul.u32 2, %s14
      %v230 = vld [vmem:[%s206] sm:$0xff]
      %v231 = vld [vmem:[%s206 + $0x8] sm:$0xff]
      %v232 = vld [vmem:[%s206 + $0x10] sm:$0xff]
      %v233 = vld [vmem:[%s206 + $0x18] sm:$0xff]
      %v234 = vld [vmem:[%s206 + $0x20] sm:$0xff]
      %v235 = vld [vmem:[%s206 + $0x28] sm:$0xff]
      %v236 = vld [vmem:[%s206 + $0x30] sm:$0xff]
      %v237 = vld [vmem:[%s206 + $0x38] sm:$0xff]
      %v238 = vld [vmem:[%s206 + $0x40] sm:$0xff]
      %v239 = vld [vmem:[%s206 + $0x48] sm:$0xff]
      %v240 = vld [vmem:[%s206 + $0x50] sm:$0xff]
      %v241 = vld [vmem:[%s206 + $0x58] sm:$0xff]
      %v242 = vld [vmem:[%s206 + $0x60] sm:$0xff]
      %v243 = vld [vmem:[%s206 + $0x68] sm:$0xff]
      %v244 = vld [vmem:[%s206 + $0x70] sm:$0xff]
      %v245 = vld [vmem:[%s206 + $0x78] sm:$0xff]
      %v246 = vld [vmem:[%s213] sm:$0xff]
      %v247 = vld [vmem:[%s213 + $0x8] sm:$0xff]
      %v248 = vld [vmem:[%s213 + $0x10] sm:$0xff]
      %v249 = vld [vmem:[%s213 + $0x18] sm:$0xff]
      %v250 = vld [vmem:[%s213 + $0x20] sm:$0xff]
      %v251 = vld [vmem:[%s213 + $0x28] sm:$0xff]
      %v252 = vld [vmem:[%s213 + $0x30] sm:$0xff]
      %v253 = vld [vmem:[%s213 + $0x38] sm:$0xff]
      %v254 = vld [vmem:[%s213 + $0x40] sm:$0xff]
      %v255 = vld [vmem:[%s213 + $0x48] sm:$0xff]
      %v256 = vld [vmem:[%s213 + $0x50] sm:$0xff]
      %v257 = vld [vmem:[%s213 + $0x58] sm:$0xff]
      %v258 = vld [vmem:[%s213 + $0x60] sm:$0xff]
      %v259 = vld [vmem:[%s213 + $0x68] sm:$0xff]
      %v260 = vld [vmem:[%s213 + $0x70] sm:$0xff]
      %v261 = vld [vmem:[%s213 + $0x78] sm:$0xff]
      %v262 = vld [vmem:[%s220] sm:$0xff]
      %v263 = vld [vmem:[%s220 + $0x8] sm:$0xff]
      %v264 = vld [vmem:[%s220 + $0x10] sm:$0xff]
      %v265 = vld [vmem:[%s220 + $0x18] sm:$0xff]
      %v266 = vld [vmem:[%s220 + $0x20] sm:$0xff]
      %v267 = vld [vmem:[%s220 + $0x28] sm:$0xff]
      %v268 = vld [vmem:[%s220 + $0x30] sm:$0xff]
      %v269 = vld [vmem:[%s220 + $0x38] sm:$0xff]
      %v270 = vld [vmem:[%s220 + $0x40] sm:$0xff]
      %v271 = vld [vmem:[%s220 + $0x48] sm:$0xff]
      %v272 = vld [vmem:[%s220 + $0x50] sm:$0xff]
      %v273 = vld [vmem:[%s220 + $0x58] sm:$0xff]
      %v274 = vld [vmem:[%s220 + $0x60] sm:$0xff]
      %v275 = vld [vmem:[%s220 + $0x68] sm:$0xff]
      %v276 = vld [vmem:[%s220 + $0x70] sm:$0xff]
      %v277 = vld [vmem:[%s220 + $0x78] sm:$0xff]
      %v278 = vmul.f32 %v230, %v230
      %v279 = vmul.f32 %v231, %v231
      %v280 = vmul.f32 %v232, %v232
      %v281 = vmul.f32 %v233, %v233
      %v282 = vmul.f32 %v234, %v234
      %v283 = vmul.f32 %v235, %v235
      %v284 = vmul.f32 %v236, %v236
      %v285 = vmul.f32 %v237, %v237
      %v286 = vmul.f32 %v238, %v238
      %v287 = vmul.f32 %v239, %v239
      %v288 = vmul.f32 %v240, %v240
      %v289 = vmul.f32 %v241, %v241
      %v290 = vmul.f32 %v242, %v242
      %v291 = vmul.f32 %v243, %v243
      %v292 = vmul.f32 %v244, %v244
      %v293 = vmul.f32 %v245, %v245
      %vm294 = vcmask 64512
      %v295 = vsel %vm294, %v278, 0.0
      %296 = vadd.xlane.f32.xlu0 %v295
      %v297 = vpop.xlane.xlu0 %296
      %v298 = vsel %vm294, %v279, 0.0
      %299 = vadd.xlane.f32.xlu0 %v298
      %v300 = vpop.xlane.xlu0 %299
      %v301 = vsel %vm294, %v280, 0.0
      %302 = vadd.xlane.f32.xlu0 %v301
      %v303 = vpop.xlane.xlu0 %302
      %v304 = vsel %vm294, %v281, 0.0
      %305 = vadd.xlane.f32.xlu0 %v304
      %v306 = vpop.xlane.xlu0 %305
      %v307 = vsel %vm294, %v282, 0.0
      %308 = vadd.xlane.f32.xlu0 %v307
      %v309 = vpop.xlane.xlu0 %308
      %v310 = vsel %vm294, %v283, 0.0
      %311 = vadd.xlane.f32.xlu0 %v310
      %v312 = vpop.xlane.xlu0 %311
      %v313 = vsel %vm294, %v284, 0.0
      %314 = vadd.xlane.f32.xlu0 %v313
      %v315 = vpop.xlane.xlu0 %314
      %v316 = vsel %vm294, %v285, 0.0
      %317 = vadd.xlane.f32.xlu0 %v316
      %v318 = vpop.xlane.xlu0 %317
      %v319 = vsel %vm294, %v286, 0.0
      %320 = vadd.xlane.f32.xlu0 %v319
      %v321 = vpop.xlane.xlu0 %320
      %v322 = vsel %vm294, %v287, 0.0
      %323 = vadd.xlane.f32.xlu0 %v322
      %v324 = vpop.xlane.xlu0 %323
      %v325 = vsel %vm294, %v288, 0.0
      %326 = vadd.xlane.f32.xlu0 %v325
      %v327 = vpop.xlane.xlu0 %326
      %v328 = vsel %vm294, %v289, 0.0
      %329 = vadd.xlane.f32.xlu0 %v328
      %v330 = vpop.xlane.xlu0 %329
      %v331 = vsel %vm294, %v290, 0.0
      %332 = vadd.xlane.f32.xlu0 %v331
      %v333 = vpop.xlane.xlu0 %332
      %v334 = vsel %vm294, %v291, 0.0
      %335 = vadd.xlane.f32.xlu0 %v334
      %v336 = vpop.xlane.xlu0 %335
      %v337 = vsel %vm294, %v292, 0.0
      %338 = vadd.xlane.f32.xlu0 %v337
      %v339 = vpop.xlane.xlu0 %338
      %v340 = vsel %vm294, %v293, 0.0
      %341 = vadd.xlane.f32.xlu0 %v340
      %v342 = vpop.xlane.xlu0 %341
      %v343 = vmax.f32 %v297, 2.5e-09
      %v344 = vmax.f32 %v300, 2.5e-09
      %v345 = vmax.f32 %v303, 2.5e-09
      %v346 = vmax.f32 %v306, 2.5e-09
      %v347 = vmax.f32 %v309, 2.5e-09
      %v348 = vmax.f32 %v312, 2.5e-09
      %v349 = vmax.f32 %v315, 2.5e-09
      %v350 = vmax.f32 %v318, 2.5e-09
      %v351 = vmax.f32 %v321, 2.5e-09
      %v352 = vmax.f32 %v324, 2.5e-09
      %v353 = vmax.f32 %v327, 2.5e-09
      %v354 = vmax.f32 %v330, 2.5e-09
      %v355 = vmax.f32 %v333, 2.5e-09
      %v356 = vmax.f32 %v336, 2.5e-09
      %v357 = vmax.f32 %v339, 2.5e-09
      %v358 = vmax.f32 %v342, 2.5e-09
      %v359 = vrsqrt.pop %v343
      %v360 = vrsqrt.pop %v344
      %v361 = vrsqrt.pop %v345
      %v362 = vrsqrt.pop %v346
      %v363 = vrsqrt.pop %v347
      %v364 = vrsqrt.pop %v348
      %v365 = vrsqrt.pop %v349
      %v366 = vrsqrt.pop %v350
      %v367 = vrsqrt.pop %v351
      %v368 = vrsqrt.pop %v352
      %v369 = vrsqrt.pop %v353
      %v370 = vrsqrt.pop %v354
      %v371 = vrsqrt.pop %v355
      %v372 = vrsqrt.pop %v356
      %v373 = vrsqrt.pop %v357
      %v374 = vrsqrt.pop %v358
      %v375 = vmul.f32 %v230, %v359
      %v376 = vmul.f32 %v231, %v360
      %v377 = vmul.f32 %v232, %v361
      %v378 = vmul.f32 %v233, %v362
      %v379 = vmul.f32 %v234, %v363
      %v380 = vmul.f32 %v235, %v364
      %v381 = vmul.f32 %v236, %v365
      %v382 = vmul.f32 %v237, %v366
      %v383 = vmul.f32 %v238, %v367
      %v384 = vmul.f32 %v239, %v368
      %v385 = vmul.f32 %v240, %v369
      %v386 = vmul.f32 %v241, %v370
      %v387 = vmul.f32 %v242, %v371
      %v388 = vmul.f32 %v243, %v372
      %v389 = vmul.f32 %v244, %v373
      %v390 = vmul.f32 %v245, %v374
      %407 = vrot.lane.b32.xlu0 %v268, 16
      %v408 = vpop.permute.xlu0 %407
      %409 = vrot.lane.b32.xlu0 %v269, 16
      %v410 = vpop.permute.xlu0 %409
      %411 = vrot.lane.b32.xlu0 %v262, 16
      %v412 = vpop.permute.xlu0 %411
      %413 = vrot.lane.b32.xlu0 %v263, 16
      %v414 = vpop.permute.xlu0 %413
      %415 = vrot.lane.b32.xlu0 %v264, 16
      %v416 = vpop.permute.xlu0 %415
      %417 = vrot.lane.b32.xlu0 %v265, 16
      %v418 = vpop.permute.xlu0 %417
      %419 = vrot.lane.b32.xlu0 %v266, 16
      %v420 = vpop.permute.xlu0 %419
      %421 = vrot.lane.b32.xlu0 %v267, 16
      %v422 = vpop.permute.xlu0 %421
      %423 = vrot.lane.b32.xlu0 %v276, 16
      %v424 = vpop.permute.xlu0 %423
      %425 = vrot.lane.b32.xlu0 %v277, 16
      %v426 = vpop.permute.xlu0 %425
      %427 = vrot.lane.b32.xlu0 %v270, 16
      %v428 = vpop.permute.xlu0 %427
      %429 = vrot.lane.b32.xlu0 %v271, 16
      %v430 = vpop.permute.xlu0 %429
      %431 = vrot.lane.b32.xlu0 %v272, 16
      %v432 = vpop.permute.xlu0 %431
      %433 = vrot.lane.b32.xlu0 %v273, 16
      %v434 = vpop.permute.xlu0 %433
      %435 = vrot.lane.b32.xlu0 %v274, 16
      %v436 = vpop.permute.xlu0 %435
      %437 = vrot.lane.b32.xlu0 %v275, 16
      %v438 = vpop.permute.xlu0 %437
      %455 = vrot.lane.b32.xlu0 %v264, 32
      %v456 = vpop.permute.xlu0 %455
      %457 = vrot.lane.b32.xlu0 %v265, 32
      %v458 = vpop.permute.xlu0 %457
      %459 = vrot.lane.b32.xlu0 %v266, 32
      %v460 = vpop.permute.xlu0 %459
      %461 = vrot.lane.b32.xlu0 %v267, 32
      %v462 = vpop.permute.xlu0 %461
      %463 = vrot.lane.b32.xlu0 %v268, 32
      %v464 = vpop.permute.xlu0 %463
      %465 = vrot.lane.b32.xlu0 %v269, 32
      %v466 = vpop.permute.xlu0 %465
      %467 = vrot.lane.b32.xlu0 %v262, 32
      %v468 = vpop.permute.xlu0 %467
      %469 = vrot.lane.b32.xlu0 %v263, 32
      %v470 = vpop.permute.xlu0 %469
      %471 = vrot.lane.b32.xlu0 %v272, 32
      %v472 = vpop.permute.xlu0 %471
      %473 = vrot.lane.b32.xlu0 %v273, 32
      %v474 = vpop.permute.xlu0 %473
      %475 = vrot.lane.b32.xlu0 %v274, 32
      %v476 = vpop.permute.xlu0 %475
      %477 = vrot.lane.b32.xlu0 %v275, 32
      %v478 = vpop.permute.xlu0 %477
      %479 = vrot.lane.b32.xlu0 %v276, 32
      %v480 = vpop.permute.xlu0 %479
      %481 = vrot.lane.b32.xlu0 %v277, 32
      %v482 = vpop.permute.xlu0 %481
      %483 = vrot.lane.b32.xlu0 %v270, 32
      %v484 = vpop.permute.xlu0 %483
      %485 = vrot.lane.b32.xlu0 %v271, 32
      %v486 = vpop.permute.xlu0 %485
      %vm503 = vcmask 130048
      %v504 = vsel %vm503, %v262, %v408
      %v505 = vsel %vm503, %v263, %v410
      %v506 = vsel %vm503, %v264, %v412
      %v507 = vsel %vm503, %v265, %v414
      %v508 = vsel %vm503, %v266, %v416
      %v509 = vsel %vm503, %v267, %v418
      %v510 = vsel %vm503, %v268, %v420
      %v511 = vsel %vm503, %v269, %v422
      %v512 = vsel %vm503, %v270, %v424
      %v513 = vsel %vm503, %v271, %v426
      %v514 = vsel %vm503, %v272, %v428
      %v515 = vsel %vm503, %v273, %v430
      %v516 = vsel %vm503, %v274, %v432
      %v517 = vsel %vm503, %v275, %v434
      %v518 = vsel %vm503, %v276, %v436
      %v519 = vsel %vm503, %v277, %v438
      %vm520 = vcmask 261120
      %v521 = vsel %vm520, %v504, %v456
      %v522 = vsel %vm520, %v505, %v458
      %v523 = vsel %vm520, %v506, %v460
      %v524 = vsel %vm520, %v507, %v462
      %v525 = vsel %vm520, %v508, %v464
      %v526 = vsel %vm520, %v509, %v466
      %v527 = vsel %vm520, %v510, %v468
      %v528 = vsel %vm520, %v511, %v470
      %v529 = vsel %vm520, %v512, %v472
      %v530 = vsel %vm520, %v513, %v474
      %v531 = vsel %vm520, %v514, %v476
      %v532 = vsel %vm520, %v515, %v478
      %v533 = vsel %vm520, %v516, %v480
      %v534 = vsel %vm520, %v517, %v482
      %v535 = vsel %vm520, %v518, %v484
      %v536 = vsel %vm520, %v519, %v486
      %v537 = vpack.c.bf16 %v231, %v230
      %v538 = vpack.c.bf16 %v233, %v232
      %v539 = vpack.c.bf16 %v235, %v234
      %v540 = vpack.c.bf16 %v237, %v236
      %v541 = vpack.c.bf16 %v239, %v238
      %v542 = vpack.c.bf16 %v241, %v240
      %v543 = vpack.c.bf16 %v243, %v242
      %v544 = vpack.c.bf16 %v245, %v244
      %v545 = vpack.c.bf16 %v376, %v375
      %v546 = vpack.c.bf16 %v382, %v381
      %v547 = vpack.c.bf16 %v378, %v377
      %v548 = vpack.c.bf16 %v380, %v379
      %v549 = vpack.c.bf16 %v384, %v383
      %v550 = vpack.c.bf16 %v390, %v389
      %v551 = vpack.c.bf16 %v386, %v385
      %v552 = vpack.c.bf16 %v388, %v387
      %v553 = vpack.c.bf16 %v247, %v246
      %v554 = vpack.c.bf16 %v253, %v252
      %v555 = vpack.c.bf16 %v249, %v248
      %v556 = vpack.c.bf16 %v251, %v250
      %v557 = vpack.c.bf16 %v255, %v254
      %v558 = vpack.c.bf16 %v261, %v260
      %v559 = vpack.c.bf16 %v257, %v256
      %v560 = vpack.c.bf16 %v259, %v258
      %v562 = vsel %vm294, %v537, 0
      %v565 = vsel %vm294, %v545, 0
      %v568 = vsel %vm294, %v546, 0
      %v571 = vsel %vm294, %v547, 0
      %573 = vmatprep.subr.bf16.mxu0 0
      %574 = vmatpush1.bf16.xpose.msra.mxu0 %v565
      %575 = vmatprep.subr.bf16.mxu0 0
      %576 = vmatpush1.bf16.xpose.msra.mxu0 %v568
      %577 = vmatprep.subr.bf16.mxu0 0
      %578 = vmatpush1.bf16.xpose.msra.mxu0 %v571
      %579 = vmatprep.subr.bf16.mxu0 0
      %580 = vmatpush1.bf16.xpose.msra.mxu0 0
      %581 = vmatprep.subr.bf16.mxu0 0
      %582 = vmatpush1.bf16.xpose.msra.mxu0 0
      %583 = vmatprep.subr.bf16.mxu0 0
      %584 = vmatpush1.bf16.xpose.msra.mxu0 0
      %585 = vmatprep.subr.bf16.mxu0 0
      %586 = vmatpush1.bf16.xpose.msra.mxu0 0
      %587 = vmatprep.subr.bf16.mxu0 0
      %588 = vmatpush1.bf16.xpose.msra.mxu0 0
      %589 = vmatprep.subr.bf16.mxu0 0
      %590 = vmatpush1.bf16.xpose.msra.mxu0 0
      %591 = vmatprep.subr.bf16.mxu0 0
      %592 = vmatpush1.bf16.xpose.msra.mxu0 0
      %593 = vmatprep.subr.bf16.mxu0 0
      %594 = vmatpush1.bf16.xpose.msra.mxu0 0
      %595 = vmatprep.subr.bf16.mxu0 0
      %596 = vmatpush1.bf16.xpose.msra.mxu0 0
      %597 = vmatprep.subr.bf16.mxu0 0
      %598 = vmatpush1.bf16.xpose.msra.mxu0 0
      %599 = vmatprep.subr.bf16.mxu0 0
      %600 = vmatpush1.bf16.xpose.msra.mxu0 0
      %601 = vmatprep.subr.bf16.mxu0 0
      %602 = vmatpush1.bf16.xpose.msra.mxu0 0
      %603 = vmatprep.subr.bf16.mxu0 0
      %604 = vmatpush1.bf16.xpose.msra.mxu0 0
      %605 = vmatprep.mubr.bf16.mxu0 0
      %606 = vmatmul.mubr.bf16.gmra.mrb[0].mxu0 %v562
      %v607 = vpop.f32.mrb[0].mxu0
      %v608 = vadd.f32 %v521, %v607
      %v609 = vpop.f32.mrb[0].mxu0
      %v610 = vpop.f32.mrb[0].mxu0
      %v611 = vadd.f32 %v522, %v610
      %v612 = vpop.f32.mrb[0].mxu0
      %613 = vdwg.mxu0
      %v615 = vsel %vm294, %v538, 0
      %v618 = vsel %vm294, %v548, 0
      %620 = vmatprep.subr.bf16.mxu0 0
      %621 = vmatpush1.bf16.xpose.msra.mxu0 %v571
      %622 = vmatprep.subr.bf16.mxu0 0
      %623 = vmatpush1.bf16.xpose.msra.mxu0 %v565
      %624 = vmatprep.subr.bf16.mxu0 0
      %625 = vmatpush1.bf16.xpose.msra.mxu0 %v618
      %626 = vmatprep.subr.bf16.mxu0 0
      %627 = vmatpush1.bf16.xpose.msra.mxu0 0
      %628 = vmatprep.subr.bf16.mxu0 0
      %629 = vmatpush1.bf16.xpose.msra.mxu0 0
      %630 = vmatprep.subr.bf16.mxu0 0
      %631 = vmatpush1.bf16.xpose.msra.mxu0 0
      %632 = vmatprep.subr.bf16.mxu0 0
      %633 = vmatpush1.bf16.xpose.msra.mxu0 0
      %634 = vmatprep.subr.bf16.mxu0 0
      %635 = vmatpush1.bf16.xpose.msra.mxu0 0
      %636 = vmatprep.subr.bf16.mxu0 0
      %637 = vmatpush1.bf16.xpose.msra.mxu0 0
      %638 = vmatprep.subr.bf16.mxu0 0
      %639 = vmatpush1.bf16.xpose.msra.mxu0 0
      %640 = vmatprep.subr.bf16.mxu0 0
      %641 = vmatpush1.bf16.xpose.msra.mxu0 0
      %642 = vmatprep.subr.bf16.mxu0 0
      %643 = vmatpush1.bf16.xpose.msra.mxu0 0
      %644 = vmatprep.subr.bf16.mxu0 0
      %645 = vmatpush1.bf16.xpose.msra.mxu0 0
      %646 = vmatprep.subr.bf16.mxu0 0
      %647 = vmatpush1.bf16.xpose.msra.mxu0 0
      %648 = vmatprep.subr.bf16.mxu0 0
      %649 = vmatpush1.bf16.xpose.msra.mxu0 0
      %650 = vmatprep.subr.bf16.mxu0 0
      %651 = vmatpush1.bf16.xpose.msra.mxu0 0
      %652 = vmatprep.mubr.bf16.mxu0 0
      %653 = vmatmul.mubr.bf16.gmra.mrb[0].mxu0 %v615
      %v654 = vpop.f32.mrb[0].mxu0
      %v655 = vadd.f32 %v523, %v654
      %v656 = vpop.f32.mrb[0].mxu0
      %v657 = vpop.f32.mrb[0].mxu0
      %v658 = vadd.f32 %v524, %v657
      %v659 = vpop.f32.mrb[0].mxu0
      %660 = vdwg.mxu0
      %v662 = vsel %vm294, %v539, 0
      %664 = vmatprep.subr.bf16.mxu0 0
      %665 = vmatpush1.bf16.xpose.msra.mxu0 %v618
      %666 = vmatprep.subr.bf16.mxu0 0
      %667 = vmatpush1.bf16.xpose.msra.mxu0 %v571
      %668 = vmatprep.subr.bf16.mxu0 0
      %669 = vmatpush1.bf16.xpose.msra.mxu0 %v568
      %670 = vmatprep.subr.bf16.mxu0 0
      %671 = vmatpush1.bf16.xpose.msra.mxu0 0
      %672 = vmatprep.subr.bf16.mxu0 0
      %673 = vmatpush1.bf16.xpose.msra.mxu0 0
      %674 = vmatprep.subr.bf16.mxu0 0
      %675 = vmatpush1.bf16.xpose.msra.mxu0 0
      %676 = vmatprep.subr.bf16.mxu0 0
      %677 = vmatpush1.bf16.xpose.msra.mxu0 0
      %678 = vmatprep.subr.bf16.mxu0 0
      %679 = vmatpush1.bf16.xpose.msra.mxu0 0
      %680 = vmatprep.subr.bf16.mxu0 0
      %681 = vmatpush1.bf16.xpose.msra.mxu0 0
      %682 = vmatprep.subr.bf16.mxu0 0
      %683 = vmatpush1.bf16.xpose.msra.mxu0 0
      %684 = vmatprep.subr.bf16.mxu0 0
      %685 = vmatpush1.bf16.xpose.msra.mxu0 0
      %686 = vmatprep.subr.bf16.mxu0 0
      %687 = vmatpush1.bf16.xpose.msra.mxu0 0
      %688 = vmatprep.subr.bf16.mxu0 0
      %689 = vmatpush1.bf16.xpose.msra.mxu0 0
      %690 = vmatprep.subr.bf16.mxu0 0
      %691 = vmatpush1.bf16.xpose.msra.mxu0 0
      %692 = vmatprep.subr.bf16.mxu0 0
      %693 = vmatpush1.bf16.xpose.msra.mxu0 0
      %694 = vmatprep.subr.bf16.mxu0 0
      %695 = vmatpush1.bf16.xpose.msra.mxu0 0
      %696 = vmatprep.mubr.bf16.mxu0 0
      %697 = vmatmul.mubr.bf16.gmra.mrb[0].mxu0 %v662
      %v698 = vpop.f32.mrb[0].mxu0
      %v699 = vadd.f32 %v525, %v698
      %v700 = vpop.f32.mrb[0].mxu0
      %v701 = vpop.f32.mrb[0].mxu0
      %v702 = vadd.f32 %v526, %v701
      %v703 = vpop.f32.mrb[0].mxu0
      %704 = vdwg.mxu0
      %v706 = vsel %vm294, %v540, 0
      %708 = vmatprep.subr.bf16.mxu0 0
      %709 = vmatpush1.bf16.xpose.msra.mxu0 %v568
      %710 = vmatprep.subr.bf16.mxu0 0
      %711 = vmatpush1.bf16.xpose.msra.mxu0 %v618
      %712 = vmatprep.subr.bf16.mxu0 0
      %713 = vmatpush1.bf16.xpose.msra.mxu0 %v565
      %714 = vmatprep.subr.bf16.mxu0 0
      %715 = vmatpush1.bf16.xpose.msra.mxu0 0
      %716 = vmatprep.subr.bf16.mxu0 0
      %717 = vmatpush1.bf16.xpose.msra.mxu0 0
      %718 = vmatprep.subr.bf16.mxu0 0
      %719 = vmatpush1.bf16.xpose.msra.mxu0 0
      %720 = vmatprep.subr.bf16.mxu0 0
      %721 = vmatpush1.bf16.xpose.msra.mxu0 0
      %722 = vmatprep.subr.bf16.mxu0 0
      %723 = vmatpush1.bf16.xpose.msra.mxu0 0
      %724 = vmatprep.subr.bf16.mxu0 0
      %725 = vmatpush1.bf16.xpose.msra.mxu0 0
      %726 = vmatprep.subr.bf16.mxu0 0
      %727 = vmatpush1.bf16.xpose.msra.mxu0 0
      %728 = vmatprep.subr.bf16.mxu0 0
      %729 = vmatpush1.bf16.xpose.msra.mxu0 0
      %730 = vmatprep.subr.bf16.mxu0 0
      %731 = vmatpush1.bf16.xpose.msra.mxu0 0
      %732 = vmatprep.subr.bf16.mxu0 0
      %733 = vmatpush1.bf16.xpose.msra.mxu0 0
      %734 = vmatprep.subr.bf16.mxu0 0
      %735 = vmatpush1.bf16.xpose.msra.mxu0 0
      %736 = vmatprep.subr.bf16.mxu0 0
      %737 = vmatpush1.bf16.xpose.msra.mxu0 0
      %738 = vmatprep.subr.bf16.mxu0 0
      %739 = vmatpush1.bf16.xpose.msra.mxu0 0
      %740 = vmatprep.mubr.bf16.mxu0 0
      %741 = vmatmul.mubr.bf16.gmra.mrb[0].mxu0 %v706
      %v742 = vpop.f32.mrb[0].mxu0
      %v743 = vadd.f32 %v527, %v742
      %v744 = vpop.f32.mrb[0].mxu0
      %v745 = vpop.f32.mrb[0].mxu0
      %v746 = vadd.f32 %v528, %v745
      %v747 = vpop.f32.mrb[0].mxu0
      %748 = vdwg.mxu0
      %v750 = vsel %vm294, %v541, 0
      %v753 = vsel %vm294, %v549, 0
      %v756 = vsel %vm294, %v550, 0
      %v759 = vsel %vm294, %v551, 0
      %761 = vmatprep.subr.bf16.mxu0 0
      %762 = vmatpush1.bf16.xpose.msra.mxu0 %v753
      %763 = vmatprep.subr.bf16.mxu0 0
      %764 = vmatpush1.bf16.xpose.msra.mxu0 %v756
      %765 = vmatprep.subr.bf16.mxu0 0
      %766 = vmatpush1.bf16.xpose.msra.mxu0 %v759
      %767 = vmatprep.subr.bf16.mxu0 0
      %768 = vmatpush1.bf16.xpose.msra.mxu0 0
      %769 = vmatprep.subr.bf16.mxu0 0
      %770 = vmatpush1.bf16.xpose.msra.mxu0 0
      %771 = vmatprep.subr.bf16.mxu0 0
      %772 = vmatpush1.bf16.xpose.msra.mxu0 0
      %773 = vmatprep.subr.bf16.mxu0 0
      %774 = vmatpush1.bf16.xpose.msra.mxu0 0
      %775 = vmatprep.subr.bf16.mxu0 0
      %776 = vmatpush1.bf16.xpose.msra.mxu0 0
      %777 = vmatprep.subr.bf16.mxu0 0
      %778 = vmatpush1.bf16.xpose.msra.mxu0 0
      %779 = vmatprep.subr.bf16.mxu0 0
      %780 = vmatpush1.bf16.xpose.msra.mxu0 0
      %781 = vmatprep.subr.bf16.mxu0 0
      %782 = vmatpush1.bf16.xpose.msra.mxu0 0
      %783 = vmatprep.subr.bf16.mxu0 0
      %784 = vmatpush1.bf16.xpose.msra.mxu0 0
      %785 = vmatprep.subr.bf16.mxu0 0
      %786 = vmatpush1.bf16.xpose.msra.mxu0 0
      %787 = vmatprep.subr.bf16.mxu0 0
      %788 = vmatpush1.bf16.xpose.msra.mxu0 0
      %789 = vmatprep.subr.bf16.mxu0 0
      %790 = vmatpush1.bf16.xpose.msra.mxu0 0
      %791 = vmatprep.subr.bf16.mxu0 0
      %792 = vmatpush1.bf16.xpose.msra.mxu0 0
      %793 = vmatprep.mubr.bf16.mxu0 0
      %794 = vmatmul.mubr.bf16.gmra.mrb[0].mxu0 %v750
      %v795 = vpop.f32.mrb[0].mxu0
      %v796 = vadd.f32 %v529, %v795
      %v797 = vpop.f32.mrb[0].mxu0
      %v798 = vpop.f32.mrb[0].mxu0
      %v799 = vadd.f32 %v530, %v798
      %v800 = vpop.f32.mrb[0].mxu0
      %801 = vdwg.mxu0
      %v803 = vsel %vm294, %v542, 0
      %v806 = vsel %vm294, %v552, 0
      %808 = vmatprep.subr.bf16.mxu0 0
      %809 = vmatpush1.bf16.xpose.msra.mxu0 %v759
      %810 = vmatprep.subr.bf16.mxu0 0
      %811 = vmatpush1.bf16.xpose.msra.mxu0 %v753
      %812 = vmatprep.subr.bf16.mxu0 0
      %813 = vmatpush1.bf16.xpose.msra.mxu0 %v806
      %814 = vmatprep.subr.bf16.mxu0 0
      %815 = vmatpush1.bf16.xpose.msra.mxu0 0
      %816 = vmatprep.subr.bf16.mxu0 0
      %817 = vmatpush1.bf16.xpose.msra.mxu0 0
      %818 = vmatprep.subr.bf16.mxu0 0
      %819 = vmatpush1.bf16.xpose.msra.mxu0 0
      %820 = vmatprep.subr.bf16.mxu0 0
      %821 = vmatpush1.bf16.xpose.msra.mxu0 0
      %822 = vmatprep.subr.bf16.mxu0 0
      %823 = vmatpush1.bf16.xpose.msra.mxu0 0
      %824 = vmatprep.subr.bf16.mxu0 0
      %825 = vmatpush1.bf16.xpose.msra.mxu0 0
      %826 = vmatprep.subr.bf16.mxu0 0
      %827 = vmatpush1.bf16.xpose.msra.mxu0 0
      %828 = vmatprep.subr.bf16.mxu0 0
      %829 = vmatpush1.bf16.xpose.msra.mxu0 0
      %830 = vmatprep.subr.bf16.mxu0 0
      %831 = vmatpush1.bf16.xpose.msra.mxu0 0
      %832 = vmatprep.subr.bf16.mxu0 0
      %833 = vmatpush1.bf16.xpose.msra.mxu0 0
      %834 = vmatprep.subr.bf16.mxu0 0
      %835 = vmatpush1.bf16.xpose.msra.mxu0 0
      %836 = vmatprep.subr.bf16.mxu0 0
      %837 = vmatpush1.bf16.xpose.msra.mxu0 0
      %838 = vmatprep.subr.bf16.mxu0 0
      %839 = vmatpush1.bf16.xpose.msra.mxu0 0
      %840 = vmatprep.mubr.bf16.mxu0 0
      %841 = vmatmul.mubr.bf16.gmra.mrb[0].mxu0 %v803
      %v842 = vpop.f32.mrb[0].mxu0
      %v843 = vadd.f32 %v531, %v842
      %v844 = vpop.f32.mrb[0].mxu0
      %v845 = vpop.f32.mrb[0].mxu0
      %v846 = vadd.f32 %v532, %v845
      %v847 = vpop.f32.mrb[0].mxu0
      %848 = vdwg.mxu0
      %v850 = vsel %vm294, %v543, 0
      %852 = vmatprep.subr.bf16.mxu0 0
      %853 = vmatpush1.bf16.xpose.msra.mxu0 %v806
      %854 = vmatprep.subr.bf16.mxu0 0
      %855 = vmatpush1.bf16.xpose.msra.mxu0 %v759
      %856 = vmatprep.subr.bf16.mxu0 0
      %857 = vmatpush1.bf16.xpose.msra.mxu0 %v756
      %858 = vmatprep.subr.bf16.mxu0 0
      %859 = vmatpush1.bf16.xpose.msra.mxu0 0
      %860 = vmatprep.subr.bf16.mxu0 0
      %861 = vmatpush1.bf16.xpose.msra.mxu0 0
      %862 = vmatprep.subr.bf16.mxu0 0
      %863 = vmatpush1.bf16.xpose.msra.mxu0 0
      %864 = vmatprep.subr.bf16.mxu0 0
      %865 = vmatpush1.bf16.xpose.msra.mxu0 0
      %866 = vmatprep.subr.bf16.mxu0 0
      %867 = vmatpush1.bf16.xpose.msra.mxu0 0
      %868 = vmatprep.subr.bf16.mxu0 0
      %869 = vmatpush1.bf16.xpose.msra.mxu0 0
      %870 = vmatprep.subr.bf16.mxu0 0
      %871 = vmatpush1.bf16.xpose.msra.mxu0 0
      %872 = vmatprep.subr.bf16.mxu0 0
      %873 = vmatpush1.bf16.xpose.msra.mxu0 0
      %874 = vmatprep.subr.bf16.mxu0 0
      %875 = vmatpush1.bf16.xpose.msra.mxu0 0
      %876 = vmatprep.subr.bf16.mxu0 0
      %877 = vmatpush1.bf16.xpose.msra.mxu0 0
      %878 = vmatprep.subr.bf16.mxu0 0
      %879 = vmatpush1.bf16.xpose.msra.mxu0 0
      %880 = vmatprep.subr.bf16.mxu0 0
      %881 = vmatpush1.bf16.xpose.msra.mxu0 0
      %882 = vmatprep.subr.bf16.mxu0 0
      %883 = vmatpush1.bf16.xpose.msra.mxu0 0
      %884 = vmatprep.mubr.bf16.mxu0 0
      %885 = vmatmul.mubr.bf16.gmra.mrb[0].mxu0 %v850
      %v886 = vpop.f32.mrb[0].mxu0
      %v887 = vadd.f32 %v533, %v886
      %v888 = vpop.f32.mrb[0].mxu0
      %v889 = vpop.f32.mrb[0].mxu0
      %v890 = vadd.f32 %v534, %v889
      %v891 = vpop.f32.mrb[0].mxu0
      %892 = vdwg.mxu0
      %v894 = vsel %vm294, %v544, 0
      %896 = vmatprep.subr.bf16.mxu0 0
      %897 = vmatpush1.bf16.xpose.msra.mxu0 %v756
      %898 = vmatprep.subr.bf16.mxu0 0
      %899 = vmatpush1.bf16.xpose.msra.mxu0 %v806
      %900 = vmatprep.subr.bf16.mxu0 0
      %901 = vmatpush1.bf16.xpose.msra.mxu0 %v753
      %902 = vmatprep.subr.bf16.mxu0 0
      %903 = vmatpush1.bf16.xpose.msra.mxu0 0
      %904 = vmatprep.subr.bf16.mxu0 0
      %905 = vmatpush1.bf16.xpose.msra.mxu0 0
      %906 = vmatprep.subr.bf16.mxu0 0
      %907 = vmatpush1.bf16.xpose.msra.mxu0 0
      %908 = vmatprep.subr.bf16.mxu0 0
      %909 = vmatpush1.bf16.xpose.msra.mxu0 0
      %910 = vmatprep.subr.bf16.mxu0 0
      %911 = vmatpush1.bf16.xpose.msra.mxu0 0
      %912 = vmatprep.subr.bf16.mxu0 0
      %913 = vmatpush1.bf16.xpose.msra.mxu0 0
      %914 = vmatprep.subr.bf16.mxu0 0
      %915 = vmatpush1.bf16.xpose.msra.mxu0 0
      %916 = vmatprep.subr.bf16.mxu0 0
      %917 = vmatpush1.bf16.xpose.msra.mxu0 0
      %918 = vmatprep.subr.bf16.mxu0 0
      %919 = vmatpush1.bf16.xpose.msra.mxu0 0
      %920 = vmatprep.subr.bf16.mxu0 0
      %921 = vmatpush1.bf16.xpose.msra.mxu0 0
      %922 = vmatprep.subr.bf16.mxu0 0
      %923 = vmatpush1.bf16.xpose.msra.mxu0 0
      %924 = vmatprep.subr.bf16.mxu0 0
      %925 = vmatpush1.bf16.xpose.msra.mxu0 0
      %926 = vmatprep.subr.bf16.mxu0 0
      %927 = vmatpush1.bf16.xpose.msra.mxu0 0
      %928 = vmatprep.mubr.bf16.mxu0 0
      %929 = vmatmul.mubr.bf16.gmra.mrb[0].mxu0 %v894
      %v930 = vpop.f32.mrb[0].mxu0
      %v931 = vadd.f32 %v535, %v930
      %v932 = vpop.f32.mrb[0].mxu0
      %v933 = vpop.f32.mrb[0].mxu0
      %v934 = vadd.f32 %v536, %v933
      %v935 = vpop.f32.mrb[0].mxu0
      %936 = vdwg.mxu0
      %vm937 = vcmask 392192
      %v938 = vsel %vm937, %v608, -inf
      %939 = vmax.xlane.f32.xlu0 %v938
      %v940 = vpop.xlane.xlu0 %939
      %v941 = vsel %vm937, %v611, -inf
      %942 = vmax.xlane.f32.xlu0 %v941
      %v943 = vpop.xlane.xlu0 %942
      %v944 = vsel %vm937, %v655, -inf
      %945 = vmax.xlane.f32.xlu0 %v944
      %v946 = vpop.xlane.xlu0 %945
      %v947 = vsel %vm937, %v658, -inf
      %948 = vmax.xlane.f32.xlu0 %v947
      %v949 = vpop.xlane.xlu0 %948
      %v950 = vsel %vm937, %v699, -inf
      %951 = vmax.xlane.f32.xlu0 %v950
      %v952 = vpop.xlane.xlu0 %951
      %v953 = vsel %vm937, %v702, -inf
      %954 = vmax.xlane.f32.xlu0 %v953
      %v955 = vpop.xlane.xlu0 %954
      %v956 = vsel %vm937, %v743, -inf
      %957 = vmax.xlane.f32.xlu0 %v956
      %v958 = vpop.xlane.xlu0 %957
      %v959 = vsel %vm937, %v746, -inf
      %960 = vmax.xlane.f32.xlu0 %v959
      %v961 = vpop.xlane.xlu0 %960
      %v962 = vsel %vm937, %v796, -inf
      %963 = vmax.xlane.f32.xlu0 %v962
      %v964 = vpop.xlane.xlu0 %963
      %v965 = vsel %vm937, %v799, -inf
      %966 = vmax.xlane.f32.xlu0 %v965
      %v967 = vpop.xlane.xlu0 %966
      %v968 = vsel %vm937, %v843, -inf
      %969 = vmax.xlane.f32.xlu0 %v968
      %v970 = vpop.xlane.xlu0 %969
      %v971 = vsel %vm937, %v846, -inf
      %972 = vmax.xlane.f32.xlu0 %v971
      %v973 = vpop.xlane.xlu0 %972
      %v974 = vsel %vm937, %v887, -inf
      %975 = vmax.xlane.f32.xlu0 %v974
      %v976 = vpop.xlane.xlu0 %975
      %v977 = vsel %vm937, %v890, -inf
      %978 = vmax.xlane.f32.xlu0 %v977
      %v979 = vpop.xlane.xlu0 %978
      %v980 = vsel %vm937, %v931, -inf
      %981 = vmax.xlane.f32.xlu0 %v980
      %v982 = vpop.xlane.xlu0 %981
      %v983 = vsel %vm937, %v934, -inf
      %984 = vmax.xlane.f32.xlu0 %v983
      %v985 = vpop.xlane.xlu0 %984
      %v986 = vsub.f32 %v608, %v940
      %v987 = vsub.f32 %v611, %v943
      %v988 = vsub.f32 %v655, %v946
      %v989 = vsub.f32 %v658, %v949
      %v990 = vsub.f32 %v699, %v952
      %v991 = vsub.f32 %v702, %v955
      %v992 = vsub.f32 %v743, %v958
      %v993 = vsub.f32 %v746, %v961
      %v994 = vsub.f32 %v796, %v964
      %v995 = vsub.f32 %v799, %v967
      %v996 = vsub.f32 %v843, %v970
      %v997 = vsub.f32 %v846, %v973
      %v998 = vsub.f32 %v887, %v976
      %v999 = vsub.f32 %v890, %v979
      %v1000 = vsub.f32 %v931, %v982
      %v1001 = vsub.f32 %v934, %v985
      %v1002 = vmul.f32 %v986, 1.442695
      %v1003 = vpow.pop %v1002
      %v1004 = vmul.f32 %v987, 1.442695
      %v1005 = vpow.pop %v1004
      %v1006 = vmul.f32 %v988, 1.442695
      %v1007 = vpow.pop %v1006
      %v1008 = vmul.f32 %v989, 1.442695
      %v1009 = vpow.pop %v1008
      %v1010 = vmul.f32 %v990, 1.442695
      %v1011 = vpow.pop %v1010
      %v1012 = vmul.f32 %v991, 1.442695
      %v1013 = vpow.pop %v1012
      %v1014 = vmul.f32 %v992, 1.442695
      %v1015 = vpow.pop %v1014
      %v1016 = vmul.f32 %v993, 1.442695
      %v1017 = vpow.pop %v1016
      %v1018 = vmul.f32 %v994, 1.442695
      %v1019 = vpow.pop %v1018
      %v1020 = vmul.f32 %v995, 1.442695
      %v1021 = vpow.pop %v1020
      %v1022 = vmul.f32 %v996, 1.442695
      %v1023 = vpow.pop %v1022
      %v1024 = vmul.f32 %v997, 1.442695
      %v1025 = vpow.pop %v1024
      %v1026 = vmul.f32 %v998, 1.442695
      %v1027 = vpow.pop %v1026
      %v1028 = vmul.f32 %v999, 1.442695
      %v1029 = vpow.pop %v1028
      %v1030 = vmul.f32 %v1000, 1.442695
      %v1031 = vpow.pop %v1030
      %v1032 = vmul.f32 %v1001, 1.442695
      %v1033 = vpow.pop %v1032
      %v1034 = vsel %vm937, %v1003, 0.0
      %1035 = vadd.xlane.f32.xlu0 %v1034
      %v1036 = vpop.xlane.xlu0 %1035
      %v1037 = vsel %vm937, %v1005, 0.0
      %1038 = vadd.xlane.f32.xlu0 %v1037
      %v1039 = vpop.xlane.xlu0 %1038
      %v1040 = vsel %vm937, %v1007, 0.0
      %1041 = vadd.xlane.f32.xlu0 %v1040
      %v1042 = vpop.xlane.xlu0 %1041
      %v1043 = vsel %vm937, %v1009, 0.0
      %1044 = vadd.xlane.f32.xlu0 %v1043
      %v1045 = vpop.xlane.xlu0 %1044
      %v1046 = vsel %vm937, %v1011, 0.0
      %1047 = vadd.xlane.f32.xlu0 %v1046
      %v1048 = vpop.xlane.xlu0 %1047
      %v1049 = vsel %vm937, %v1013, 0.0
      %1050 = vadd.xlane.f32.xlu0 %v1049
      %v1051 = vpop.xlane.xlu0 %1050
      %v1052 = vsel %vm937, %v1015, 0.0
      %1053 = vadd.xlane.f32.xlu0 %v1052
      %v1054 = vpop.xlane.xlu0 %1053
      %v1055 = vsel %vm937, %v1017, 0.0
      %1056 = vadd.xlane.f32.xlu0 %v1055
      %v1057 = vpop.xlane.xlu0 %1056
      %v1058 = vsel %vm937, %v1019, 0.0
      %1059 = vadd.xlane.f32.xlu0 %v1058
      %v1060 = vpop.xlane.xlu0 %1059
      %v1061 = vsel %vm937, %v1021, 0.0
      %1062 = vadd.xlane.f32.xlu0 %v1061
      %v1063 = vpop.xlane.xlu0 %1062
      %v1064 = vsel %vm937, %v1023, 0.0
      %1065 = vadd.xlane.f32.xlu0 %v1064
      %v1066 = vpop.xlane.xlu0 %1065
      %v1067 = vsel %vm937, %v1025, 0.0
      %1068 = vadd.xlane.f32.xlu0 %v1067
      %v1069 = vpop.xlane.xlu0 %1068
      %v1070 = vsel %vm937, %v1027, 0.0
      %1071 = vadd.xlane.f32.xlu0 %v1070
      %v1072 = vpop.xlane.xlu0 %1071
      %v1073 = vsel %vm937, %v1029, 0.0
      %1074 = vadd.xlane.f32.xlu0 %v1073
      %v1075 = vpop.xlane.xlu0 %1074
      %v1076 = vsel %vm937, %v1031, 0.0
      %1077 = vadd.xlane.f32.xlu0 %v1076
      %v1078 = vpop.xlane.xlu0 %1077
      %v1079 = vsel %vm937, %v1033, 0.0
      %1080 = vadd.xlane.f32.xlu0 %v1079
      %v1081 = vpop.xlane.xlu0 %1080
      %v1082 = vlog2.pop %v1036
      %v1083 = vmul.f32 %v1082, 0.6931472
      %v1084 = vlog2.pop %v1039
      %v1085 = vmul.f32 %v1084, 0.6931472
      %v1086 = vlog2.pop %v1042
      %v1087 = vmul.f32 %v1086, 0.6931472
      %v1088 = vlog2.pop %v1045
      %v1089 = vmul.f32 %v1088, 0.6931472
      %v1090 = vlog2.pop %v1048
      %v1091 = vmul.f32 %v1090, 0.6931472
      %v1092 = vlog2.pop %v1051
      %v1093 = vmul.f32 %v1092, 0.6931472
      %v1094 = vlog2.pop %v1054
      %v1095 = vmul.f32 %v1094, 0.6931472
      %v1096 = vlog2.pop %v1057
      %v1097 = vmul.f32 %v1096, 0.6931472
      %v1098 = vlog2.pop %v1060
      %v1099 = vmul.f32 %v1098, 0.6931472
      %v1100 = vlog2.pop %v1063
      %v1101 = vmul.f32 %v1100, 0.6931472
      %v1102 = vlog2.pop %v1066
      %v1103 = vmul.f32 %v1102, 0.6931472
      %v1104 = vlog2.pop %v1069
      %v1105 = vmul.f32 %v1104, 0.6931472
      %v1106 = vlog2.pop %v1072
      %v1107 = vmul.f32 %v1106, 0.6931472
      %v1108 = vlog2.pop %v1075
      %v1109 = vmul.f32 %v1108, 0.6931472
      %v1110 = vlog2.pop %v1078
      %v1111 = vmul.f32 %v1110, 0.6931472
      %v1112 = vlog2.pop %v1081
      %v1113 = vmul.f32 %v1112, 0.6931472
      %v1114 = vadd.f32 %v940, %v1083
      %v1115 = vadd.f32 %v943, %v1085
      %v1116 = vadd.f32 %v946, %v1087
      %v1117 = vadd.f32 %v949, %v1089
      %v1118 = vadd.f32 %v952, %v1091
      %v1119 = vadd.f32 %v955, %v1093
      %v1120 = vadd.f32 %v958, %v1095
      %v1121 = vadd.f32 %v961, %v1097
      %v1122 = vadd.f32 %v964, %v1099
      %v1123 = vadd.f32 %v967, %v1101
      %v1124 = vadd.f32 %v970, %v1103
      %v1125 = vadd.f32 %v973, %v1105
      %v1126 = vadd.f32 %v976, %v1107
      %v1127 = vadd.f32 %v979, %v1109
      %v1128 = vadd.f32 %v982, %v1111
      %v1129 = vadd.f32 %v985, %v1113
      %v1130 = vrcp.pop %v1036
      %v1131 = vmul.f32 %v1003, %v1130
      %v1132 = vrcp.pop %v1039
      %v1133 = vmul.f32 %v1005, %v1132
      %v1134 = vrcp.pop %v1042
      %v1135 = vmul.f32 %v1007, %v1134
      %v1136 = vrcp.pop %v1045
      %v1137 = vmul.f32 %v1009, %v1136
      %v1138 = vrcp.pop %v1048
      %v1139 = vmul.f32 %v1011, %v1138
      %v1140 = vrcp.pop %v1051
      %v1141 = vmul.f32 %v1013, %v1140
      %v1142 = vrcp.pop %v1054
      %v1143 = vmul.f32 %v1015, %v1142
      %v1144 = vrcp.pop %v1057
      %v1145 = vmul.f32 %v1017, %v1144
      %v1146 = vrcp.pop %v1060
      %v1147 = vmul.f32 %v1019, %v1146
      %v1148 = vrcp.pop %v1063
      %v1149 = vmul.f32 %v1021, %v1148
      %v1150 = vrcp.pop %v1066
      %v1151 = vmul.f32 %v1023, %v1150
      %v1152 = vrcp.pop %v1069
      %v1153 = vmul.f32 %v1025, %v1152
      %v1154 = vrcp.pop %v1072
      %v1155 = vmul.f32 %v1027, %v1154
      %v1156 = vrcp.pop %v1075
      %v1157 = vmul.f32 %v1029, %v1156
      %v1158 = vrcp.pop %v1078
      %v1159 = vmul.f32 %v1031, %v1158
      %v1160 = vrcp.pop %v1081
      %v1161 = vmul.f32 %v1033, %v1160
      %v1162 = vpack.c.bf16 %v1133, %v1131
      %v1163 = vpack.c.bf16 %v1137, %v1135
      %v1164 = vpack.c.bf16 %v1141, %v1139
      %v1165 = vpack.c.bf16 %v1145, %v1143
      %v1166 = vpack.c.bf16 %v1149, %v1147
      %v1167 = vpack.c.bf16 %v1153, %v1151
      %v1168 = vpack.c.bf16 %v1157, %v1155
      %v1169 = vpack.c.bf16 %v1161, %v1159
      %v1171 = vsel %vm937, %v1162, 0
      %1173 = vmatprep.subr.bf16.mxu0 0
      %1174 = vmatpush1.bf16.msra.mxu0 %v553
      %1175 = vmatprep.subr.bf16.mxu0 0
      %1176 = vmatpush1.bf16.msra.mxu0 %v554
      %1177 = vmatprep.subr.bf16.mxu0 0
      %1178 = vmatpush1.bf16.msra.mxu0 %v555
      %1179 = vmatprep.subr.bf16.mxu0 0
      %1180 = vmatpush1.bf16.msra.mxu0 0
      %1181 = vmatprep.subr.bf16.mxu0 0
      %1182 = vmatpush1.bf16.msra.mxu0 0
      %1183 = vmatprep.subr.bf16.mxu0 0
      %1184 = vmatpush1.bf16.msra.mxu0 0
      %1185 = vmatprep.subr.bf16.mxu0 0
      %1186 = vmatpush1.bf16.msra.mxu0 0
      %1187 = vmatprep.subr.bf16.mxu0 0
      %1188 = vmatpush1.bf16.msra.mxu0 0
      %1189 = vmatprep.subr.bf16.mxu0 0
      %1190 = vmatpush1.bf16.msra.mxu0 0
      %1191 = vmatprep.subr.bf16.mxu0 0
      %1192 = vmatpush1.bf16.msra.mxu0 0
      %1193 = vmatprep.subr.bf16.mxu0 0
      %1194 = vmatpush1.bf16.msra.mxu0 0
      %1195 = vmatprep.subr.bf16.mxu0 0
      %1196 = vmatpush1.bf16.msra.mxu0 0
      %1197 = vmatprep.subr.bf16.mxu0 0
      %1198 = vmatpush1.bf16.msra.mxu0 0
      %1199 = vmatprep.subr.bf16.mxu0 0
      %1200 = vmatpush1.bf16.msra.mxu0 0
      %1201 = vmatprep.subr.bf16.mxu0 0
      %1202 = vmatpush1.bf16.msra.mxu0 0
      %1203 = vmatprep.subr.bf16.mxu0 0
      %1204 = vmatpush1.bf16.msra.mxu0 0
      %1205 = vmatprep.mubr.bf16.mxu0 0
      %1206 = vmatmul.mubr.bf16.gmra.mrb[0].mxu0 %v1171
      %v1207 = vpop.f32.mrb[0].mxu0
      %v1208 = vadd.f32 0.0, %v1207
      %v1209 = vpop.f32.mrb[0].mxu0
      %v1210 = vpop.f32.mrb[0].mxu0
      %v1211 = vadd.f32 0.0, %v1210
      %v1212 = vpop.f32.mrb[0].mxu0
      %1213 = vdwg.mxu0
      %v1215 = vsel %vm937, %v1163, 0
      %1217 = vmatprep.subr.bf16.mxu0 0
      %1218 = vmatpush1.bf16.msra.mxu0 %v555
      %1219 = vmatprep.subr.bf16.mxu0 0
      %1220 = vmatpush1.bf16.msra.mxu0 %v553
      %1221 = vmatprep.subr.bf16.mxu0 0
      %1222 = vmatpush1.bf16.msra.mxu0 %v556
      %1223 = vmatprep.subr.bf16.mxu0 0
      %1224 = vmatpush1.bf16.msra.mxu0 0
      %1225 = vmatprep.subr.bf16.mxu0 0
      %1226 = vmatpush1.bf16.msra.mxu0 0
      %1227 = vmatprep.subr.bf16.mxu0 0
      %1228 = vmatpush1.bf16.msra.mxu0 0
      %1229 = vmatprep.subr.bf16.mxu0 0
      %1230 = vmatpush1.bf16.msra.mxu0 0
      %1231 = vmatprep.subr.bf16.mxu0 0
      %1232 = vmatpush1.bf16.msra.mxu0 0
      %1233 = vmatprep.subr.bf16.mxu0 0
      %1234 = vmatpush1.bf16.msra.mxu0 0
      %1235 = vmatprep.subr.bf16.mxu0 0
      %1236 = vmatpush1.bf16.msra.mxu0 0
      %1237 = vmatprep.subr.bf16.mxu0 0
      %1238 = vmatpush1.bf16.msra.mxu0 0
      %1239 = vmatprep.subr.bf16.mxu0 0
      %1240 = vmatpush1.bf16.msra.mxu0 0
      %1241 = vmatprep.subr.bf16.mxu0 0
      %1242 = vmatpush1.bf16.msra.mxu0 0
      %1243 = vmatprep.subr.bf16.mxu0 0
      %1244 = vmatpush1.bf16.msra.mxu0 0
      %1245 = vmatprep.subr.bf16.mxu0 0
      %1246 = vmatpush1.bf16.msra.mxu0 0
      %1247 = vmatprep.subr.bf16.mxu0 0
      %1248 = vmatpush1.bf16.msra.mxu0 0
      %1249 = vmatprep.mubr.bf16.mxu0 0
      %1250 = vmatmul.mubr.bf16.gmra.mrb[0].mxu0 %v1215
      %v1251 = vpop.f32.mrb[0].mxu0
      %v1252 = vadd.f32 0.0, %v1251
      %v1253 = vpop.f32.mrb[0].mxu0
      %v1254 = vpop.f32.mrb[0].mxu0
      %v1255 = vadd.f32 0.0, %v1254
      %v1256 = vpop.f32.mrb[0].mxu0
      %1257 = vdwg.mxu0
      %v1259 = vsel %vm937, %v1164, 0
      %1261 = vmatprep.subr.bf16.mxu0 0
      %1262 = vmatpush1.bf16.msra.mxu0 %v556
      %1263 = vmatprep.subr.bf16.mxu0 0
      %1264 = vmatpush1.bf16.msra.mxu0 %v555
      %1265 = vmatprep.subr.bf16.mxu0 0
      %1266 = vmatpush1.bf16.msra.mxu0 %v554
      %1267 = vmatprep.subr.bf16.mxu0 0
      %1268 = vmatpush1.bf16.msra.mxu0 0
      %1269 = vmatprep.subr.bf16.mxu0 0
      %1270 = vmatpush1.bf16.msra.mxu0 0
      %1271 = vmatprep.subr.bf16.mxu0 0
      %1272 = vmatpush1.bf16.msra.mxu0 0
      %1273 = vmatprep.subr.bf16.mxu0 0
      %1274 = vmatpush1.bf16.msra.mxu0 0
      %1275 = vmatprep.subr.bf16.mxu0 0
      %1276 = vmatpush1.bf16.msra.mxu0 0
      %1277 = vmatprep.subr.bf16.mxu0 0
      %1278 = vmatpush1.bf16.msra.mxu0 0
      %1279 = vmatprep.subr.bf16.mxu0 0
      %1280 = vmatpush1.bf16.msra.mxu0 0
      %1281 = vmatprep.subr.bf16.mxu0 0
      %1282 = vmatpush1.bf16.msra.mxu0 0
      %1283 = vmatprep.subr.bf16.mxu0 0
      %1284 = vmatpush1.bf16.msra.mxu0 0
      %1285 = vmatprep.subr.bf16.mxu0 0
      %1286 = vmatpush1.bf16.msra.mxu0 0
      %1287 = vmatprep.subr.bf16.mxu0 0
      %1288 = vmatpush1.bf16.msra.mxu0 0
      %1289 = vmatprep.subr.bf16.mxu0 0
      %1290 = vmatpush1.bf16.msra.mxu0 0
      %1291 = vmatprep.subr.bf16.mxu0 0
      %1292 = vmatpush1.bf16.msra.mxu0 0
      %1293 = vmatprep.mubr.bf16.mxu0 0
      %1294 = vmatmul.mubr.bf16.gmra.mrb[0].mxu0 %v1259
      %v1295 = vpop.f32.mrb[0].mxu0
      %v1296 = vadd.f32 0.0, %v1295
      %v1297 = vpop.f32.mrb[0].mxu0
      %v1298 = vpop.f32.mrb[0].mxu0
      %v1299 = vadd.f32 0.0, %v1298
      %v1300 = vpop.f32.mrb[0].mxu0
      %1301 = vdwg.mxu0
      %v1303 = vsel %vm937, %v1165, 0
      %1305 = vmatprep.subr.bf16.mxu0 0
      %1306 = vmatpush1.bf16.msra.mxu0 %v554
      %1307 = vmatprep.subr.bf16.mxu0 0
      %1308 = vmatpush1.bf16.msra.mxu0 %v556
      %1309 = vmatprep.subr.bf16.mxu0 0
      %1310 = vmatpush1.bf16.msra.mxu0 %v553
      %1311 = vmatprep.subr.bf16.mxu0 0
      %1312 = vmatpush1.bf16.msra.mxu0 0
      %1313 = vmatprep.subr.bf16.mxu0 0
      %1314 = vmatpush1.bf16.msra.mxu0 0
      %1315 = vmatprep.subr.bf16.mxu0 0
      %1316 = vmatpush1.bf16.msra.mxu0 0
      %1317 = vmatprep.subr.bf16.mxu0 0
      %1318 = vmatpush1.bf16.msra.mxu0 0
      %1319 = vmatprep.subr.bf16.mxu0 0
      %1320 = vmatpush1.bf16.msra.mxu0 0
      %1321 = vmatprep.subr.bf16.mxu0 0
      %1322 = vmatpush1.bf16.msra.mxu0 0
      %1323 = vmatprep.subr.bf16.mxu0 0
      %1324 = vmatpush1.bf16.msra.mxu0 0
      %1325 = vmatprep.subr.bf16.mxu0 0
      %1326 = vmatpush1.bf16.msra.mxu0 0
      %1327 = vmatprep.subr.bf16.mxu0 0
      %1328 = vmatpush1.bf16.msra.mxu0 0
      %1329 = vmatprep.subr.bf16.mxu0 0
      %1330 = vmatpush1.bf16.msra.mxu0 0
      %1331 = vmatprep.subr.bf16.mxu0 0
      %1332 = vmatpush1.bf16.msra.mxu0 0
      %1333 = vmatprep.subr.bf16.mxu0 0
      %1334 = vmatpush1.bf16.msra.mxu0 0
      %1335 = vmatprep.subr.bf16.mxu0 0
      %1336 = vmatpush1.bf16.msra.mxu0 0
      %1337 = vmatprep.mubr.bf16.mxu0 0
      %1338 = vmatmul.mubr.bf16.gmra.mrb[0].mxu0 %v1303
      %v1339 = vpop.f32.mrb[0].mxu0
      %v1340 = vadd.f32 0.0, %v1339
      %v1341 = vpop.f32.mrb[0].mxu0
      %v1342 = vpop.f32.mrb[0].mxu0
      %v1343 = vadd.f32 0.0, %v1342
      %v1344 = vpop.f32.mrb[0].mxu0
      %1345 = vdwg.mxu0
      %v1347 = vsel %vm937, %v1166, 0
      %1349 = vmatprep.subr.bf16.mxu0 0
      %1350 = vmatpush1.bf16.msra.mxu0 %v557
      %1351 = vmatprep.subr.bf16.mxu0 0
      %1352 = vmatpush1.bf16.msra.mxu0 %v558
      %1353 = vmatprep.subr.bf16.mxu0 0
      %1354 = vmatpush1.bf16.msra.mxu0 %v559
      %1355 = vmatprep.subr.bf16.mxu0 0
      %1356 = vmatpush1.bf16.msra.mxu0 0
      %1357 = vmatprep.subr.bf16.mxu0 0
      %1358 = vmatpush1.bf16.msra.mxu0 0
      %1359 = vmatprep.subr.bf16.mxu0 0
      %1360 = vmatpush1.bf16.msra.mxu0 0
      %1361 = vmatprep.subr.bf16.mxu0 0
      %1362 = vmatpush1.bf16.msra.mxu0 0
      %1363 = vmatprep.subr.bf16.mxu0 0
      %1364 = vmatpush1.bf16.msra.mxu0 0
      %1365 = vmatprep.subr.bf16.mxu0 0
      %1366 = vmatpush1.bf16.msra.mxu0 0
      %1367 = vmatprep.subr.bf16.mxu0 0
      %1368 = vmatpush1.bf16.msra.mxu0 0
      %1369 = vmatprep.subr.bf16.mxu0 0
      %1370 = vmatpush1.bf16.msra.mxu0 0
      %1371 = vmatprep.subr.bf16.mxu0 0
      %1372 = vmatpush1.bf16.msra.mxu0 0
      %1373 = vmatprep.subr.bf16.mxu0 0
      %1374 = vmatpush1.bf16.msra.mxu0 0
      %1375 = vmatprep.subr.bf16.mxu0 0
      %1376 = vmatpush1.bf16.msra.mxu0 0
      %1377 = vmatprep.subr.bf16.mxu0 0
      %1378 = vmatpush1.bf16.msra.mxu0 0
      %1379 = vmatprep.subr.bf16.mxu0 0
      %1380 = vmatpush1.bf16.msra.mxu0 0
      %1381 = vmatprep.mubr.bf16.mxu0 0
      %1382 = vmatmul.mubr.bf16.gmra.mrb[0].mxu0 %v1347
      %v1383 = vpop.f32.mrb[0].mxu0
      %v1384 = vadd.f32 0.0, %v1383
      %v1385 = vpop.f32.mrb[0].mxu0
      %v1386 = vpop.f32.mrb[0].mxu0
      %v1387 = vadd.f32 0.0, %v1386
      %v1388 = vpop.f32.mrb[0].mxu0
      %1389 = vdwg.mxu0
      %v1391 = vsel %vm937, %v1167, 0
      %1393 = vmatprep.subr.bf16.mxu0 0
      %1394 = vmatpush1.bf16.msra.mxu0 %v559
      %1395 = vmatprep.subr.bf16.mxu0 0
      %1396 = vmatpush1.bf16.msra.mxu0 %v557
      %1397 = vmatprep.subr.bf16.mxu0 0
      %1398 = vmatpush1.bf16.msra.mxu0 %v560
      %1399 = vmatprep.subr.bf16.mxu0 0
      %1400 = vmatpush1.bf16.msra.mxu0 0
      %1401 = vmatprep.subr.bf16.mxu0 0
      %1402 = vmatpush1.bf16.msra.mxu0 0
      %1403 = vmatprep.subr.bf16.mxu0 0
      %1404 = vmatpush1.bf16.msra.mxu0 0
      %1405 = vmatprep.subr.bf16.mxu0 0
      %1406 = vmatpush1.bf16.msra.mxu0 0
      %1407 = vmatprep.subr.bf16.mxu0 0
      %1408 = vmatpush1.bf16.msra.mxu0 0
      %1409 = vmatprep.subr.bf16.mxu0 0
      %1410 = vmatpush1.bf16.msra.mxu0 0
      %1411 = vmatprep.subr.bf16.mxu0 0
      %1412 = vmatpush1.bf16.msra.mxu0 0
      %1413 = vmatprep.subr.bf16.mxu0 0
      %1414 = vmatpush1.bf16.msra.mxu0 0
      %1415 = vmatprep.subr.bf16.mxu0 0
      %1416 = vmatpush1.bf16.msra.mxu0 0
      %1417 = vmatprep.subr.bf16.mxu0 0
      %1418 = vmatpush1.bf16.msra.mxu0 0
      %1419 = vmatprep.subr.bf16.mxu0 0
      %1420 = vmatpush1.bf16.msra.mxu0 0
      %1421 = vmatprep.subr.bf16.mxu0 0
      %1422 = vmatpush1.bf16.msra.mxu0 0
      %1423 = vmatprep.subr.bf16.mxu0 0
      %1424 = vmatpush1.bf16.msra.mxu0 0
      %1425 = vmatprep.mubr.bf16.mxu0 0
      %1426 = vmatmul.mubr.bf16.gmra.mrb[0].mxu0 %v1391
      %v1427 = vpop.f32.mrb[0].mxu0
      %v1428 = vadd.f32 0.0, %v1427
      %v1429 = vpop.f32.mrb[0].mxu0
      %v1430 = vpop.f32.mrb[0].mxu0
      %v1431 = vadd.f32 0.0, %v1430
      %v1432 = vpop.f32.mrb[0].mxu0
      %1433 = vdwg.mxu0
      %v1435 = vsel %vm937, %v1168, 0
      %1437 = vmatprep.subr.bf16.mxu0 0
      %1438 = vmatpush1.bf16.msra.mxu0 %v560
      %1439 = vmatprep.subr.bf16.mxu0 0
      %1440 = vmatpush1.bf16.msra.mxu0 %v559
      %1441 = vmatprep.subr.bf16.mxu0 0
      %1442 = vmatpush1.bf16.msra.mxu0 %v558
      %1443 = vmatprep.subr.bf16.mxu0 0
      %1444 = vmatpush1.bf16.msra.mxu0 0
      %1445 = vmatprep.subr.bf16.mxu0 0
      %1446 = vmatpush1.bf16.msra.mxu0 0
      %1447 = vmatprep.subr.bf16.mxu0 0
      %1448 = vmatpush1.bf16.msra.mxu0 0
      %1449 = vmatprep.subr.bf16.mxu0 0
      %1450 = vmatpush1.bf16.msra.mxu0 0
      %1451 = vmatprep.subr.bf16.mxu0 0
      %1452 = vmatpush1.bf16.msra.mxu0 0
      %1453 = vmatprep.subr.bf16.mxu0 0
      %1454 = vmatpush1.bf16.msra.mxu0 0
      %1455 = vmatprep.subr.bf16.mxu0 0
      %1456 = vmatpush1.bf16.msra.mxu0 0
      %1457 = vmatprep.subr.bf16.mxu0 0
      %1458 = vmatpush1.bf16.msra.mxu0 0
      %1459 = vmatprep.subr.bf16.mxu0 0
      %1460 = vmatpush1.bf16.msra.mxu0 0
      %1461 = vmatprep.subr.bf16.mxu0 0
      %1462 = vmatpush1.bf16.msra.mxu0 0
      %1463 = vmatprep.subr.bf16.mxu0 0
      %1464 = vmatpush1.bf16.msra.mxu0 0
      %1465 = vmatprep.subr.bf16.mxu0 0
      %1466 = vmatpush1.bf16.msra.mxu0 0
      %1467 = vmatprep.subr.bf16.mxu0 0
      %1468 = vmatpush1.bf16.msra.mxu0 0
      %1469 = vmatprep.mubr.bf16.mxu0 0
      %1470 = vmatmul.mubr.bf16.gmra.mrb[0].mxu0 %v1435
      %v1471 = vpop.f32.mrb[0].mxu0
      %v1472 = vadd.f32 0.0, %v1471
      %v1473 = vpop.f32.mrb[0].mxu0
      %v1474 = vpop.f32.mrb[0].mxu0
      %v1475 = vadd.f32 0.0, %v1474
      %v1476 = vpop.f32.mrb[0].mxu0
      %1477 = vdwg.mxu0
      %v1479 = vsel %vm937, %v1169, 0
      %1481 = vmatprep.subr.bf16.mxu0 0
      %1482 = vmatpush1.bf16.msra.mxu0 %v558
      %1483 = vmatprep.subr.bf16.mxu0 0
      %1484 = vmatpush1.bf16.msra.mxu0 %v560
      %1485 = vmatprep.subr.bf16.mxu0 0
      %1486 = vmatpush1.bf16.msra.mxu0 %v557
      %1487 = vmatprep.subr.bf16.mxu0 0
      %1488 = vmatpush1.bf16.msra.mxu0 0
      %1489 = vmatprep.subr.bf16.mxu0 0
      %1490 = vmatpush1.bf16.msra.mxu0 0
      %1491 = vmatprep.subr.bf16.mxu0 0
      %1492 = vmatpush1.bf16.msra.mxu0 0
      %1493 = vmatprep.subr.bf16.mxu0 0
      %1494 = vmatpush1.bf16.msra.mxu0 0
      %1495 = vmatprep.subr.bf16.mxu0 0
      %1496 = vmatpush1.bf16.msra.mxu0 0
      %1497 = vmatprep.subr.bf16.mxu0 0
      %1498 = vmatpush1.bf16.msra.mxu0 0
      %1499 = vmatprep.subr.bf16.mxu0 0
      %1500 = vmatpush1.bf16.msra.mxu0 0
      %1501 = vmatprep.subr.bf16.mxu0 0
      %1502 = vmatpush1.bf16.msra.mxu0 0
      %1503 = vmatprep.subr.bf16.mxu0 0
      %1504 = vmatpush1.bf16.msra.mxu0 0
      %1505 = vmatprep.subr.bf16.mxu0 0
      %1506 = vmatpush1.bf16.msra.mxu0 0
      %1507 = vmatprep.subr.bf16.mxu0 0
      %1508 = vmatpush1.bf16.msra.mxu0 0
      %1509 = vmatprep.subr.bf16.mxu0 0
      %1510 = vmatpush1.bf16.msra.mxu0 0
      %1511 = vmatprep.subr.bf16.mxu0 0
      %1512 = vmatpush1.bf16.msra.mxu0 0
      %1513 = vmatprep.mubr.bf16.mxu0 0
      %1514 = vmatmul.mubr.bf16.gmra.mrb[0].mxu0 %v1479
      %v1515 = vpop.f32.mrb[0].mxu0
      %v1516 = vadd.f32 0.0, %v1515
      %v1517 = vpop.f32.mrb[0].mxu0
      %v1518 = vpop.f32.mrb[0].mxu0
      %v1519 = vadd.f32 0.0, %v1518
      %v1520 = vpop.f32.mrb[0].mxu0
      %1521 = vdwg.mxu0
      %v1522 = vsel %vm520, %v1208, %v1114
      %v1523 = vsel %vm520, %v1211, %v1115
      %v1524 = vsel %vm520, %v1252, %v1116
      %v1525 = vsel %vm520, %v1255, %v1117
      %v1526 = vsel %vm520, %v1296, %v1118
      %v1527 = vsel %vm520, %v1299, %v1119
      %v1528 = vsel %vm520, %v1340, %v1120
      %v1529 = vsel %vm520, %v1343, %v1121
      %v1530 = vsel %vm520, %v1384, %v1122
      %v1531 = vsel %vm520, %v1387, %v1123
      %v1532 = vsel %vm520, %v1428, %v1124
      %v1533 = vsel %vm520, %v1431, %v1125
      %v1534 = vsel %vm520, %v1472, %v1126
      %v1535 = vsel %vm520, %v1475, %v1127
      %v1536 = vsel %vm520, %v1516, %v1128
      %v1537 = vsel %vm520, %v1519, %v1129
      %vm1538 = vcmask 269312
      %v1539 = vsel %vm1538, %v1522, 0.0
      %v1540 = vsel %vm1538, %v1523, 0.0
      %v1541 = vsel %vm1538, %v1524, 0.0
      %v1542 = vsel %vm1538, %v1525, 0.0
      %v1543 = vsel %vm1538, %v1526, 0.0
      %v1544 = vsel %vm1538, %v1527, 0.0
      %v1545 = vsel %vm1538, %v1528, 0.0
      %v1546 = vsel %vm1538, %v1529, 0.0
      %v1547 = vsel %vm1538, %v1530, 0.0
      %v1548 = vsel %vm1538, %v1531, 0.0
      %v1549 = vsel %vm1538, %v1532, 0.0
      %v1550 = vsel %vm1538, %v1533, 0.0
      %v1551 = vsel %vm1538, %v1534, 0.0
      %v1552 = vsel %vm1538, %v1535, 0.0
      %v1553 = vsel %vm1538, %v1536, 0.0
      %v1554 = vsel %vm1538, %v1537, 0.0
      %1555 = vst [vmem:[%s227] sm:$0xff] %v1539
      %1556 = vst [vmem:[%s227 + $0x8] sm:$0xff] %v1540
      %1557 = vst [vmem:[%s227 + $0x10] sm:$0xff] %v1541
      %1558 = vst [vmem:[%s227 + $0x18] sm:$0xff] %v1542
      %1559 = vst [vmem:[%s227 + $0x20] sm:$0xff] %v1543
      %1560 = vst [vmem:[%s227 + $0x28] sm:$0xff] %v1544
      %1561 = vst [vmem:[%s227 + $0x30] sm:$0xff] %v1545
      %1562 = vst [vmem:[%s227 + $0x38] sm:$0xff] %v1546
      %1563 = vst [vmem:[%s227 + $0x40] sm:$0xff] %v1547
      %1564 = vst [vmem:[%s227 + $0x48] sm:$0xff] %v1548
      %1565 = vst [vmem:[%s227 + $0x50] sm:$0xff] %v1549
      %1566 = vst [vmem:[%s227 + $0x58] sm:$0xff] %v1550
      %1567 = vst [vmem:[%s227 + $0x60] sm:$0xff] %v1551
      %1568 = vst [vmem:[%s227 + $0x68] sm:$0xff] %v1552
      %1569 = vst [vmem:[%s227 + $0x70] sm:$0xff] %v1553
      %1570 = vst [vmem:[%s227 + $0x78] sm:$0xff] %v1554
      %s1571 = smul.u32 2, %s14
      %p1572 = scmp.lt.s32.totalorder %s1571, 3
      %s1573 = scalar_select %p1572, %s1571, 3
      %s1574 = smul.addr %s1573, 8
      %s1575 = smul.addr %s1574, 8
      %s1576 = scalar_lea.vmem %s3, %s1575
      // Predicated region
      $region33: #{gla_forward.5} parent=31 // pred_check
        %p1577 = pneg %p110
      $region34: #{gla_forward.5} parent=31 // pred_check_branch
        %1579 = sbr.rel (%p1577) target = $region36
      $region35: #{gla_forward.5} parent=31 // pred_region
        %s1580 = smul.u32 2, %s14
      $region36: #{gla_forward.5} parent=31 // pred_fallthru
        _
    $region32: #{gla_forward.5} parent=5 // pred_fallthru
      _
    %p1581 = scmp.le.s32.totalorder 2, %s9
    // Predicated region
    $region37: #{gla_forward.5} parent=5 // pred_check
      %p1582 = pneg %p1581
    $region38: #{gla_forward.5} parent=5 // pred_check_branch
      %1584 = sbr.rel (%p1582) target = $region40
    $region39: #{gla_forward.5} parent=5 // pred_region
      %s1585 = ssub.s32 %s9, 2
      // Predicated region
      $region41: #{gla_forward.5} parent=39 // pred_check
        %p1586 = pneg %p116
      $region42: #{gla_forward.5} parent=39 // pred_check_branch
        %1588 = sbr.rel (%p1586) target = $region44
      $region43: #{gla_forward.5} parent=39 // pred_region
        %s1589 = smul.u32 2, %s15
        %p1590 = scmp.lt.s32.totalorder %s1589, 3
        %s1591 = scalar_select %p1590, %s1589, 3
        %s1592 = smul.addr %s1591, 8
        %s1593 = smul.addr %s1592, 8
        %s1594 = scalar_lea.vmem %s3, %s1593
      $region44: #{gla_forward.5} parent=39 // pred_fallthru
        _
    $region40: #{gla_forward.5} parent=5 // pred_fallthru
      _
  $region6: #{gla_forward.5} parent=0 // loop_footer
    %s13 = sadd.s32 1, %s9
  $region7: #{gla_forward.5} parent=0 // loop_footer_branch
    %8 = sbr.rel target = $region3
  $region8: #{gla_forward.5} parent=0 // loop_exit
    _

</llo_original>
